<compile_context>
chip_gen: v5e
topology: v5e:2x2
jax: 0.10.0
libtpu: 0.0.40
codegen_flags: <defaults>
</compile_context>

<pallas_src>
import jax
import jax.numpy as jnp
from jax import lax
from jax.experimental import pallas as pl
from jax.experimental.pallas import tpu as pltpu


_LAYER_CFG = [
    # (cin, cout, k, stride, relu)
    (16, 16, 3, 1, True),
    (16, 64, 3, 1, True),
    (64, 64, 4, 2, True),
    (64, 32, 8, 4, True),
    (32, 4, 1, 1, False),
]


# ------------------------------ parameters ----------------------------------
def init_params(key):
    params = []
    for (cin, cout, k, _s, _r) in _LAYER_CFG:
        key, kw_, kb_ = jax.random.split(key, 3)
        bound = 1.0 / jnp.sqrt(cin * k * k)          # PyTorch-style uniform init
        w = jax.random.uniform(kw_, (cin, cout, k, k), jnp.float32, -bound, bound)
        b = jax.random.uniform(kb_, (cout,), jnp.float32, -bound, bound)
        params.append((w, b))
    return params


def prepare_params(params):
    """One-time repack of PyTorch-layout ConvTranspose2d params into the
    K-fused / sub-pixel / block-diagonal layouts the fused kernel consumes."""
    (w1, b1), (w2, b2), (w3, b3), (w4, b4), (w5, b5) = params
    f32 = jnp.float32

    def conv_taps_matrix(w):
        # (Cin, Cout, K, K) -> flip -> (K, K, Cin, Cout) -> (K*K*Cin, Cout)
        cin, cout, k, _ = w.shape
        wf = jnp.transpose(w[:, :, ::-1, ::-1], (2, 3, 0, 1))
        return wf.reshape(k * k * cin, cout).astype(f32)

    w1t = conv_taps_matrix(w1)                       # (144, 16)
    w2t = conv_taps_matrix(w2)                       # (144, 64)

    # Layer 3 (k=4, s=2) sub-pixel repack:
    #   w3t[ph, pw, (jh*2+jw)*64 + ci, co] = w3[ci, co, 2*(1-jh)+ph, 2*(1-jw)+pw]
    w3r = w3.reshape(64, 64, 2, 2, 2, 2)[:, :, ::-1, :, ::-1, :]
    w3t = (jnp.transpose(w3r, (3, 5, 2, 4, 0, 1))
           .reshape(2, 2, 4 * 64, 64).astype(f32))                    # (2,2,256,64)

    # Layer 4 (k=8, s=4) sub-pixel repack, K-fused taps:
    #   w4t[(jh*2+jw)*64 + ci, (ph*4+pw)*32 + co] = w4[ci, co, 4*(1-jh)+ph, 4*(1-jw)+pw]
    w4r = w4.reshape(64, 32, 2, 4, 2, 4)[:, :, ::-1, :, ::-1, :]
    w4t = (jnp.transpose(w4r, (2, 4, 0, 3, 5, 1))
           .reshape(2 * 2 * 64, 16 * 32).astype(f32))                 # (256, 512)
    b4t = jnp.tile(b4, 16)                           # (512,) phase-tiled

    # Layer 5 (1x1 conv) as a block-diagonal matmul applied per sub-pixel phase,
    # zero-padded to 128 output lanes so the final store is lane-dense.
    w5m = jnp.kron(jnp.eye(16, dtype=f32), w5[:, :, 0, 0].astype(f32))  # (512, 64)
    w5m = jnp.concatenate([w5m, jnp.zeros((512, 64), f32)], axis=1)      # (512, 128)
    b5t = jnp.concatenate([jnp.tile(b5, 16), jnp.zeros((64,), f32)])     # (128,)

    row = lambda b: b.reshape(1, -1).astype(f32)
    return (w1t, row(b1), w2t, row(b2), w3t, row(b3),
            w4t, row(b4t), w5m, row(b5t))


# ------------------------------ fused kernel --------------------------------
def _make_decoder_kernel(H0, W0):
    """Builds the fused decoder kernel for an (H0, W0) latent; one batch
    element per grid step, all intermediate activations resident in VMEM."""
    H1, W1 = H0 + 2, W0 + 2            # after conv1T (k3 s1)
    H2, W2 = H1 + 2, W1 + 2            # after conv2T (k3 s1)
    H3p, W3p = H2 + 1, W2 + 1          # per-phase output size of conv3T (k4 s2)
    H3, W3 = 2 * H3p, 2 * W3p          # after conv3T
    H4, W4 = H3 + 1, W3 + 1            # per-phase output size of conv4T (k8 s4)
    f32 = jnp.float32

    def pad_hw(a, p):
        # zero-pad the two leading spatial dims by p (built in registers,
        # lane dim untouched -> dense, no scratch zero-init, no masked stores)
        H, W, C = a.shape
        zt = jnp.zeros((p, W, C), a.dtype)
        a = jnp.concatenate([zt, a, zt], axis=0)
        zs = jnp.zeros((H + 2 * p, p, C), a.dtype)
        return jnp.concatenate([zs, a, zs], axis=1)

    def im2col(a_pad, kh, kw, oh, ow):
        # K-fused patch: concat the shifted windows along lanes, flatten rows
        c = a_pad.shape[-1]
        cols = [a_pad[i:i + oh, j:j + ow, :] for i in range(kh) for j in range(kw)]
        return jnp.concatenate(cols, axis=-1).reshape(oh * ow, kh * kw * c)

    def kernel(x_ref, w1_ref, b1_ref, w2_ref, b2_ref, w3_ref, b3_ref,
               w4_ref, b4_ref, w5_ref, b5_ref, o_ref):
        # ---- layer 1: ConvT(16->16, k3, s1) + ReLU  (VALID conv on pad-2 input)
        xp = pad_hw(x_ref[0], 2)                                  # (H0+4, W0+4, 16)
        a1 = jnp.dot(im2col(xp, 3, 3, H1, W1), w1_ref[...],
                     preferred_element_type=f32) + b1_ref[...]
        a1 = jnp.maximum(a1, 0.0)                                 # (H1*W1, 16)

        # ---- layer 2: ConvT(16->64, k3, s1) + ReLU
        a1p = pad_hw(a1.reshape(H1, W1, 16), 2)                   # (H1+4, W1+4, 16)
        a2 = jnp.dot(im2col(a1p, 3, 3, H2, W2), w2_ref[...],
                     preferred_element_type=f32) + b2_ref[...]
        a2 = jnp.maximum(a2, 0.0)                                 # (H2*W2, 64)

        # ---- layer 3: ConvT(64->64, k4, s2) + ReLU in sub-pixel form
        #      4 phases, each a 2x2-tap conv on the un-dilated pad-1 input,
        #      then a dense concat/reshape interleave (no scatter stores).
        a2p = pad_hw(a2.reshape(H2, W2, 64), 1)                   # (H2+2, W2+2, 64)
        p3 = im2col(a2p, 2, 2, H3p, W3p)                          # (H3p*W3p, 256)
        rows = []
        for ph in range(2):
            cols = []
            for pw in range(2):
                v = jnp.dot(p3, w3_ref[ph, pw, :, :],
                            preferred_element_type=f32) + b3_ref[...]
                cols.append(jnp.maximum(v, 0.0).reshape(H3p, W3p, 1, 64))
            # interleave along W: a3[., 2*c+pw, :] = phase(ph,pw)[., c, :]
            rows.append(jnp.concatenate(cols, axis=2)
                        .reshape(H3p, 1, 2 * W3p, 64))
        # interleave along H: a3[2*a+ph, ., :] = row(ph)[a, ., :]
        a3 = jnp.concatenate(rows, axis=1).reshape(H3, W3, 64)    # (H3, W3, 64)

        # ---- layer 4: ConvT(64->32, k8, s4) + ReLU in sub-pixel form
        #      (16 phases as one K-fused 2x2-tap matmul on the pad-1 input),
        #      fused with layer 5 (1x1 conv as block-diagonal matmul).
        a3p = pad_hw(a3, 1)                                       # (H3+2, W3+2, 64)
        p4 = im2col(a3p, 2, 2, H4, W4)                            # (H4*W4, 256)
        a4 = jnp.dot(p4, w4_ref[...], preferred_element_type=f32) + b4_ref[...]
        a4 = jnp.maximum(a4, 0.0)                                 # (H4*W4, 512)
        a5 = jnp.dot(a4, w5_ref[...], preferred_element_type=f32) + b5_ref[...]
        o_ref[...] = a5.reshape(1, H4 * W4, 128)                  # lane-dense store

    return kernel, (H4, W4)


def decoder_forward_pallas(x_nchw, packed):
    """Forward pass matching the PyTorch `decoder` module (NCHW in / NCHW out)."""
    B, C, H0, W0 = x_nchw.shape
    assert C == 16, "decoder expects a 16-channel latent"
    kernel, (H4, W4) = _make_decoder_kernel(H0, W0)
    w1t, b1, w2t, b2, w3t, b3, w4t, b4, w5m, b5 = packed

    x_nhwc = jnp.transpose(x_nchw, (0, 2, 3, 1)).astype(jnp.float32)

    def full(a):
        # whole-array block, same (grid-invariant) block for every grid step
        return pl.BlockSpec(a.shape, lambda bb: (0,) * a.ndim)

    out = pl.pallas_call(
        kernel,
        out_shape=jax.ShapeDtypeStruct((B, H4 * W4, 128), jnp.float32),
        grid=(B,),
        in_specs=[
            pl.BlockSpec((1, H0, W0, 16), lambda bb: (bb, 0, 0, 0)),
            full(w1t), full(b1), full(w2t), full(b2), full(w3t), full(b3),
            full(w4t), full(b4), full(w5m), full(b5),
        ],
        out_specs=pl.BlockSpec((1, H4 * W4, 128), lambda bb: (bb, 0, 0)),
        compiler_params=pltpu.CompilerParams(
            dimension_semantics=("parallel",)),
    )(x_nhwc, w1t, b1, w2t, b2, w3t, b3, w4t, b4, w5m, b5)

    # drop the 128-lane zero padding, then sub-pixel decode + NCHW:
    #   out[b, a*W4 + c, ph*16 + pw*4 + co] -> y[b, co, 4*a + ph, 4*c + pw]
    out = out[:, :, :64].reshape(B, H4, W4, 4, 4, 4)
    out = jnp.transpose(out, (0, 5, 1, 3, 2, 4)).reshape(B, 4, 4 * H4, 4 * W4)
    return out


# ----------------------------- pure-JAX reference ----------------------------
def decoder_forward_ref(x_nchw, params):
    y = jnp.transpose(x_nchw, (0, 2, 3, 1)).astype(jnp.float32)
    for (w, b), (_ci, _co, k, s, relu) in zip(params, _LAYER_CFG):
        wf = jnp.transpose(w[:, :, ::-1, ::-1], (2, 3, 0, 1))     # (K,K,Cin,Cout)
        y = lax.conv_general_dilated(
            y, wf,
            window_strides=(1, 1),
            padding=[(k - 1, k - 1), (k - 1, k - 1)],
            lhs_dilation=(s, s),
            dimension_numbers=("NHWC", "HWIO", "NHWC"),
        ) + b[None, None, None, :]
        if relu:
            y = jnp.maximum(y, 0.0)
    return jnp.transpose(y, (0, 3, 1, 2))


if __name__ == "__main__":
    key = jax.random.PRNGKey(0)
    kx, kp = jax.random.split(key)

    # small latent consistent with the module: (B=2, C=16, H=2, W=2)
    x = jax.random.normal(kx, (2, 16, 2, 2), jnp.float32)
    params = init_params(kp)
    packed = prepare_params(params)          # one-time weight repack

    fwd = jax.jit(decoder_forward_pallas)
    out = jax.block_until_ready(fwd(x, packed))

    ref = jax.block_until_ready(decoder_forward_ref(x, params))
    assert out.shape == (2, 4, 60, 60), out.shape
    max_err = float(jnp.max(jnp.abs(out - ref)))
    assert jnp.allclose(out, ref, atol=1e-3, rtol=1e-3), max_err

    print("KERNEL_OK")
</pallas_src>

<mosaic_0001>
module attributes {stable_mosaic.version = 11 : i64} {
  func.func @kernel(%arg0: i32, %arg1: memref<1x2x2x16xf32, #tpu.memory_space<vmem>>, %arg2: memref<144x16xf32, #tpu.memory_space<vmem>>, %arg3: memref<1x16xf32, #tpu.memory_space<vmem>>, %arg4: memref<144x64xf32, #tpu.memory_space<vmem>>, %arg5: memref<1x64xf32, #tpu.memory_space<vmem>>, %arg6: memref<2x2x256x64xf32, #tpu.memory_space<vmem>>, %arg7: memref<1x64xf32, #tpu.memory_space<vmem>>, %arg8: memref<256x512xf32, #tpu.memory_space<vmem>>, %arg9: memref<1x512xf32, #tpu.memory_space<vmem>>, %arg10: memref<512x128xf32, #tpu.memory_space<vmem>>, %arg11: memref<1x128xf32, #tpu.memory_space<vmem>>, %arg12: memref<1x225x128xf32, #tpu.memory_space<vmem>>) attributes {dimension_semantics = [#tpu.dimension_semantics<parallel>], iteration_bounds = array<i64: 2>, scalar_prefetch = 0 : i64, scratch_operands = 0 : i64, tpu.core_type = #tpu.core_type<tc>, window_params = [{transform_indices = @transform_0, window_bounds = array<i64: 1, 2, 2, 16>}, {pipeline_mode = #tpu.pipeline_mode<synchronous>, transform_indices = @transform_1, window_bounds = array<i64: 144, 16>}, {pipeline_mode = #tpu.pipeline_mode<synchronous>, transform_indices = @transform_2, window_bounds = array<i64: 1, 16>}, {pipeline_mode = #tpu.pipeline_mode<synchronous>, transform_indices = @transform_3, window_bounds = array<i64: 144, 64>}, {pipeline_mode = #tpu.pipeline_mode<synchronous>, transform_indices = @transform_4, window_bounds = array<i64: 1, 64>}, {pipeline_mode = #tpu.pipeline_mode<synchronous>, transform_indices = @transform_5, window_bounds = array<i64: 2, 2, 256, 64>}, {pipeline_mode = #tpu.pipeline_mode<synchronous>, transform_indices = @transform_6, window_bounds = array<i64: 1, 64>}, {pipeline_mode = #tpu.pipeline_mode<synchronous>, transform_indices = @transform_7, window_bounds = array<i64: 256, 512>}, {pipeline_mode = #tpu.pipeline_mode<synchronous>, transform_indices = @transform_8, window_bounds = array<i64: 1, 512>}, {pipeline_mode = #tpu.pipeline_mode<synchronous>, transform_indices = @transform_9, window_bounds = array<i64: 512, 128>}, {pipeline_mode = #tpu.pipeline_mode<synchronous>, transform_indices = @transform_10, window_bounds = array<i64: 1, 128>}, {transform_indices = @transform_11, window_bounds = array<i64: 1, 225, 128>}]} {
    %c0 = arith.constant 0 : index
    %c0_0 = arith.constant 0 : index
    %c0_1 = arith.constant 0 : index
    %c0_2 = arith.constant 0 : index
    %0 = vector.load %arg1[%c0, %c0_0, %c0_1, %c0_2] : memref<1x2x2x16xf32, #tpu.memory_space<vmem>>, vector<1x2x2x16xf32>
    %1 = vector.shape_cast %0 : vector<1x2x2x16xf32> to vector<2x2x16xf32>
    %cst = arith.constant 0.000000e+00 : f32
    %2 = vector.broadcast %cst : f32 to vector<2x2x16xf32>
    %3 = tpu.concatenate %2, %1, %2 in 0 : vector<2x2x16xf32>, vector<2x2x16xf32>, vector<2x2x16xf32> -> vector<6x2x16xf32>
    %cst_3 = arith.constant 0.000000e+00 : f32
    %4 = vector.broadcast %cst_3 : f32 to vector<6x2x16xf32>
    %5 = tpu.concatenate %4, %3, %4 in 1 : vector<6x2x16xf32>, vector<6x2x16xf32>, vector<6x2x16xf32> -> vector<6x6x16xf32>
    %6 = vector.extract_strided_slice %5 {offsets = [0, 0, 0], sizes = [4, 4, 16], strides = [1, 1, 1]} : vector<6x6x16xf32> to vector<4x4x16xf32>
    %7 = vector.extract_strided_slice %5 {offsets = [0, 1, 0], sizes = [4, 4, 16], strides = [1, 1, 1]} : vector<6x6x16xf32> to vector<4x4x16xf32>
    %8 = vector.extract_strided_slice %5 {offsets = [0, 2, 0], sizes = [4, 4, 16], strides = [1, 1, 1]} : vector<6x6x16xf32> to vector<4x4x16xf32>
    %9 = vector.extract_strided_slice %5 {offsets = [1, 0, 0], sizes = [4, 4, 16], strides = [1, 1, 1]} : vector<6x6x16xf32> to vector<4x4x16xf32>
    %10 = vector.extract_strided_slice %5 {offsets = [1, 1, 0], sizes = [4, 4, 16], strides = [1, 1, 1]} : vector<6x6x16xf32> to vector<4x4x16xf32>
    %11 = vector.extract_strided_slice %5 {offsets = [1, 2, 0], sizes = [4, 4, 16], strides = [1, 1, 1]} : vector<6x6x16xf32> to vector<4x4x16xf32>
    %12 = vector.extract_strided_slice %5 {offsets = [2, 0, 0], sizes = [4, 4, 16], strides = [1, 1, 1]} : vector<6x6x16xf32> to vector<4x4x16xf32>
    %13 = vector.extract_strided_slice %5 {offsets = [2, 1, 0], sizes = [4, 4, 16], strides = [1, 1, 1]} : vector<6x6x16xf32> to vector<4x4x16xf32>
    %14 = vector.extract_strided_slice %5 {offsets = [2, 2, 0], sizes = [4, 4, 16], strides = [1, 1, 1]} : vector<6x6x16xf32> to vector<4x4x16xf32>
    %15 = tpu.concatenate %6, %7, %8, %9, %10, %11, %12, %13, %14 in 2 : vector<4x4x16xf32>, vector<4x4x16xf32>, vector<4x4x16xf32>, vector<4x4x16xf32>, vector<4x4x16xf32>, vector<4x4x16xf32>, vector<4x4x16xf32>, vector<4x4x16xf32>, vector<4x4x16xf32> -> vector<4x4x144xf32>
    %16 = vector.shape_cast %15 : vector<4x4x144xf32> to vector<16x144xf32>
    %c0_4 = arith.constant 0 : index
    %c0_5 = arith.constant 0 : index
    %17 = vector.load %arg2[%c0_4, %c0_5] : memref<144x16xf32, #tpu.memory_space<vmem>>, vector<144x16xf32>
    %cst_6 = arith.constant dense<0.000000e+00> : vector<16x16xf32>
    %18 = tpu.matmul %16, %17, %cst_6 {dimension_numbers = #tpu.dot_dimension_numbers<[1], [0], [0], [1], [0, 0, 1, 1], [], []>} : vector<16x144xf32>, vector<144x16xf32>, vector<16x16xf32> -> vector<16x16xf32>
    %c0_7 = arith.constant 0 : index
    %c0_8 = arith.constant 0 : index
    %19 = vector.load %arg3[%c0_7, %c0_8] : memref<1x16xf32, #tpu.memory_space<vmem>>, vector<1x16xf32>
    %20 = vector.broadcast %19 : vector<1x16xf32> to vector<16x16xf32>
    %21 = arith.addf %18, %20 : vector<16x16xf32>
    %cst_9 = arith.constant 0.000000e+00 : f32
    %22 = vector.broadcast %cst_9 : f32 to vector<16x16xf32>
    %23 = arith.maximumf %21, %22 : vector<16x16xf32>
    %24 = vector.shape_cast %23 : vector<16x16xf32> to vector<4x4x16xf32>
    %cst_10 = arith.constant 0.000000e+00 : f32
    %25 = vector.broadcast %cst_10 : f32 to vector<2x4x16xf32>
    %26 = tpu.concatenate %25, %24, %25 in 0 : vector<2x4x16xf32>, vector<4x4x16xf32>, vector<2x4x16xf32> -> vector<8x4x16xf32>
    %cst_11 = arith.constant 0.000000e+00 : f32
    %27 = vector.broadcast %cst_11 : f32 to vector<8x2x16xf32>
    %28 = tpu.concatenate %27, %26, %27 in 1 : vector<8x2x16xf32>, vector<8x4x16xf32>, vector<8x2x16xf32> -> vector<8x8x16xf32>
    %29 = vector.extract_strided_slice %28 {offsets = [0, 0, 0], sizes = [6, 6, 16], strides = [1, 1, 1]} : vector<8x8x16xf32> to vector<6x6x16xf32>
    %30 = vector.extract_strided_slice %28 {offsets = [0, 1, 0], sizes = [6, 6, 16], strides = [1, 1, 1]} : vector<8x8x16xf32> to vector<6x6x16xf32>
    %31 = vector.extract_strided_slice %28 {offsets = [0, 2, 0], sizes = [6, 6, 16], strides = [1, 1, 1]} : vector<8x8x16xf32> to vector<6x6x16xf32>
    %32 = vector.extract_strided_slice %28 {offsets = [1, 0, 0], sizes = [6, 6, 16], strides = [1, 1, 1]} : vector<8x8x16xf32> to vector<6x6x16xf32>
    %33 = vector.extract_strided_slice %28 {offsets = [1, 1, 0], sizes = [6, 6, 16], strides = [1, 1, 1]} : vector<8x8x16xf32> to vector<6x6x16xf32>
    %34 = vector.extract_strided_slice %28 {offsets = [1, 2, 0], sizes = [6, 6, 16], strides = [1, 1, 1]} : vector<8x8x16xf32> to vector<6x6x16xf32>
    %35 = vector.extract_strided_slice %28 {offsets = [2, 0, 0], sizes = [6, 6, 16], strides = [1, 1, 1]} : vector<8x8x16xf32> to vector<6x6x16xf32>
    %36 = vector.extract_strided_slice %28 {offsets = [2, 1, 0], sizes = [6, 6, 16], strides = [1, 1, 1]} : vector<8x8x16xf32> to vector<6x6x16xf32>
    %37 = vector.extract_strided_slice %28 {offsets = [2, 2, 0], sizes = [6, 6, 16], strides = [1, 1, 1]} : vector<8x8x16xf32> to vector<6x6x16xf32>
    %38 = tpu.concatenate %29, %30, %31, %32, %33, %34, %35, %36, %37 in 2 : vector<6x6x16xf32>, vector<6x6x16xf32>, vector<6x6x16xf32>, vector<6x6x16xf32>, vector<6x6x16xf32>, vector<6x6x16xf32>, vector<6x6x16xf32>, vector<6x6x16xf32>, vector<6x6x16xf32> -> vector<6x6x144xf32>
    %39 = vector.shape_cast %38 : vector<6x6x144xf32> to vector<36x144xf32>
    %c0_12 = arith.constant 0 : index
    %c0_13 = arith.constant 0 : index
    %40 = vector.load %arg4[%c0_12, %c0_13] : memref<144x64xf32, #tpu.memory_space<vmem>>, vector<144x64xf32>
    %cst_14 = arith.constant dense<0.000000e+00> : vector<36x64xf32>
    %41 = tpu.matmul %39, %40, %cst_14 {dimension_numbers = #tpu.dot_dimension_numbers<[1], [0], [0], [1], [0, 0, 1, 1], [], []>} : vector<36x144xf32>, vector<144x64xf32>, vector<36x64xf32> -> vector<36x64xf32>
    %c0_15 = arith.constant 0 : index
    %c0_16 = arith.constant 0 : index
    %42 = vector.load %arg5[%c0_15, %c0_16] : memref<1x64xf32, #tpu.memory_space<vmem>>, vector<1x64xf32>
    %43 = vector.broadcast %42 : vector<1x64xf32> to vector<36x64xf32>
    %44 = arith.addf %41, %43 : vector<36x64xf32>
    %cst_17 = arith.constant 0.000000e+00 : f32
    %45 = vector.broadcast %cst_17 : f32 to vector<36x64xf32>
    %46 = arith.maximumf %44, %45 : vector<36x64xf32>
    %47 = vector.shape_cast %46 : vector<36x64xf32> to vector<6x6x64xf32>
    %cst_18 = arith.constant 0.000000e+00 : f32
    %48 = vector.broadcast %cst_18 : f32 to vector<1x6x64xf32>
    %49 = tpu.concatenate %48, %47, %48 in 0 : vector<1x6x64xf32>, vector<6x6x64xf32>, vector<1x6x64xf32> -> vector<8x6x64xf32>
    %cst_19 = arith.constant 0.000000e+00 : f32
    %50 = vector.broadcast %cst_19 : f32 to vector<8x1x64xf32>
    %51 = tpu.concatenate %50, %49, %50 in 1 : vector<8x1x64xf32>, vector<8x6x64xf32>, vector<8x1x64xf32> -> vector<8x8x64xf32>
    %52 = vector.extract_strided_slice %51 {offsets = [0, 0, 0], sizes = [7, 7, 64], strides = [1, 1, 1]} : vector<8x8x64xf32> to vector<7x7x64xf32>
    %53 = vector.extract_strided_slice %51 {offsets = [0, 1, 0], sizes = [7, 7, 64], strides = [1, 1, 1]} : vector<8x8x64xf32> to vector<7x7x64xf32>
    %54 = vector.extract_strided_slice %51 {offsets = [1, 0, 0], sizes = [7, 7, 64], strides = [1, 1, 1]} : vector<8x8x64xf32> to vector<7x7x64xf32>
    %55 = vector.extract_strided_slice %51 {offsets = [1, 1, 0], sizes = [7, 7, 64], strides = [1, 1, 1]} : vector<8x8x64xf32> to vector<7x7x64xf32>
    %56 = tpu.concatenate %52, %53, %54, %55 in 2 : vector<7x7x64xf32>, vector<7x7x64xf32>, vector<7x7x64xf32>, vector<7x7x64xf32> -> vector<7x7x256xf32>
    %57 = vector.shape_cast %56 : vector<7x7x256xf32> to vector<49x256xf32>
    %c0_20 = arith.constant 0 : index
    %c0_21 = arith.constant 0 : index
    %c0_22 = arith.constant 0 : index
    %c0_23 = arith.constant 0 : index
    %58 = vector.load %arg6[%c0_20, %c0_21, %c0_22, %c0_23] : memref<2x2x256x64xf32, #tpu.memory_space<vmem>>, vector<1x1x256x64xf32>
    %59 = vector.shape_cast %58 : vector<1x1x256x64xf32> to vector<256x64xf32>
    %cst_24 = arith.constant dense<0.000000e+00> : vector<49x64xf32>
    %60 = tpu.matmul %57, %59, %cst_24 {dimension_numbers = #tpu.dot_dimension_numbers<[1], [0], [0], [1], [0, 0, 1, 1], [], []>} : vector<49x256xf32>, vector<256x64xf32>, vector<49x64xf32> -> vector<49x64xf32>
    %c0_25 = arith.constant 0 : index
    %c0_26 = arith.constant 0 : index
    %61 = vector.load %arg7[%c0_25, %c0_26] : memref<1x64xf32, #tpu.memory_space<vmem>>, vector<1x64xf32>
    %62 = vector.broadcast %61 : vector<1x64xf32> to vector<49x64xf32>
    %63 = arith.addf %60, %62 : vector<49x64xf32>
    %cst_27 = arith.constant 0.000000e+00 : f32
    %64 = vector.broadcast %cst_27 : f32 to vector<49x64xf32>
    %65 = arith.maximumf %63, %64 : vector<49x64xf32>
    %66 = vector.shape_cast %65 : vector<49x64xf32> to vector<7x7x1x64xf32>
    %c0_28 = arith.constant 0 : index
    %c1 = arith.constant 1 : index
    %c0_29 = arith.constant 0 : index
    %c0_30 = arith.constant 0 : index
    %67 = vector.load %arg6[%c0_28, %c1, %c0_29, %c0_30] : memref<2x2x256x64xf32, #tpu.memory_space<vmem>>, vector<1x1x256x64xf32>
    %68 = vector.shape_cast %67 : vector<1x1x256x64xf32> to vector<256x64xf32>
    %cst_31 = arith.constant dense<0.000000e+00> : vector<49x64xf32>
    %69 = tpu.matmul %57, %68, %cst_31 {dimension_numbers = #tpu.dot_dimension_numbers<[1], [0], [0], [1], [0, 0, 1, 1], [], []>} : vector<49x256xf32>, vector<256x64xf32>, vector<49x64xf32> -> vector<49x64xf32>
    %c0_32 = arith.constant 0 : index
    %c0_33 = arith.constant 0 : index
    %70 = vector.load %arg7[%c0_32, %c0_33] : memref<1x64xf32, #tpu.memory_space<vmem>>, vector<1x64xf32>
    %71 = vector.broadcast %70 : vector<1x64xf32> to vector<49x64xf32>
    %72 = arith.addf %69, %71 : vector<49x64xf32>
    %cst_34 = arith.constant 0.000000e+00 : f32
    %73 = vector.broadcast %cst_34 : f32 to vector<49x64xf32>
    %74 = arith.maximumf %72, %73 : vector<49x64xf32>
    %75 = vector.shape_cast %74 : vector<49x64xf32> to vector<7x7x1x64xf32>
    %76 = tpu.concatenate %66, %75 in 2 : vector<7x7x1x64xf32>, vector<7x7x1x64xf32> -> vector<7x7x2x64xf32>
    %77 = vector.shape_cast %76 : vector<7x7x2x64xf32> to vector<7x1x14x64xf32>
    %c1_35 = arith.constant 1 : index
    %c0_36 = arith.constant 0 : index
    %c0_37 = arith.constant 0 : index
    %c0_38 = arith.constant 0 : index
    %78 = vector.load %arg6[%c1_35, %c0_36, %c0_37, %c0_38] : memref<2x2x256x64xf32, #tpu.memory_space<vmem>>, vector<1x1x256x64xf32>
    %79 = vector.shape_cast %78 : vector<1x1x256x64xf32> to vector<256x64xf32>
    %cst_39 = arith.constant dense<0.000000e+00> : vector<49x64xf32>
    %80 = tpu.matmul %57, %79, %cst_39 {dimension_numbers = #tpu.dot_dimension_numbers<[1], [0], [0], [1], [0, 0, 1, 1], [], []>} : vector<49x256xf32>, vector<256x64xf32>, vector<49x64xf32> -> vector<49x64xf32>
    %c0_40 = arith.constant 0 : index
    %c0_41 = arith.constant 0 : index
    %81 = vector.load %arg7[%c0_40, %c0_41] : memref<1x64xf32, #tpu.memory_space<vmem>>, vector<1x64xf32>
    %82 = vector.broadcast %81 : vector<1x64xf32> to vector<49x64xf32>
    %83 = arith.addf %80, %82 : vector<49x64xf32>
    %cst_42 = arith.constant 0.000000e+00 : f32
    %84 = vector.broadcast %cst_42 : f32 to vector<49x64xf32>
    %85 = arith.maximumf %83, %84 : vector<49x64xf32>
    %86 = vector.shape_cast %85 : vector<49x64xf32> to vector<7x7x1x64xf32>
    %c1_43 = arith.constant 1 : index
    %c1_44 = arith.constant 1 : index
    %c0_45 = arith.constant 0 : index
    %c0_46 = arith.constant 0 : index
    %87 = vector.load %arg6[%c1_43, %c1_44, %c0_45, %c0_46] : memref<2x2x256x64xf32, #tpu.memory_space<vmem>>, vector<1x1x256x64xf32>
    %88 = vector.shape_cast %87 : vector<1x1x256x64xf32> to vector<256x64xf32>
    %cst_47 = arith.constant dense<0.000000e+00> : vector<49x64xf32>
    %89 = tpu.matmul %57, %88, %cst_47 {dimension_numbers = #tpu.dot_dimension_numbers<[1], [0], [0], [1], [0, 0, 1, 1], [], []>} : vector<49x256xf32>, vector<256x64xf32>, vector<49x64xf32> -> vector<49x64xf32>
    %c0_48 = arith.constant 0 : index
    %c0_49 = arith.constant 0 : index
    %90 = vector.load %arg7[%c0_48, %c0_49] : memref<1x64xf32, #tpu.memory_space<vmem>>, vector<1x64xf32>
    %91 = vector.broadcast %90 : vector<1x64xf32> to vector<49x64xf32>
    %92 = arith.addf %89, %91 : vector<49x64xf32>
    %cst_50 = arith.constant 0.000000e+00 : f32
    %93 = vector.broadcast %cst_50 : f32 to vector<49x64xf32>
    %94 = arith.maximumf %92, %93 : vector<49x64xf32>
    %95 = vector.shape_cast %94 : vector<49x64xf32> to vector<7x7x1x64xf32>
    %96 = tpu.concatenate %86, %95 in 2 : vector<7x7x1x64xf32>, vector<7x7x1x64xf32> -> vector<7x7x2x64xf32>
    %97 = vector.shape_cast %96 : vector<7x7x2x64xf32> to vector<7x1x14x64xf32>
    %98 = tpu.concatenate %77, %97 in 1 : vector<7x1x14x64xf32>, vector<7x1x14x64xf32> -> vector<7x2x14x64xf32>
    %99 = vector.shape_cast %98 : vector<7x2x14x64xf32> to vector<14x14x64xf32>
    %cst_51 = arith.constant 0.000000e+00 : f32
    %100 = vector.broadcast %cst_51 : f32 to vector<1x14x64xf32>
    %101 = tpu.concatenate %100, %99, %100 in 0 : vector<1x14x64xf32>, vector<14x14x64xf32>, vector<1x14x64xf32> -> vector<16x14x64xf32>
    %cst_52 = arith.constant 0.000000e+00 : f32
    %102 = vector.broadcast %cst_52 : f32 to vector<16x1x64xf32>
    %103 = tpu.concatenate %102, %101, %102 in 1 : vector<16x1x64xf32>, vector<16x14x64xf32>, vector<16x1x64xf32> -> vector<16x16x64xf32>
    %104 = vector.extract_strided_slice %103 {offsets = [0, 0, 0], sizes = [15, 15, 64], strides = [1, 1, 1]} : vector<16x16x64xf32> to vector<15x15x64xf32>
    %105 = vector.extract_strided_slice %103 {offsets = [0, 1, 0], sizes = [15, 15, 64], strides = [1, 1, 1]} : vector<16x16x64xf32> to vector<15x15x64xf32>
    %106 = vector.extract_strided_slice %103 {offsets = [1, 0, 0], sizes = [15, 15, 64], strides = [1, 1, 1]} : vector<16x16x64xf32> to vector<15x15x64xf32>
    %107 = vector.extract_strided_slice %103 {offsets = [1, 1, 0], sizes = [15, 15, 64], strides = [1, 1, 1]} : vector<16x16x64xf32> to vector<15x15x64xf32>
    %108 = tpu.concatenate %104, %105, %106, %107 in 2 : vector<15x15x64xf32>, vector<15x15x64xf32>, vector<15x15x64xf32>, vector<15x15x64xf32> -> vector<15x15x256xf32>
    %109 = vector.shape_cast %108 : vector<15x15x256xf32> to vector<225x256xf32>
    %c0_53 = arith.constant 0 : index
    %c0_54 = arith.constant 0 : index
    %110 = vector.load %arg8[%c0_53, %c0_54] : memref<256x512xf32, #tpu.memory_space<vmem>>, vector<256x512xf32>
    %cst_55 = arith.constant dense<0.000000e+00> : vector<225x512xf32>
    %111 = tpu.matmul %109, %110, %cst_55 {dimension_numbers = #tpu.dot_dimension_numbers<[1], [0], [0], [1], [0, 0, 1, 1], [], []>} : vector<225x256xf32>, vector<256x512xf32>, vector<225x512xf32> -> vector<225x512xf32>
    %c0_56 = arith.constant 0 : index
    %c0_57 = arith.constant 0 : index
    %112 = vector.load %arg9[%c0_56, %c0_57] : memref<1x512xf32, #tpu.memory_space<vmem>>, vector<1x512xf32>
    %113 = vector.broadcast %112 : vector<1x512xf32> to vector<225x512xf32>
    %114 = arith.addf %111, %113 : vector<225x512xf32>
    %cst_58 = arith.constant 0.000000e+00 : f32
    %115 = vector.broadcast %cst_58 : f32 to vector<225x512xf32>
    %116 = arith.maximumf %114, %115 : vector<225x512xf32>
    %c0_59 = arith.constant 0 : index
    %c0_60 = arith.constant 0 : index
    %117 = vector.load %arg10[%c0_59, %c0_60] : memref<512x128xf32, #tpu.memory_space<vmem>>, vector<512x128xf32>
    %cst_61 = arith.constant dense<0.000000e+00> : vector<225x128xf32>
    %118 = tpu.matmul %116, %117, %cst_61 {dimension_numbers = #tpu.dot_dimension_numbers<[1], [0], [0], [1], [0, 0, 1, 1], [], []>} : vector<225x512xf32>, vector<512x128xf32>, vector<225x128xf32> -> vector<225x128xf32>
    %c0_62 = arith.constant 0 : index
    %c0_63 = arith.constant 0 : index
    %119 = vector.load %arg11[%c0_62, %c0_63] : memref<1x128xf32, #tpu.memory_space<vmem>>, vector<1x128xf32>
    %120 = vector.broadcast %119 : vector<1x128xf32> to vector<225x128xf32>
    %121 = arith.addf %118, %120 : vector<225x128xf32>
    %122 = vector.shape_cast %121 : vector<225x128xf32> to vector<1x225x128xf32>
    %c0_64 = arith.constant 0 : index
    %c0_65 = arith.constant 0 : index
    %c0_66 = arith.constant 0 : index
    %123 = vector.load %arg12[%c0_64, %c0_65, %c0_66] : memref<1x225x128xf32, #tpu.memory_space<vmem>>, vector<1x225x128xf32>
    tpu.vector_store %arg12[%c0_64, %c0_65, %c0_66], %122 {strides = array<i32>} : memref<1x225x128xf32, #tpu.memory_space<vmem>>, vector<1x225x128xf32>,
    return
  }
  func.func @transform_0(%arg0: i32) -> (i32, i32, i32, i32) {
    %c0_i32 = arith.constant 0 : i32
    %c0_i32_0 = arith.constant 0 : i32
    %c0_i32_1 = arith.constant 0 : i32
    %c0_i32_2 = arith.constant 0 : i32
    return %arg0, %c0_i32, %c0_i32_0, %c0_i32_1 : i32, i32, i32, i32
  }
  func.func @transform_1(%arg0: i32) -> (i32, i32) {
    %c0_i32 = arith.constant 0 : i32
    %c0_i32_0 = arith.constant 0 : i32
    %c0_i32_1 = arith.constant 0 : i32
    return %c0_i32, %c0_i32_0 : i32, i32
  }
  func.func @transform_2(%arg0: i32) -> (i32, i32) {
    %c0_i32 = arith.constant 0 : i32
    %c0_i32_0 = arith.constant 0 : i32
    %c0_i32_1 = arith.constant 0 : i32
    return %c0_i32, %c0_i32_0 : i32, i32
  }
  func.func @transform_3(%arg0: i32) -> (i32, i32) {
    %c0_i32 = arith.constant 0 : i32
    %c0_i32_0 = arith.constant 0 : i32
    %c0_i32_1 = arith.constant 0 : i32
    return %c0_i32, %c0_i32_0 : i32, i32
  }
  func.func @transform_4(%arg0: i32) -> (i32, i32) {
    %c0_i32 = arith.constant 0 : i32
    %c0_i32_0 = arith.constant 0 : i32
    %c0_i32_1 = arith.constant 0 : i32
    return %c0_i32, %c0_i32_0 : i32, i32
  }
  func.func @transform_5(%arg0: i32) -> (i32, i32, i32, i32) {
    %c0_i32 = arith.constant 0 : i32
    %c0_i32_0 = arith.constant 0 : i32
    %c0_i32_1 = arith.constant 0 : i32
    %c0_i32_2 = arith.constant 0 : i32
    %c0_i32_3 = arith.constant 0 : i32
    return %c0_i32, %c0_i32_0, %c0_i32_1, %c0_i32_2 : i32, i32, i32, i32
  }
  func.func @transform_6(%arg0: i32) -> (i32, i32) {
    %c0_i32 = arith.constant 0 : i32
    %c0_i32_0 = arith.constant 0 : i32
    %c0_i32_1 = arith.constant 0 : i32
    return %c0_i32, %c0_i32_0 : i32, i32
  }
  func.func @transform_7(%arg0: i32) -> (i32, i32) {
    %c0_i32 = arith.constant 0 : i32
    %c0_i32_0 = arith.constant 0 : i32
    %c0_i32_1 = arith.constant 0 : i32
    return %c0_i32, %c0_i32_0 : i32, i32
  }
  func.func @transform_8(%arg0: i32) -> (i32, i32) {
    %c0_i32 = arith.constant 0 : i32
    %c0_i32_0 = arith.constant 0 : i32
    %c0_i32_1 = arith.constant 0 : i32
    return %c0_i32, %c0_i32_0 : i32, i32
  }
  func.func @transform_9(%arg0: i32) -> (i32, i32) {
    %c0_i32 = arith.constant 0 : i32
    %c0_i32_0 = arith.constant 0 : i32
    %c0_i32_1 = arith.constant 0 : i32
    return %c0_i32, %c0_i32_0 : i32, i32
  }
  func.func @transform_10(%arg0: i32) -> (i32, i32) {
    %c0_i32 = arith.constant 0 : i32
    %c0_i32_0 = arith.constant 0 : i32
    %c0_i32_1 = arith.constant 0 : i32
    return %c0_i32, %c0_i32_0 : i32, i32
  }
  func.func @transform_11(%arg0: i32) -> (i32, i32, i32) {
    %c0_i32 = arith.constant 0 : i32
    %c0_i32_0 = arith.constant 0 : i32
    %c0_i32_1 = arith.constant 0 : i32
    return %arg0, %c0_i32, %c0_i32_0 : i32, i32, i32
  }
}

</mosaic_0001>

<llo_original>
// kernel: decoder_forward_pallas.1
$region0: #{decoder_forward_pallas.1}
  #allocation0 [shape = 'u32[]', space=smem, size = 0x4, offset = 0x4, fixed_abs, tag = 'smem constant byte address 0x4 - core index']
  #allocation1 [shape = 'u32[72,128]{1,0:T(1,128)}', space=vmem, size = 0x9000, scoped, tag = 'internal scratch']
  %s0 = inlined_call_operand.hbm [shape: f32[2,2,2,16], index: 0, kind: input, shape index: {}]
  %s1 = inlined_call_operand.vmem [shape: f32[144,16], index: 1, kind: input, shape index: {}]
  %s2 = inlined_call_operand.hbm [shape: f32[1,16], index: 2, kind: input, shape index: {}]
  %s3 = inlined_call_operand.vmem [shape: f32[144,64], index: 3, kind: input, shape index: {}]
  %s4 = inlined_call_operand.hbm [shape: f32[1,64], index: 4, kind: input, shape index: {}]
  %s5 = inlined_call_operand.vmem [shape: f32[2,2,256,64], index: 5, kind: input, shape index: {}]
  %s6 = inlined_call_operand.hbm [shape: f32[1,64], index: 6, kind: input, shape index: {}]
  %s7 = inlined_call_operand.hbm [shape: f32[256,512], index: 7, kind: input, shape index: {}]
  %s8 = inlined_call_operand.hbm [shape: f32[1,512], index: 8, kind: input, shape index: {}]
  %s9 = inlined_call_operand.hbm [shape: f32[512,128], index: 9, kind: input, shape index: {}]
  %s10 = inlined_call_operand.hbm [shape: f32[1,128], index: 10, kind: input, shape index: {}]
  %s11 = inlined_call_operand.vmem [shape: f32[2,225,128], index: 11, kind: output, shape index: {}]
  %s12 = sld [smem:[#allocation0]]
  $region109: #{decoder_forward_pallas.1} parent=0
    _
  %s14 = ssub.s32 1, %s12
  %s15 = scalar_select 0, %s14, %s12
  $region1: #{decoder_forward_pallas.1} parent=0
    #allocation2 [shape = 'u8[4096]{0}', space=vmem, size = 0x1000, scoped, tag = 'input window, operand 0']
    #allocation3 [shape = 's32[2]{0}', space=sflag, size = 0x8, scoped, tag = 'scoped memory for decoder_forward_pallas.1']
    #allocation4 [shape = 'u8[512]{0}', space=vmem, size = 0x400, scoped, tag = 'input window, operand 2, single buffered']
    #allocation5 [shape = 's32[1]{0}', space=sflag, size = 0x4, scoped, tag = 'scoped memory for decoder_forward_pallas.1']
    #allocation6 [shape = 'u8[512]{0}', space=vmem, size = 0x400, scoped, tag = 'input window, operand 4, single buffered']
    #allocation7 [shape = 'u8[512]{0}', space=vmem, size = 0x400, scoped, tag = 'input window, operand 6, single buffered']
    #allocation8 [shape = 's32[1]{0}', space=sflag, size = 0x4, scoped, tag = 'scoped memory for decoder_forward_pallas.1']
    #allocation9 [shape = 'u8[524288]{0}', space=vmem, size = 0x80000, scoped, tag = 'input window, operand 7, single buffered']
    #allocation10 [shape = 'u8[2048]{0}', space=vmem, size = 0x800, scoped, tag = 'input window, operand 8, single buffered']
    #allocation11 [shape = 's32[1]{0}', space=sflag, size = 0x4, scoped, tag = 'scoped memory for decoder_forward_pallas.1']
    #allocation12 [shape = 'u8[262144]{0}', space=vmem, size = 0x40000, scoped, tag = 'input window, operand 9, single buffered']
    #allocation13 [shape = 'u8[512]{0}', space=vmem, size = 0x400, scoped, tag = 'input window, operand 10, single buffered']
    #allocation14 [shape = 's32[1]{0}', space=sflag, size = 0x4, scoped, tag = 'scoped memory for decoder_forward_pallas.1']
    %16 = vsyncpa [#allocation3], 0
    %s17 = scalar_lea.sflag [#allocation3], 1
    %18 = vsyncpa %s17, 0
    %19 = vsyncpa [#allocation5], 0
    %20 = vsyncpa [#allocation8], 0
    %21 = vsyncpa [#allocation11], 0
    %22 = vsyncpa [#allocation14], 0
    loop: start=0, step=1, limit=4
    $region2: #{decoder_forward_pallas.1} parent=1 // loop_pre_header
      _
    $region3: #{decoder_forward_pallas.1} parent=1 // loop_header
      %s24 = sphi 0, %s28
      %p25 = scmp.ge.s32.totalorder %s24, 4
      %s34 = sphi 0, %s36
      %s37 = sphi 0, %s34
      %s38 = sphi 0, %s37
      %s54 = sphi 0, %s38
      %s58 = sphi 0, %s58
      %s60 = sphi 0, %s58
      %s61 = sphi 0, %s60
      %s75 = sphi 0, %s61
      %s79 = sphi 0, %s79
      %s81 = sphi 0, %s79
      %s82 = sphi 0, %s81
      %s96 = sphi 0, %s82
      %s100 = sphi 0, %s100
      %s102 = sphi 0, %s100
      %s103 = sphi 0, %s102
      %s117 = sphi 0, %s103
      %s121 = sphi 0, %s121
      %s123 = sphi 0, %s121
      %s124 = sphi 0, %s123
      %s138 = sphi 0, %s124
      %s142 = sphi 0, %s142
      %s144 = sphi 0, %s142
      %s145 = sphi 0, %s144
      %s159 = sphi 0, %s145
      %s163 = sphi 0, %s163
      %s165 = sphi 0, %s163
      %s166 = sphi 0, %s165
      %s180 = sphi 0, %s166
      %s184 = sphi 0, %s184
      %s186 = sphi 0, %s184
      %s187 = sphi 0, %s186
      %s201 = sphi 0, %s187
      %s205 = sphi 0, %s205
      %s207 = sphi 0, %s205
      %s208 = sphi 0, %s207
      %s222 = sphi 0, %s208
      %s226 = sphi 0, %s226
      %s228 = sphi 0, %s226
      %s229 = sphi 0, %s228
      %s243 = sphi 0, %s229
      %s247 = sphi 0, %s247
      %s249 = sphi 0, %s247
      %s250 = sphi 0, %s249
      %s264 = sphi 0, %s250
      %s270 = sphi 0, %s272
      %s273 = sphi 0, %s270
      %s274 = sphi 0, %s273
      %s290 = sphi 0, %s274
    $region4: #{decoder_forward_pallas.1} parent=1 // loop_header_branch
      %27 = sbr.rel (%p25) target = $region8
    $region5: #{decoder_forward_pallas.1} parent=1 // loop_body
      %s29 = ssub.s32 %s24, 1
      %s30 = ssub.s32 %s24, 2
      %s31 = sadd.s32 %s24, 1
      %s32 = ssub.s32 %s24, %s31
      %p33 = scmp.eq.s32.totalorder %s32, 0
      %s35 = sadd.s32 %s34, 1
      %s36 = scalar_select %p33, %s34, %s35
      %p39 = pneg %p33
      %p40 = scmp.eq.s32.totalorder %s24, 1
      %p41 = por %p39, %p40
      %p42 = scmp.ne.s32.totalorder %s34, %s37
      %p43 = scmp.eq.s32.totalorder %s24, 0
      %p44 = por %p42, %p43
      %p45 = scmp.ne.s32.totalorder %s34, %s37
      %p46 = scmp.eq.s32.totalorder %s29, 1
      %p47 = por %p45, %p46
      %p48 = scmp.ne.s32.totalorder %s37, %s38
      %p49 = scmp.eq.s32.totalorder %s29, 0
      %p50 = por %p48, %p49
      %p51 = scmp.ne.s32.totalorder %s37, %s38
      %p52 = scmp.eq.s32.totalorder %s30, 1
      %p53 = por %p51, %p52
      %p55 = scmp.ne.s32.totalorder %s38, %s54
      %p56 = scmp.eq.s32.totalorder %s30, 0
      %p57 = por %p55, %p56
      %s59 = sadd.s32 %s58, 1
      %p62 = scmp.eq.s32.totalorder %s24, 1
      %p63 = scmp.ne.s32.totalorder %s58, %s60
      %p64 = scmp.eq.s32.totalorder %s24, 0
      %p65 = por %p63, %p64
      %p66 = scmp.ne.s32.totalorder %s58, %s60
      %p67 = scmp.eq.s32.totalorder %s29, 1
      %p68 = por %p66, %p67
      %p69 = scmp.ne.s32.totalorder %s60, %s61
      %p70 = scmp.eq.s32.totalorder %s29, 0
      %p71 = por %p69, %p70
      %p72 = scmp.ne.s32.totalorder %s60, %s61
      %p73 = scmp.eq.s32.totalorder %s30, 1
      %p74 = por %p72, %p73
      %p76 = scmp.ne.s32.totalorder %s61, %s75
      %p77 = scmp.eq.s32.totalorder %s30, 0
      %p78 = por %p76, %p77
      %s80 = sadd.s32 %s79, 1
      %p83 = scmp.eq.s32.totalorder %s24, 1
      %p84 = scmp.ne.s32.totalorder %s79, %s81
      %p85 = scmp.eq.s32.totalorder %s24, 0
      %p86 = por %p84, %p85
      %p87 = scmp.ne.s32.totalorder %s79, %s81
      %p88 = scmp.eq.s32.totalorder %s29, 1
      %p89 = por %p87, %p88
      %p90 = scmp.ne.s32.totalorder %s81, %s82
      %p91 = scmp.eq.s32.totalorder %s29, 0
      %p92 = por %p90, %p91
      %p93 = scmp.ne.s32.totalorder %s81, %s82
      %p94 = scmp.eq.s32.totalorder %s30, 1
      %p95 = por %p93, %p94
      %p97 = scmp.ne.s32.totalorder %s82, %s96
      %p98 = scmp.eq.s32.totalorder %s30, 0
      %p99 = por %p97, %p98
      %s101 = sadd.s32 %s100, 1
      %p104 = scmp.eq.s32.totalorder %s24, 1
      %p105 = scmp.ne.s32.totalorder %s100, %s102
      %p106 = scmp.eq.s32.totalorder %s24, 0
      %p107 = por %p105, %p106
      %p108 = scmp.ne.s32.totalorder %s100, %s102
      %p109 = scmp.eq.s32.totalorder %s29, 1
      %p110 = por %p108, %p109
      %p111 = scmp.ne.s32.totalorder %s102, %s103
      %p112 = scmp.eq.s32.totalorder %s29, 0
      %p113 = por %p111, %p112
      %p114 = scmp.ne.s32.totalorder %s102, %s103
      %p115 = scmp.eq.s32.totalorder %s30, 1
      %p116 = por %p114, %p115
      %p118 = scmp.ne.s32.totalorder %s103, %s117
      %p119 = scmp.eq.s32.totalorder %s30, 0
      %p120 = por %p118, %p119
      %s122 = sadd.s32 %s121, 1
      %p125 = scmp.eq.s32.totalorder %s24, 1
      %p126 = scmp.ne.s32.totalorder %s121, %s123
      %p127 = scmp.eq.s32.totalorder %s24, 0
      %p128 = por %p126, %p127
      %p129 = scmp.ne.s32.totalorder %s121, %s123
      %p130 = scmp.eq.s32.totalorder %s29, 1
      %p131 = por %p129, %p130
      %p132 = scmp.ne.s32.totalorder %s123, %s124
      %p133 = scmp.eq.s32.totalorder %s29, 0
      %p134 = por %p132, %p133
      %p135 = scmp.ne.s32.totalorder %s123, %s124
      %p136 = scmp.eq.s32.totalorder %s30, 1
      %p137 = por %p135, %p136
      %p139 = scmp.ne.s32.totalorder %s124, %s138
      %p140 = scmp.eq.s32.totalorder %s30, 0
      %p141 = por %p139, %p140
      %s143 = sadd.s32 %s142, 1
      %p146 = scmp.eq.s32.totalorder %s24, 1
      %p147 = scmp.ne.s32.totalorder %s142, %s144
      %p148 = scmp.eq.s32.totalorder %s24, 0
      %p149 = por %p147, %p148
      %p150 = scmp.ne.s32.totalorder %s142, %s144
      %p151 = scmp.eq.s32.totalorder %s29, 1
      %p152 = por %p150, %p151
      %p153 = scmp.ne.s32.totalorder %s144, %s145
      %p154 = scmp.eq.s32.totalorder %s29, 0
      %p155 = por %p153, %p154
      %p156 = scmp.ne.s32.totalorder %s144, %s145
      %p157 = scmp.eq.s32.totalorder %s30, 1
      %p158 = por %p156, %p157
      %p160 = scmp.ne.s32.totalorder %s145, %s159
      %p161 = scmp.eq.s32.totalorder %s30, 0
      %p162 = por %p160, %p161
      %s164 = sadd.s32 %s163, 1
      %p167 = scmp.eq.s32.totalorder %s24, 1
      %p168 = scmp.ne.s32.totalorder %s163, %s165
      %p169 = scmp.eq.s32.totalorder %s24, 0
      %p170 = por %p168, %p169
      %p171 = scmp.ne.s32.totalorder %s163, %s165
      %p172 = scmp.eq.s32.totalorder %s29, 1
      %p173 = por %p171, %p172
      %p174 = scmp.ne.s32.totalorder %s165, %s166
      %p175 = scmp.eq.s32.totalorder %s29, 0
      %p176 = por %p174, %p175
      %p177 = scmp.ne.s32.totalorder %s165, %s166
      %p178 = scmp.eq.s32.totalorder %s30, 1
      %p179 = por %p177, %p178
      %p181 = scmp.ne.s32.totalorder %s166, %s180
      %p182 = scmp.eq.s32.totalorder %s30, 0
      %p183 = por %p181, %p182
      %s185 = sadd.s32 %s184, 1
      %p188 = scmp.eq.s32.totalorder %s24, 1
      %p189 = scmp.ne.s32.totalorder %s184, %s186
      %p190 = scmp.eq.s32.totalorder %s24, 0
      %p191 = por %p189, %p190
      %p192 = scmp.ne.s32.totalorder %s184, %s186
      %p193 = scmp.eq.s32.totalorder %s29, 1
      %p194 = por %p192, %p193
      %p195 = scmp.ne.s32.totalorder %s186, %s187
      %p196 = scmp.eq.s32.totalorder %s29, 0
      %p197 = por %p195, %p196
      %p198 = scmp.ne.s32.totalorder %s186, %s187
      %p199 = scmp.eq.s32.totalorder %s30, 1
      %p200 = por %p198, %p199
      %p202 = scmp.ne.s32.totalorder %s187, %s201
      %p203 = scmp.eq.s32.totalorder %s30, 0
      %p204 = por %p202, %p203
      %s206 = sadd.s32 %s205, 1
      %p209 = scmp.eq.s32.totalorder %s24, 1
      %p210 = scmp.ne.s32.totalorder %s205, %s207
      %p211 = scmp.eq.s32.totalorder %s24, 0
      %p212 = por %p210, %p211
      %p213 = scmp.ne.s32.totalorder %s205, %s207
      %p214 = scmp.eq.s32.totalorder %s29, 1
      %p215 = por %p213, %p214
      %p216 = scmp.ne.s32.totalorder %s207, %s208
      %p217 = scmp.eq.s32.totalorder %s29, 0
      %p218 = por %p216, %p217
      %p219 = scmp.ne.s32.totalorder %s207, %s208
      %p220 = scmp.eq.s32.totalorder %s30, 1
      %p221 = por %p219, %p220
      %p223 = scmp.ne.s32.totalorder %s208, %s222
      %p224 = scmp.eq.s32.totalorder %s30, 0
      %p225 = por %p223, %p224
      %s227 = sadd.s32 %s226, 1
      %p230 = scmp.eq.s32.totalorder %s24, 1
      %p231 = scmp.ne.s32.totalorder %s226, %s228
      %p232 = scmp.eq.s32.totalorder %s24, 0
      %p233 = por %p231, %p232
      %p234 = scmp.ne.s32.totalorder %s226, %s228
      %p235 = scmp.eq.s32.totalorder %s29, 1
      %p236 = por %p234, %p235
      %p237 = scmp.ne.s32.totalorder %s228, %s229
      %p238 = scmp.eq.s32.totalorder %s29, 0
      %p239 = por %p237, %p238
      %p240 = scmp.ne.s32.totalorder %s228, %s229
      %p241 = scmp.eq.s32.totalorder %s30, 1
      %p242 = por %p240, %p241
      %p244 = scmp.ne.s32.totalorder %s229, %s243
      %p245 = scmp.eq.s32.totalorder %s30, 0
      %p246 = por %p244, %p245
      %s248 = sadd.s32 %s247, 1
      %p251 = scmp.eq.s32.totalorder %s24, 1
      %p252 = scmp.ne.s32.totalorder %s247, %s249
      %p253 = scmp.eq.s32.totalorder %s24, 0
      %p254 = por %p252, %p253
      %p255 = scmp.ne.s32.totalorder %s247, %s249
      %p256 = scmp.eq.s32.totalorder %s29, 1
      %p257 = por %p255, %p256
      %p258 = scmp.ne.s32.totalorder %s249, %s250
      %p259 = scmp.eq.s32.totalorder %s29, 0
      %p260 = por %p258, %p259
      %p261 = scmp.ne.s32.totalorder %s249, %s250
      %p262 = scmp.eq.s32.totalorder %s30, 1
      %p263 = por %p261, %p262
      %p265 = scmp.ne.s32.totalorder %s250, %s264
      %p266 = scmp.eq.s32.totalorder %s30, 0
      %p267 = por %p265, %p266
      %s268 = ssub.s32 %s24, %s31
      %p269 = scmp.eq.s32.totalorder %s268, 0
      %s271 = sadd.s32 %s270, 1
      %s272 = scalar_select %p269, %s270, %s271
      %p275 = pneg %p269
      %p276 = scmp.eq.s32.totalorder %s24, 1
      %p277 = por %p275, %p276
      %p278 = scmp.ne.s32.totalorder %s270, %s273
      %p279 = scmp.eq.s32.totalorder %s24, 0
      %p280 = por %p278, %p279
      %p281 = scmp.ne.s32.totalorder %s270, %s273
      %p282 = scmp.eq.s32.totalorder %s29, 1
      %p283 = por %p281, %p282
      %p284 = scmp.ne.s32.totalorder %s273, %s274
      %p285 = scmp.eq.s32.totalorder %s29, 0
      %p286 = por %p284, %p285
      %p287 = scmp.ne.s32.totalorder %s273, %s274
      %p288 = scmp.eq.s32.totalorder %s30, 1
      %p289 = por %p287, %p288
      %p291 = scmp.ne.s32.totalorder %s274, %s290
      %p292 = scmp.eq.s32.totalorder %s30, 0
      %p293 = por %p291, %p292
      %p294 = scmp.le.s32.totalorder 1, %s24
      %p295 = scmp.lt.s32.totalorder %s24, 3
      %p296 = pnand %p294, %p295
      %p297 = pneg %p296
      // Predicated region
      $region9: #{decoder_forward_pallas.1} parent=5 // pred_check
        _
      $region10: #{decoder_forward_pallas.1} parent=5 // pred_check_branch
        %299 = sbr.rel (%p296) target = $region12
      $region11: #{decoder_forward_pallas.1} parent=5 // pred_region
        %s300 = ssub.s32 %s24, 1
        // Predicated region
        $region13: #{decoder_forward_pallas.1} parent=11 // pred_check
          %p301 = pneg %p71
        $region14: #{decoder_forward_pallas.1} parent=11 // pred_check_branch
          %303 = sbr.rel (%p301) target = $region16
        $region15: #{decoder_forward_pallas.1} parent=11 // pred_region
          _
        $region16: #{decoder_forward_pallas.1} parent=11 // pred_fallthru
          _
        // Predicated region
        $region17: #{decoder_forward_pallas.1} parent=11 // pred_check
          %p304 = pneg %p92
        $region18: #{decoder_forward_pallas.1} parent=11 // pred_check_branch
          %306 = sbr.rel (%p304) target = $region20
        $region19: #{decoder_forward_pallas.1} parent=11 // pred_region
          %308 = vsyncadd [#allocation5], 0
          %s310 = sshll.u32 %s2, 4
          %s311 = int_to_ptr.hbm [resolvable:$true] %s310
          %s312 = sshll.u32 [#allocation4], 4
          %s313 = int_to_ptr.vmem [resolvable:$true] %s312
          %315 = dma.hbm_to_vmem [thread:$0]  %s311, 16, %s313, [#allocation5]
        $region20: #{decoder_forward_pallas.1} parent=11 // pred_fallthru
          _
        // Predicated region
        $region21: #{decoder_forward_pallas.1} parent=11 // pred_check
          %p316 = pneg %p113
        $region22: #{decoder_forward_pallas.1} parent=11 // pred_check_branch
          %318 = sbr.rel (%p316) target = $region24
        $region23: #{decoder_forward_pallas.1} parent=11 // pred_region
          _
        $region24: #{decoder_forward_pallas.1} parent=11 // pred_fallthru
          _
        // Predicated region
        $region25: #{decoder_forward_pallas.1} parent=11 // pred_check
          %p319 = pneg %p134
        $region26: #{decoder_forward_pallas.1} parent=11 // pred_check_branch
          %321 = sbr.rel (%p319) target = $region28
        $region27: #{decoder_forward_pallas.1} parent=11 // pred_region
          %323 = vsyncadd [#allocation5], 0
          %s325 = sshll.u32 %s4, 4
          %s326 = int_to_ptr.hbm [resolvable:$true] %s325
          %s327 = sshll.u32 [#allocation6], 4
          %s328 = int_to_ptr.vmem [resolvable:$true] %s327
          %330 = dma.hbm_to_vmem [thread:$0]  %s326, 16, %s328, [#allocation5]
        $region28: #{decoder_forward_pallas.1} parent=11 // pred_fallthru
          _
        // Predicated region
        $region29: #{decoder_forward_pallas.1} parent=11 // pred_check
          %p331 = pneg %p155
        $region30: #{decoder_forward_pallas.1} parent=11 // pred_check_branch
          %333 = sbr.rel (%p331) target = $region32
        $region31: #{decoder_forward_pallas.1} parent=11 // pred_region
          _
        $region32: #{decoder_forward_pallas.1} parent=11 // pred_fallthru
          _
        // Predicated region
        $region33: #{decoder_forward_pallas.1} parent=11 // pred_check
          %p334 = pneg %p176
        $region34: #{decoder_forward_pallas.1} parent=11 // pred_check_branch
          %336 = sbr.rel (%p334) target = $region36
        $region35: #{decoder_forward_pallas.1} parent=11 // pred_region
          %338 = vsyncadd [#allocation8], 0
          %s340 = sshll.u32 %s6, 4
          %s341 = int_to_ptr.hbm [resolvable:$true] %s340
          %s342 = sshll.u32 [#allocation7], 4
          %s343 = int_to_ptr.vmem [resolvable:$true] %s342
          %345 = dma.hbm_to_vmem [thread:$0]  %s341, 16, %s343, [#allocation8]
        $region36: #{decoder_forward_pallas.1} parent=11 // pred_fallthru
          _
        // Predicated region
        $region37: #{decoder_forward_pallas.1} parent=11 // pred_check
          %p346 = pneg %p197
        $region38: #{decoder_forward_pallas.1} parent=11 // pred_check_branch
          %348 = sbr.rel (%p346) target = $region40
        $region39: #{decoder_forward_pallas.1} parent=11 // pred_region
          %350 = vsyncadd [#allocation8], 0
          %s351 = sshll.u32 %s7, 4
          %s352 = int_to_ptr.hbm [resolvable:$true] %s351
          %s353 = sshll.u32 [#allocation9], 4
          %s354 = int_to_ptr.vmem [resolvable:$true] %s353
          %359 = dma.hbm_to_vmem [thread:$0]  %s352, 16384, %s354, [#allocation8], 512, 512, 32
        $region40: #{decoder_forward_pallas.1} parent=11 // pred_fallthru
          _
        // Predicated region
        $region41: #{decoder_forward_pallas.1} parent=11 // pred_check
          %p360 = pneg %p218
        $region42: #{decoder_forward_pallas.1} parent=11 // pred_check_branch
          %362 = sbr.rel (%p360) target = $region44
        $region43: #{decoder_forward_pallas.1} parent=11 // pred_region
          %364 = vsyncadd [#allocation11], 0
          %s366 = sshll.u32 %s8, 4
          %s367 = int_to_ptr.hbm [resolvable:$true] %s366
          %s368 = sshll.u32 [#allocation10], 4
          %s369 = int_to_ptr.vmem [resolvable:$true] %s368
          %371 = dma.hbm_to_vmem [thread:$0]  %s367, 64, %s369, [#allocation11]
        $region44: #{decoder_forward_pallas.1} parent=11 // pred_fallthru
          _
        // Predicated region
        $region45: #{decoder_forward_pallas.1} parent=11 // pred_check
          %p372 = pneg %p239
        $region46: #{decoder_forward_pallas.1} parent=11 // pred_check_branch
          %374 = sbr.rel (%p372) target = $region48
        $region47: #{decoder_forward_pallas.1} parent=11 // pred_region
          %376 = vsyncadd [#allocation11], 0
          %s377 = sshll.u32 %s9, 4
          %s378 = int_to_ptr.hbm [resolvable:$true] %s377
          %s379 = sshll.u32 [#allocation12], 4
          %s380 = int_to_ptr.vmem [resolvable:$true] %s379
          %385 = dma.hbm_to_vmem [thread:$0]  %s378, 8192, %s380, [#allocation11], 128, 128, 8
        $region48: #{decoder_forward_pallas.1} parent=11 // pred_fallthru
          _
        // Predicated region
        $region49: #{decoder_forward_pallas.1} parent=11 // pred_check
          %p386 = pneg %p260
        $region50: #{decoder_forward_pallas.1} parent=11 // pred_check_branch
          %388 = sbr.rel (%p386) target = $region52
        $region51: #{decoder_forward_pallas.1} parent=11 // pred_region
          %390 = vsyncadd [#allocation14], 0
          %s392 = sshll.u32 %s10, 4
          %s393 = int_to_ptr.hbm [resolvable:$true] %s392
          %s394 = sshll.u32 [#allocation13], 4
          %s395 = int_to_ptr.vmem [resolvable:$true] %s394
          %397 = dma.hbm_to_vmem [thread:$0]  %s393, 16, %s395, [#allocation14]
        $region52: #{decoder_forward_pallas.1} parent=11 // pred_fallthru
          _
      $region12: #{decoder_forward_pallas.1} parent=5 // pred_fallthru
        _
      %p398 = scmp.lt.s32.totalorder %s24, 2
      // Predicated region
      $region53: #{decoder_forward_pallas.1} parent=5 // pred_check
        %p399 = pneg %p398
      $region54: #{decoder_forward_pallas.1} parent=5 // pred_check_branch
        %401 = sbr.rel (%p399) target = $region56
      $region55: #{decoder_forward_pallas.1} parent=5 // pred_region
        // Predicated region
        $region57: #{decoder_forward_pallas.1} parent=55 // pred_check
          %p402 = pneg %p44
        $region58: #{decoder_forward_pallas.1} parent=55 // pred_check_branch
          %404 = sbr.rel (%p402) target = $region60
        $region59: #{decoder_forward_pallas.1} parent=55 // pred_region
          %s405 = sand.u32 %s34, 1
          %s406 = scalar_lea.sflag [#allocation3], %s405
          %s407 = sand.u32 %s34, 1
          %s408 = smul.addr %s407, 4
          %s409 = scalar_lea.vmem [#allocation2], %s408
          %411 = vsyncadd %s406, 0
          %s412 = smul.addr %s24, 2
          %s413 = smul.addr %s412, 2
          %s414 = scalar_lea.hbm %s0, %s413
          %s415 = sshll.u32 %s414, 4
          %s416 = int_to_ptr.hbm [resolvable:$true] %s415
          %s417 = sshll.u32 %s409, 4
          %s418 = int_to_ptr.vmem [resolvable:$true] %s417
          %423 = dma.hbm_to_vmem [thread:$0]  %s416, 64, %s418, %s406, 32, 32, 2
        $region60: #{decoder_forward_pallas.1} parent=55 // pred_fallthru
          _
      $region56: #{decoder_forward_pallas.1} parent=5 // pred_fallthru
        _
      %p424 = scmp.le.s32.totalorder 1, %s24
      %p425 = scmp.lt.s32.totalorder %s24, 3
      %p426 = pnand %p424, %p425
      %p427 = pneg %p426
      // Predicated region
      $region61: #{decoder_forward_pallas.1} parent=5 // pred_check
        _
      $region62: #{decoder_forward_pallas.1} parent=5 // pred_check_branch
        %429 = sbr.rel (%p426) target = $region64
      $region63: #{decoder_forward_pallas.1} parent=5 // pred_region
        %s430 = ssub.s32 %s24, 1
        %s431 = sand.u32 %s37, 1
        %s432 = scalar_lea.sflag [#allocation3], %s431
        %s433 = sand.u32 %s37, 1
        %s434 = smul.addr %s433, 4
        %s435 = scalar_lea.vmem [#allocation2], %s434
        // Predicated region
        $region65: #{decoder_forward_pallas.1} parent=63 // pred_check
          %p436 = pneg %p50
        $region66: #{decoder_forward_pallas.1} parent=63 // pred_check_branch
          %438 = sbr.rel (%p436) target = $region68
        $region67: #{decoder_forward_pallas.1} parent=63 // pred_region
          %440 = dma.done %s432, 64
        $region68: #{decoder_forward_pallas.1} parent=63 // pred_fallthru
          _
        // Predicated region
        $region69: #{decoder_forward_pallas.1} parent=63 // pred_check
          %p441 = pneg %p92
        $region70: #{decoder_forward_pallas.1} parent=63 // pred_check_branch
          %443 = sbr.rel (%p441) target = $region72
        $region71: #{decoder_forward_pallas.1} parent=63 // pred_region
          %445 = dma.done [#allocation5], 16
        $region72: #{decoder_forward_pallas.1} parent=63 // pred_fallthru
          _
        // Predicated region
        $region73: #{decoder_forward_pallas.1} parent=63 // pred_check
          %p446 = pneg %p134
        $region74: #{decoder_forward_pallas.1} parent=63 // pred_check_branch
          %448 = sbr.rel (%p446) target = $region76
        $region75: #{decoder_forward_pallas.1} parent=63 // pred_region
          %450 = dma.done [#allocation5], 16
        $region76: #{decoder_forward_pallas.1} parent=63 // pred_fallthru
          _
        // Predicated region
        $region77: #{decoder_forward_pallas.1} parent=63 // pred_check
          %p451 = pneg %p176
        $region78: #{decoder_forward_pallas.1} parent=63 // pred_check_branch
          %453 = sbr.rel (%p451) target = $region80
        $region79: #{decoder_forward_pallas.1} parent=63 // pred_region
          %455 = dma.done [#allocation8], 16
        $region80: #{decoder_forward_pallas.1} parent=63 // pred_fallthru
          _
        // Predicated region
        $region81: #{decoder_forward_pallas.1} parent=63 // pred_check
          %p456 = pneg %p197
        $region82: #{decoder_forward_pallas.1} parent=63 // pred_check_branch
          %458 = sbr.rel (%p456) target = $region84
        $region83: #{decoder_forward_pallas.1} parent=63 // pred_region
          %460 = dma.done [#allocation8], 16384
        $region84: #{decoder_forward_pallas.1} parent=63 // pred_fallthru
          _
        // Predicated region
        $region85: #{decoder_forward_pallas.1} parent=63 // pred_check
          %p461 = pneg %p218
        $region86: #{decoder_forward_pallas.1} parent=63 // pred_check_branch
          %463 = sbr.rel (%p461) target = $region88
        $region87: #{decoder_forward_pallas.1} parent=63 // pred_region
          %465 = dma.done [#allocation11], 64
        $region88: #{decoder_forward_pallas.1} parent=63 // pred_fallthru
          _
        // Predicated region
        $region89: #{decoder_forward_pallas.1} parent=63 // pred_check
          %p466 = pneg %p239
        $region90: #{decoder_forward_pallas.1} parent=63 // pred_check_branch
          %468 = sbr.rel (%p466) target = $region92
        $region91: #{decoder_forward_pallas.1} parent=63 // pred_region
          %470 = dma.done [#allocation11], 8192
        $region92: #{decoder_forward_pallas.1} parent=63 // pred_fallthru
          _
        // Predicated region
        $region93: #{decoder_forward_pallas.1} parent=63 // pred_check
          %p471 = pneg %p260
        $region94: #{decoder_forward_pallas.1} parent=63 // pred_check_branch
          %473 = sbr.rel (%p471) target = $region96
        $region95: #{decoder_forward_pallas.1} parent=63 // pred_region
          %475 = dma.done [#allocation14], 16
        $region96: #{decoder_forward_pallas.1} parent=63 // pred_fallthru
          _
        %s476 = sand.u32 %s37, 1
        %s477 = scalar_lea.sflag [#allocation3], %s476
        %s478 = sand.u32 %s37, 1
        %s479 = smul.addr %s478, 4
        %s480 = scalar_lea.vmem [#allocation2], %s479
        %p481 = pneg %p50
        %p482 = pneg %p47
        %p483 = pneg %p71
        %p484 = pneg %p68
        %p485 = pneg %p92
        %p486 = pneg %p89
        %p487 = pneg %p113
        %p488 = pneg %p110
        %p489 = pneg %p134
        %p490 = pneg %p131
        %p491 = pneg %p155
        %p492 = pneg %p152
        %p493 = pneg %p176
        %p494 = pneg %p173
        %p495 = pneg %p197
        %p496 = pneg %p194
        %p497 = pneg %p218
        %p498 = pneg %p215
        %p499 = pneg %p239
        %p500 = pneg %p236
        %p501 = pneg %p260
        %p502 = pneg %p257
        %p503 = pneg %p286
        %p504 = pneg %p283
        %p505 = scmp.lt.s32.totalorder %s29, 1
        %s506 = scalar_select %p505, %s29, 1
        %s507 = smul.addr %s506, 29
        %s508 = smul.addr %s507, 8
        %s509 = scalar_lea.vmem %s11, %s508
        %p510 = scmp.lt.s32.totalorder %s29, 1
        %s511 = scalar_select %p510, %s29, 1
        %s512 = smul.addr %s511, 29
        %s513 = smul.addr %s512, 8
        %s514 = scalar_lea.vmem %s11, %s513
        %v515 = vld [vmem:[%s435] sm:$0x3]
        %v516 = vld [vmem:[%s435 + $0x2] sm:$0x3]
        %v520 = vrot.slane 0.0, 6
        %v521 = vrot.slane %v515, 6
        %v522 = vrot.slane %v516, 6
        %vm526 = vcmask 1041408
        %v527 = vsel %vm526, 0.0, %v520
        %v528 = vsel %vm526, 0.0, %v521
        %v529 = vsel %vm526, 0.0, %v522
        %vm530 = vcmask 1043456
        %v531 = vsel %vm530, %v527, 0.0
        %v532 = vsel %vm530, %v528, 0.0
        %v533 = vsel %vm530, %v529, 0.0
        %v537 = vrot.slane %v531, 1
        %v538 = vrot.slane %v532, 1
        %v539 = vrot.slane %v533, 1
        %540 = vrot.lane.b32.xlu0 %v537, 16
        %v541 = vpop.permute.xlu0 %540
        %542 = vrot.lane.b32.xlu0 %v538, 16
        %v543 = vpop.permute.xlu0 %542
        %544 = vrot.lane.b32.xlu0 %v539, 16
        %v545 = vpop.permute.xlu0 %544
        %v549 = vrot.slane %v531, 2
        %v550 = vrot.slane %v532, 2
        %v551 = vrot.slane %v533, 2
        %552 = vrot.lane.b32.xlu0 %v549, 32
        %v553 = vpop.permute.xlu0 %552
        %554 = vrot.lane.b32.xlu0 %v550, 32
        %v555 = vpop.permute.xlu0 %554
        %556 = vrot.lane.b32.xlu0 %v551, 32
        %v557 = vpop.permute.xlu0 %556
        %561 = vrot.lane.b32.xlu0 %v531, 48
        %v562 = vpop.permute.xlu0 %561
        %563 = vrot.lane.b32.xlu0 %v532, 48
        %v564 = vpop.permute.xlu0 %563
        %565 = vrot.lane.b32.xlu0 %v533, 48
        %v566 = vpop.permute.xlu0 %565
        %570 = vrot.lane.b32.xlu0 %v537, 64
        %v571 = vpop.permute.xlu0 %570
        %572 = vrot.lane.b32.xlu0 %v538, 64
        %v573 = vpop.permute.xlu0 %572
        %574 = vrot.lane.b32.xlu0 %v539, 64
        %v575 = vpop.permute.xlu0 %574
        %579 = vrot.lane.b32.xlu0 %v549, 80
        %v580 = vpop.permute.xlu0 %579
        %581 = vrot.lane.b32.xlu0 %v550, 80
        %v582 = vpop.permute.xlu0 %581
        %583 = vrot.lane.b32.xlu0 %v551, 80
        %v584 = vpop.permute.xlu0 %583
        %588 = vrot.lane.b32.xlu0 %v532, 96
        %v589 = vpop.permute.xlu0 %588
        %590 = vrot.lane.b32.xlu0 %v533, 96
        %v591 = vpop.permute.xlu0 %590
        %592 = vrot.lane.b32.xlu0 %v531, 96
        %v593 = vpop.permute.xlu0 %592
        %597 = vrot.lane.b32.xlu0 %v538, 112
        %v598 = vpop.permute.xlu0 %597
        %599 = vrot.lane.b32.xlu0 %v539, 112
        %v600 = vpop.permute.xlu0 %599
        %601 = vrot.lane.b32.xlu0 %v537, 112
        %v602 = vpop.permute.xlu0 %601
        %vm606 = vcmask 130048
        %v607 = vsel %vm606, %v531, %v541
        %v608 = vsel %vm606, %v532, %v543
        %v609 = vsel %vm606, %v533, %v545
        %vm610 = vcmask 261120
        %v611 = vsel %vm610, %v607, %v553
        %v612 = vsel %vm610, %v608, %v555
        %v613 = vsel %vm610, %v609, %v557
        %vm614 = vcmask 392192
        %v615 = vsel %vm614, %v611, %v562
        %v616 = vsel %vm614, %v611, %v564
        %v617 = vsel %vm614, %v612, %v566
        %v618 = vsel %vm614, %v613, %v562
        %vm619 = vcmask 523264
        %v620 = vsel %vm619, %v615, %v571
        %v621 = vsel %vm619, %v616, %v573
        %v622 = vsel %vm619, %v617, %v575
        %v623 = vsel %vm619, %v618, %v571
        %vm624 = vcmask 654336
        %v625 = vsel %vm624, %v620, %v580
        %v626 = vsel %vm624, %v621, %v582
        %v627 = vsel %vm624, %v622, %v584
        %v628 = vsel %vm624, %v623, %v580
        %vm629 = vcmask 785408
        %v630 = vsel %vm629, %v625, %v589
        %v631 = vsel %vm629, %v626, %v591
        %v632 = vsel %vm629, %v627, %v593
        %v633 = vsel %vm629, %v628, %v593
        %vm634 = vcmask 916480
        %v635 = vsel %vm634, %v630, %v598
        %v636 = vsel %vm634, %v631, %v600
        %v637 = vsel %vm634, %v632, %v602
        %v638 = vsel %vm634, %v633, %v602
        %v643 = vrot.slane %v550, 4
        %v644 = vrot.slane %v551, 4
        %v645 = vrot.slane %v549, 4
        %v646 = vsel %vm530, %v635, %v643
        %v647 = vsel %vm530, %v636, %v644
        %v648 = vsel %vm530, %v637, %v645
        %v649 = vsel %vm530, %v638, %v645
        %v650 = vld [vmem:[%s1] sm:$0xff]
        %v651 = vld [vmem:[%s1 + $0x8] sm:$0xff]
        %v652 = vld [vmem:[%s1 + $0x10] sm:$0xff]
        %v653 = vld [vmem:[%s1 + $0x18] sm:$0xff]
        %v654 = vld [vmem:[%s1 + $0x20] sm:$0xff]
        %v655 = vld [vmem:[%s1 + $0x28] sm:$0xff]
        %v656 = vld [vmem:[%s1 + $0x30] sm:$0xff]
        %v657 = vld [vmem:[%s1 + $0x38] sm:$0xff]
        %v658 = vld [vmem:[%s1 + $0x40] sm:$0xff]
        %v659 = vld [vmem:[%s1 + $0x48] sm:$0xff]
        %v660 = vld [vmem:[%s1 + $0x50] sm:$0xff]
        %v661 = vld [vmem:[%s1 + $0x58] sm:$0xff]
        %v662 = vld [vmem:[%s1 + $0x60] sm:$0xff]
        %v663 = vld [vmem:[%s1 + $0x68] sm:$0xff]
        %v664 = vld [vmem:[%s1 + $0x70] sm:$0xff]
        %v665 = vld [vmem:[%s1 + $0x78] sm:$0xff]
        %v666 = vld [vmem:[%s1 + $0x80] sm:$0xff]
        %v667 = vld [vmem:[%s1 + $0x88] sm:$0xff]
        %v668 = vld [vmem:[#allocation4] sm:$0x1]
        %v670 = vperm.slane %v668, 0
        %672 = vst [vmem:[#allocation1] ss:$2 sm:$0xff] %v646
        %s673 = scalar_lea.vmem [#allocation1], 1
        %674 = vst [vmem:[%s673] ss:$2 sm:$0xff] %v647
        %s675 = scalar_lea.vmem [#allocation1], 16
        %676 = vst [vmem:[%s675] ss:$2 sm:$0xff] %v648
        %s677 = scalar_lea.vmem [#allocation1], 17
        %678 = vst [vmem:[%s677] ss:$2 sm:$0xff] %v649
        %v679 = vld.sshfl [vmem:[#allocation1] sm:$0xff pattern:$0x75316420]
        %v680 = vld.sshfl [vmem:[#allocation1 + $0x8] sm:$0xff pattern:$0x75316420]
        %v681 = vld.sshfl [vmem:[#allocation1 + $0x10] sm:$0xff pattern:$0x75316420]
        %v682 = vld.sshfl [vmem:[#allocation1 + $0x18] sm:$0xff pattern:$0x75316420]
        %v685 = vsel %vm606, %v680, 0
        %v687 = vsel %vm606, %v682, 0
        %689 = vmatpush.msra.mxu0 %v665
        %690 = vmatpush.msra.mxu0 %v664
        %691 = vmatpush.msra.mxu0 %v663
        %692 = vmatpush.msra.mxu0 %v662
        %693 = vmatpush.msra.mxu0 %v661
        %694 = vmatpush.msra.mxu0 %v660
        %695 = vmatpush.msra.mxu0 %v659
        %696 = vmatpush.msra.mxu0 %v658
        %697 = vmatpush.msra.mxu0 %v657
        %698 = vmatpush.msra.mxu0 %v656
        %699 = vmatpush.msra.mxu0 %v655
        %700 = vmatpush.msra.mxu0 %v654
        %701 = vmatpush.msra.mxu0 %v653
        %702 = vmatpush.msra.mxu0 %v652
        %703 = vmatpush.msra.mxu0 %v651
        %704 = vmatpush.msra.mxu0 %v650
        %705 = vmatmul.f32.gmra.mxu0 %v679
        %v706 = vpop.f32.mrf.mxu0
        %v707 = vadd.f32 %v670, %v706
        %708 = vmatmul.f32.gmra.mxu0 %v681
        %v709 = vpop.f32.mrf.mxu0
        %v710 = vadd.f32 %v670, %v709
        %711 = vdwg.mxu0
        %712 = vmatpush.msra.mxu0 0.0
        %713 = vmatpush.msra.mxu0 0.0
        %714 = vmatpush.msra.mxu0 0.0
        %715 = vmatpush.msra.mxu0 0.0
        %716 = vmatpush.msra.mxu0 0.0
        %717 = vmatpush.msra.mxu0 0.0
        %718 = vmatpush.msra.mxu0 0.0
        %719 = vmatpush.msra.mxu0 0.0
        %720 = vmatpush.msra.mxu0 0.0
        %721 = vmatpush.msra.mxu0 0.0
        %722 = vmatpush.msra.mxu0 0.0
        %723 = vmatpush.msra.mxu0 0.0
        %724 = vmatpush.msra.mxu0 0.0
        %725 = vmatpush.msra.mxu0 0.0
        %726 = vmatpush.msra.mxu0 %v667
        %727 = vmatpush.msra.mxu0 %v666
        %728 = vmatmul.f32.gmra.mxu0 %v685
        %v729 = vpop.f32.mrf.mxu0
        %v730 = vadd.f32 %v707, %v729
        %731 = vmatmul.f32.gmra.mxu0 %v687
        %v732 = vpop.f32.mrf.mxu0
        %v733 = vadd.f32 %v710, %v732
        %734 = vdwg.mxu0
        %v735 = vmax.f32 %v730, 0.0
        %v736 = vmax.f32 %v733, 0.0
        %v739 = vrot.slane %v735, 4
        %v740 = vrot.slane %v736, 4
        %v741 = vrot.slane %v735, 6
        %v742 = vrot.slane %v739, 6
        %v743 = vrot.slane %v736, 6
        %v744 = vrot.slane %v740, 6
        %v749 = vsel %vm526, 0.0, %v741
        %v750 = vsel %vm526, 0.0, %v742
        %v751 = vsel %vm526, 0.0, %v743
        %v752 = vsel %vm526, 0.0, %v744
        %vm753 = vcmask 1045504
        %v754 = vsel %vm753, %v527, 0.0
        %v755 = vsel %vm753, %v749, 0.0
        %v756 = vsel %vm753, %v750, 0.0
        %v757 = vsel %vm753, %v751, 0.0
        %v758 = vsel %vm753, %v752, 0.0
        %v764 = vrot.slane %v754, 1
        %v765 = vrot.slane %v755, 1
        %v766 = vrot.slane %v756, 1
        %v767 = vrot.slane %v757, 1
        %v768 = vrot.slane %v758, 1
        %769 = vrot.lane.b32.xlu0 %v764, 16
        %v770 = vpop.permute.xlu0 %769
        %771 = vrot.lane.b32.xlu0 %v765, 16
        %v772 = vpop.permute.xlu0 %771
        %773 = vrot.lane.b32.xlu0 %v766, 16
        %v774 = vpop.permute.xlu0 %773
        %775 = vrot.lane.b32.xlu0 %v767, 16
        %v776 = vpop.permute.xlu0 %775
        %777 = vrot.lane.b32.xlu0 %v768, 16
        %v778 = vpop.permute.xlu0 %777
        %v784 = vrot.slane %v754, 2
        %v785 = vrot.slane %v755, 2
        %v786 = vrot.slane %v756, 2
        %v787 = vrot.slane %v757, 2
        %v788 = vrot.slane %v758, 2
        %789 = vrot.lane.b32.xlu0 %v784, 32
        %v790 = vpop.permute.xlu0 %789
        %791 = vrot.lane.b32.xlu0 %v785, 32
        %v792 = vpop.permute.xlu0 %791
        %793 = vrot.lane.b32.xlu0 %v786, 32
        %v794 = vpop.permute.xlu0 %793
        %795 = vrot.lane.b32.xlu0 %v787, 32
        %v796 = vpop.permute.xlu0 %795
        %797 = vrot.lane.b32.xlu0 %v788, 32
        %v798 = vpop.permute.xlu0 %797
        %804 = vrot.lane.b32.xlu0 %v754, 48
        %v805 = vpop.permute.xlu0 %804
        %806 = vrot.lane.b32.xlu0 %v755, 48
        %v807 = vpop.permute.xlu0 %806
        %808 = vrot.lane.b32.xlu0 %v756, 48
        %v809 = vpop.permute.xlu0 %808
        %810 = vrot.lane.b32.xlu0 %v757, 48
        %v811 = vpop.permute.xlu0 %810
        %812 = vrot.lane.b32.xlu0 %v758, 48
        %v813 = vpop.permute.xlu0 %812
        %819 = vrot.lane.b32.xlu0 %v764, 64
        %v820 = vpop.permute.xlu0 %819
        %821 = vrot.lane.b32.xlu0 %v765, 64
        %v822 = vpop.permute.xlu0 %821
        %823 = vrot.lane.b32.xlu0 %v766, 64
        %v824 = vpop.permute.xlu0 %823
        %825 = vrot.lane.b32.xlu0 %v767, 64
        %v826 = vpop.permute.xlu0 %825
        %827 = vrot.lane.b32.xlu0 %v768, 64
        %v828 = vpop.permute.xlu0 %827
        %834 = vrot.lane.b32.xlu0 %v784, 80
        %v835 = vpop.permute.xlu0 %834
        %836 = vrot.lane.b32.xlu0 %v785, 80
        %v837 = vpop.permute.xlu0 %836
        %838 = vrot.lane.b32.xlu0 %v786, 80
        %v839 = vpop.permute.xlu0 %838
        %840 = vrot.lane.b32.xlu0 %v787, 80
        %v841 = vpop.permute.xlu0 %840
        %842 = vrot.lane.b32.xlu0 %v788, 80
        %v843 = vpop.permute.xlu0 %842
        %849 = vrot.lane.b32.xlu0 %v755, 96
        %v850 = vpop.permute.xlu0 %849
        %851 = vrot.lane.b32.xlu0 %v756, 96
        %v852 = vpop.permute.xlu0 %851
        %853 = vrot.lane.b32.xlu0 %v757, 96
        %v854 = vpop.permute.xlu0 %853
        %855 = vrot.lane.b32.xlu0 %v758, 96
        %v856 = vpop.permute.xlu0 %855
        %857 = vrot.lane.b32.xlu0 %v754, 96
        %v858 = vpop.permute.xlu0 %857
        %864 = vrot.lane.b32.xlu0 %v765, 112
        %v865 = vpop.permute.xlu0 %864
        %866 = vrot.lane.b32.xlu0 %v766, 112
        %v867 = vpop.permute.xlu0 %866
        %868 = vrot.lane.b32.xlu0 %v767, 112
        %v869 = vpop.permute.xlu0 %868
        %870 = vrot.lane.b32.xlu0 %v768, 112
        %v871 = vpop.permute.xlu0 %870
        %872 = vrot.lane.b32.xlu0 %v764, 112
        %v873 = vpop.permute.xlu0 %872
        %v879 = vsel %vm606, %v754, %v770
        %v880 = vsel %vm606, %v755, %v772
        %v881 = vsel %vm606, %v756, %v774
        %v882 = vsel %vm606, %v757, %v776
        %v883 = vsel %vm606, %v758, %v778
        %v884 = vsel %vm610, %v879, %v790
        %v885 = vsel %vm610, %v880, %v792
        %v886 = vsel %vm610, %v881, %v794
        %v887 = vsel %vm610, %v882, %v796
        %v888 = vsel %vm610, %v883, %v798
        %v889 = vsel %vm614, %v884, %v805
        %v890 = vsel %vm614, %v884, %v807
        %v891 = vsel %vm614, %v885, %v809
        %v892 = vsel %vm614, %v886, %v811
        %v893 = vsel %vm614, %v887, %v813
        %v894 = vsel %vm614, %v888, %v805
        %v895 = vsel %vm619, %v889, %v820
        %v896 = vsel %vm619, %v890, %v822
        %v897 = vsel %vm619, %v891, %v824
        %v898 = vsel %vm619, %v892, %v826
        %v899 = vsel %vm619, %v893, %v828
        %v900 = vsel %vm619, %v894, %v820
        %v901 = vsel %vm624, %v895, %v835
        %v902 = vsel %vm624, %v896, %v837
        %v903 = vsel %vm624, %v897, %v839
        %v904 = vsel %vm624, %v898, %v841
        %v905 = vsel %vm624, %v899, %v843
        %v906 = vsel %vm624, %v900, %v835
        %v907 = vsel %vm629, %v901, %v850
        %v908 = vsel %vm629, %v902, %v852
        %v909 = vsel %vm629, %v903, %v854
        %v910 = vsel %vm629, %v904, %v856
        %v911 = vsel %vm629, %v905, %v858
        %v912 = vsel %vm629, %v906, %v858
        %v913 = vsel %vm634, %v907, %v865
        %v914 = vsel %vm634, %v908, %v867
        %v915 = vsel %vm634, %v909, %v869
        %v916 = vsel %vm634, %v910, %v871
        %v917 = vsel %vm634, %v911, %v873
        %v918 = vsel %vm634, %v912, %v873
        %v925 = vrot.slane %v785, 6
        %v926 = vrot.slane %v786, 6
        %v927 = vrot.slane %v787, 6
        %v928 = vrot.slane %v788, 6
        %v929 = vrot.slane %v784, 6
        %v930 = vsel %vm526, %v913, %v925
        %vm931 = vcmask 1043458
        %v932 = vsel %vm931, %v913, %v925
        %v933 = vrot.slane %v932, 2
        %vm934 = vcmask 1045508
        %v935 = vsel %vm934, %v913, %v925
        %v936 = vrot.slane %v935, 4
        %v937 = vsel %vm526, %v914, %v926
        %v938 = vsel %vm931, %v914, %v926
        %v939 = vrot.slane %v938, 2
        %v940 = vsel %vm934, %v914, %v926
        %v941 = vrot.slane %v940, 4
        %v942 = vsel %vm526, %v915, %v927
        %v943 = vsel %vm931, %v915, %v927
        %v944 = vrot.slane %v943, 2
        %v945 = vsel %vm934, %v915, %v927
        %v946 = vrot.slane %v945, 4
        %v947 = vsel %vm526, %v916, %v928
        %v948 = vsel %vm931, %v916, %v928
        %v949 = vrot.slane %v948, 2
        %v950 = vsel %vm934, %v916, %v928
        %v951 = vrot.slane %v950, 4
        %v952 = vsel %vm526, %v917, %v929
        %v953 = vsel %vm931, %v917, %v929
        %v954 = vrot.slane %v953, 2
        %v955 = vsel %vm934, %v917, %v929
        %v956 = vrot.slane %v955, 4
        %v957 = vsel %vm526, %v918, %v929
        %v958 = vsel %vm931, %v918, %v929
        %v959 = vrot.slane %v958, 2
        %v960 = vsel %vm934, %v918, %v929
        %v961 = vrot.slane %v960, 4
        %v962 = vld [vmem:[%s3] sm:$0xff]
        %v963 = vld [vmem:[%s3 + $0x8] sm:$0xff]
        %v964 = vld [vmem:[%s3 + $0x10] sm:$0xff]
        %v965 = vld [vmem:[%s3 + $0x18] sm:$0xff]
        %v966 = vld [vmem:[%s3 + $0x20] sm:$0xff]
        %v967 = vld [vmem:[%s3 + $0x28] sm:$0xff]
        %v968 = vld [vmem:[%s3 + $0x30] sm:$0xff]
        %v969 = vld [vmem:[%s3 + $0x38] sm:$0xff]
        %v970 = vld [vmem:[%s3 + $0x40] sm:$0xff]
        %v971 = vld [vmem:[%s3 + $0x48] sm:$0xff]
        %v972 = vld [vmem:[%s3 + $0x50] sm:$0xff]
        %v973 = vld [vmem:[%s3 + $0x58] sm:$0xff]
        %v974 = vld [vmem:[%s3 + $0x60] sm:$0xff]
        %v975 = vld [vmem:[%s3 + $0x68] sm:$0xff]
        %v976 = vld [vmem:[%s3 + $0x70] sm:$0xff]
        %v977 = vld [vmem:[%s3 + $0x78] sm:$0xff]
        %v978 = vld [vmem:[%s3 + $0x80] sm:$0xff]
        %v979 = vld [vmem:[%s3 + $0x88] sm:$0xff]
        %v980 = vld [vmem:[#allocation6] sm:$0x1]
        %v982 = vperm.slane %v980, 0
        %984 = vst [vmem:[#allocation1] ss:$4 sm:$0xff] %v930
        %s985 = scalar_lea.vmem [#allocation1], 1
        %986 = vst [vmem:[%s985] ss:$4 sm:$0xff] %v933
        %s987 = scalar_lea.vmem [#allocation1], 2
        %988 = vst [vmem:[%s987] ss:$4 sm:$0xff] %v936
        %s989 = scalar_lea.vmem [#allocation1], 3
        %990 = vst [vmem:[%s989] ss:$4 sm:$0xff] %v937
        %s991 = scalar_lea.vmem [#allocation1], 32
        %992 = vst [vmem:[%s991] ss:$4 sm:$0xff] %v939
        %s993 = scalar_lea.vmem [#allocation1], 33
        %994 = vst [vmem:[%s993] ss:$4 sm:$0xff] %v941
        %s995 = scalar_lea.vmem [#allocation1], 34
        %996 = vst [vmem:[%s995] ss:$4 sm:$0xff] %v942
        %s997 = scalar_lea.vmem [#allocation1], 35
        %998 = vst [vmem:[%s997] ss:$4 sm:$0xff] %v944
        %v999 = vld.sshfl [vmem:[#allocation1] sm:$0xff pattern:$0x73625140]
        %v1000 = vld.sshfl [vmem:[#allocation1 + $0x8] sm:$0xff pattern:$0x73625140]
        %v1001 = vld.sshfl [vmem:[#allocation1 + $0x20] sm:$0xff pattern:$0x73625140]
        %v1002 = vld.sshfl [vmem:[#allocation1 + $0x28] sm:$0xff pattern:$0x73625140]
        %1003 = vst [vmem:[#allocation1] ss:$4 sm:$0xff] %v946
        %1004 = vst [vmem:[%s985] ss:$4 sm:$0xff] %v947
        %1005 = vst [vmem:[%s987] ss:$4 sm:$0xff] %v949
        %1006 = vst [vmem:[%s989] ss:$4 sm:$0xff] %v951
        %1007 = vst [vmem:[%s991] ss:$4 sm:$0xff] %v952
        %1008 = vst [vmem:[%s993] ss:$4 sm:$0xff] %v954
        %1009 = vst [vmem:[%s995] ss:$4 sm:$0xff] %v956
        %1010 = vst [vmem:[%s997] ss:$4 sm:$0xff] %v957
        %v1011 = vld.sshfl [vmem:[#allocation1] sm:$0xff pattern:$0x73625140]
        %v1012 = vld.sshfl [vmem:[#allocation1 + $0x8] sm:$0xff pattern:$0x73625140]
        %v1013 = vld.sshfl [vmem:[#allocation1 + $0x20] sm:$0xff pattern:$0x73625140]
        %v1014 = vld.sshfl [vmem:[#allocation1 + $0x28] sm:$0xff pattern:$0x73625140]
        %1015 = vst [vmem:[#allocation1] ss:$4 sm:$0xff] %v959
        %1016 = vst [vmem:[%s985] ss:$4 sm:$0xff] %v961
        %v1017 = vld.sshfl [vmem:[#allocation1] sm:$0xff pattern:$0x73625140]
        %v1018 = vld.sshfl [vmem:[#allocation1 + $0x8] sm:$0xff pattern:$0x73625140]
        %v1024 = vsel %vm606, %v1000, 0
        %v1026 = vsel %vm606, %v1002, 0
        %v1028 = vsel %vm606, %v1012, 0
        %v1030 = vsel %vm606, %v1014, 0
        %v1032 = vsel %vm606, %v1018, 0
        %1034 = vmatpush.msra.mxu0 %v977
        %1035 = vmatpush.msra.mxu0 %v976
        %1036 = vmatpush.msra.mxu0 %v975
        %1037 = vmatpush.msra.mxu0 %v974
        %1038 = vmatpush.msra.mxu0 %v973
        %1039 = vmatpush.msra.mxu0 %v972
        %1040 = vmatpush.msra.mxu0 %v971
        %1041 = vmatpush.msra.mxu0 %v970
        %1042 = vmatpush.msra.mxu0 %v969
        %1043 = vmatpush.msra.mxu0 %v968
        %1044 = vmatpush.msra.mxu0 %v967
        %1045 = vmatpush.msra.mxu0 %v966
        %1046 = vmatpush.msra.mxu0 %v965
        %1047 = vmatpush.msra.mxu0 %v964
        %1048 = vmatpush.msra.mxu0 %v963
        %1049 = vmatpush.msra.mxu0 %v962
        %1050 = vmatmul.f32.gmra.mxu0 %v999
        %v1051 = vpop.f32.mrf.mxu0
        %v1052 = vadd.f32 %v982, %v1051
        %1053 = vmatmul.f32.gmra.mxu0 %v1001
        %v1054 = vpop.f32.mrf.mxu0
        %v1055 = vadd.f32 %v982, %v1054
        %1056 = vmatmul.f32.gmra.mxu0 %v1011
        %v1057 = vpop.f32.mrf.mxu0
        %v1058 = vadd.f32 %v982, %v1057
        %1059 = vmatmul.f32.gmra.mxu0 %v1013
        %v1060 = vpop.f32.mrf.mxu0
        %v1061 = vadd.f32 %v982, %v1060
        %1062 = vmatmul.f32.gmra.mxu0 %v1017
        %v1063 = vpop.f32.mrf.mxu0
        %v1064 = vadd.f32 %v982, %v1063
        %1065 = vdwg.mxu0
        %1066 = vmatpush.msra.mxu0 0.0
        %1067 = vmatpush.msra.mxu0 0.0
        %1068 = vmatpush.msra.mxu0 0.0
        %1069 = vmatpush.msra.mxu0 0.0
        %1070 = vmatpush.msra.mxu0 0.0
        %1071 = vmatpush.msra.mxu0 0.0
        %1072 = vmatpush.msra.mxu0 0.0
        %1073 = vmatpush.msra.mxu0 0.0
        %1074 = vmatpush.msra.mxu0 0.0
        %1075 = vmatpush.msra.mxu0 0.0
        %1076 = vmatpush.msra.mxu0 0.0
        %1077 = vmatpush.msra.mxu0 0.0
        %1078 = vmatpush.msra.mxu0 0.0
        %1079 = vmatpush.msra.mxu0 0.0
        %1080 = vmatpush.msra.mxu0 %v979
        %1081 = vmatpush.msra.mxu0 %v978
        %1082 = vmatmul.f32.gmra.mxu0 %v1024
        %v1083 = vpop.f32.mrf.mxu0
        %v1084 = vadd.f32 %v1052, %v1083
        %1085 = vmatmul.f32.gmra.mxu0 %v1026
        %v1086 = vpop.f32.mrf.mxu0
        %v1087 = vadd.f32 %v1055, %v1086
        %1088 = vmatmul.f32.gmra.mxu0 %v1028
        %v1089 = vpop.f32.mrf.mxu0
        %v1090 = vadd.f32 %v1058, %v1089
        %1091 = vmatmul.f32.gmra.mxu0 %v1030
        %v1092 = vpop.f32.mrf.mxu0
        %v1093 = vadd.f32 %v1061, %v1092
        %1094 = vmatmul.f32.gmra.mxu0 %v1032
        %v1095 = vpop.f32.mrf.mxu0
        %v1096 = vadd.f32 %v1064, %v1095
        %1097 = vdwg.mxu0
        %v1098 = vmax.f32 %v1084, 0.0
        %v1099 = vmax.f32 %v1087, 0.0
        %v1100 = vmax.f32 %v1090, 0.0
        %v1101 = vmax.f32 %v1093, 0.0
        %v1102 = vmax.f32 %v1096, 0.0
        %v1108 = vrot.slane %v1098, 2
        %v1109 = vrot.slane %v1098, 4
        %v1110 = vrot.slane %v1098, 6
        %v1111 = vrot.slane %v1099, 2
        %v1112 = vrot.slane %v1099, 4
        %v1113 = vrot.slane %v1099, 6
        %v1114 = vrot.slane %v1100, 2
        %v1115 = vrot.slane %v1100, 4
        %v1116 = vrot.slane %v1100, 6
        %v1117 = vrot.slane %v1101, 2
        %v1118 = vrot.slane %v1101, 4
        %v1119 = vrot.slane %v1101, 6
        %v1120 = vrot.slane %v1102, 2
        %1121 = vst [vmem:[#allocation1] ss:$4 sm:$0xff] %v1098
        %s1122 = scalar_lea.vmem [#allocation1], 1
        %1123 = vst [vmem:[%s1122] ss:$4 sm:$0xff] %v1108
        %s1124 = scalar_lea.vmem [#allocation1], 2
        %1125 = vst [vmem:[%s1124] ss:$4 sm:$0xff] %v1109
        %v1126 = vld.sshfl [vmem:[#allocation1] sm:$0xff pattern:$0x73625140]
        %s1127 = scalar_lea.vmem [#allocation1], 32
        %1128 = vst [vmem:[%s1127] ss:$4 sm:$0xff] %v1110
        %s1129 = scalar_lea.vmem [#allocation1], 33
        %1130 = vst [vmem:[%s1129] ss:$4 sm:$0xff] %v1099
        %s1131 = scalar_lea.vmem [#allocation1], 34
        %1132 = vst [vmem:[%s1131] ss:$4 sm:$0xff] %v1111
        %v1133 = vld.sshfl [vmem:[#allocation1 + $0x20] sm:$0xff pattern:$0x73625140]
        %1134 = vst [vmem:[#allocation1] ss:$4 sm:$0xff] %v1112
        %1135 = vst [vmem:[%s1122] ss:$4 sm:$0xff] %v1113
        %1136 = vst [vmem:[%s1124] ss:$4 sm:$0xff] %v1100
        %v1137 = vld.sshfl [vmem:[#allocation1] sm:$0xff pattern:$0x73625140]
        %1138 = vst [vmem:[%s1127] ss:$4 sm:$0xff] %v1114
        %1139 = vst [vmem:[%s1129] ss:$4 sm:$0xff] %v1115
        %1140 = vst [vmem:[%s1131] ss:$4 sm:$0xff] %v1116
        %v1141 = vld.sshfl [vmem:[#allocation1 + $0x20] sm:$0xff pattern:$0x73625140]
        %1142 = vst [vmem:[#allocation1] ss:$4 sm:$0xff] %v1101
        %1143 = vst [vmem:[%s1122] ss:$4 sm:$0xff] %v1117
        %1144 = vst [vmem:[%s1124] ss:$4 sm:$0xff] %v1118
        %v1145 = vld.sshfl [vmem:[#allocation1] sm:$0xff pattern:$0x73625140]
        %1146 = vst [vmem:[%s1127] ss:$4 sm:$0xff] %v1119
        %1147 = vst [vmem:[%s1129] ss:$4 sm:$0xff] %v1102
        %1148 = vst [vmem:[%s1131] ss:$4 sm:$0xff] %v1120
        %v1149 = vld.sshfl [vmem:[#allocation1 + $0x20] sm:$0xff pattern:$0x73625140]
        %v1150 = vrot.slane 0.0, 7
        %v1151 = vrot.slane %v1126, 7
        %v1152 = vrot.slane %v1133, 7
        %v1153 = vrot.slane %v1137, 7
        %v1154 = vrot.slane %v1141, 7
        %v1155 = vrot.slane %v1145, 7
        %v1156 = vrot.slane %v1149, 7
        %vm1164 = vcmask 1040384
        %v1165 = vsel %vm1164, 0.0, %v1150
        %v1166 = vsel %vm1164, 0.0, %v1151
        %v1167 = vsel %vm1164, 0.0, %v1152
        %v1168 = vsel %vm1164, 0.0, %v1153
        %v1169 = vsel %vm1164, 0.0, %v1154
        %v1170 = vsel %vm1164, 0.0, %v1155
        %v1171 = vsel %vm1164, 0.0, %v1156
        %vm1172 = vcmask 1046528
        %v1173 = vsel %vm1172, %v1165, 0.0
        %v1174 = vsel %vm1172, %v1166, 0.0
        %v1175 = vsel %vm1172, %v1167, 0.0
        %v1176 = vsel %vm1172, %v1168, 0.0
        %v1177 = vsel %vm1172, %v1169, 0.0
        %v1178 = vsel %vm1172, %v1170, 0.0
        %v1179 = vsel %vm1172, %v1171, 0.0
        %v1187 = vrot.slane %v1173, 1
        %v1188 = vrot.slane %v1174, 1
        %v1189 = vrot.slane %v1175, 1
        %v1190 = vrot.slane %v1176, 1
        %v1191 = vrot.slane %v1177, 1
        %v1192 = vrot.slane %v1178, 1
        %v1193 = vrot.slane %v1179, 1
        %1194 = vrot.lane.b32.xlu0 %v1187, 64
        %v1195 = vpop.permute.xlu0 %1194
        %1196 = vrot.lane.b32.xlu0 %v1188, 64
        %v1197 = vpop.permute.xlu0 %1196
        %1198 = vrot.lane.b32.xlu0 %v1189, 64
        %v1199 = vpop.permute.xlu0 %1198
        %1200 = vrot.lane.b32.xlu0 %v1190, 64
        %v1201 = vpop.permute.xlu0 %1200
        %1202 = vrot.lane.b32.xlu0 %v1191, 64
        %v1203 = vpop.permute.xlu0 %1202
        %1204 = vrot.lane.b32.xlu0 %v1192, 64
        %v1205 = vpop.permute.xlu0 %1204
        %1206 = vrot.lane.b32.xlu0 %v1193, 64
        %v1207 = vpop.permute.xlu0 %1206
        %v1215 = vsel %vm619, %v1173, %v1195
        %v1216 = vsel %vm619, %v1174, %v1197
        %v1217 = vsel %vm619, %v1175, %v1199
        %v1218 = vsel %vm619, %v1176, %v1201
        %v1219 = vsel %vm619, %v1177, %v1203
        %v1220 = vsel %vm619, %v1178, %v1205
        %v1221 = vsel %vm619, %v1179, %v1207
        %v1229 = vrot.slane %v1216, 7
        %v1230 = vrot.slane %v1217, 7
        %v1231 = vrot.slane %v1218, 7
        %v1232 = vrot.slane %v1219, 7
        %v1233 = vrot.slane %v1220, 7
        %v1234 = vrot.slane %v1221, 7
        %v1235 = vrot.slane %v1215, 7
        %v1236 = vsel %vm1164, %v1215, %v1229
        %vm1237 = vcmask 1041409
        %v1238 = vsel %vm1237, %v1215, %v1229
        %v1239 = vrot.slane %v1238, 1
        %vm1240 = vcmask 1042434
        %v1241 = vsel %vm1240, %v1215, %v1229
        %v1242 = vrot.slane %v1241, 2
        %vm1243 = vcmask 1043459
        %v1244 = vsel %vm1243, %v1215, %v1229
        %v1245 = vrot.slane %v1244, 3
        %vm1246 = vcmask 1044484
        %v1247 = vsel %vm1246, %v1215, %v1229
        %v1248 = vrot.slane %v1247, 4
        %vm1249 = vcmask 1045509
        %v1250 = vsel %vm1249, %v1215, %v1229
        %v1251 = vrot.slane %v1250, 5
        %vm1252 = vcmask 1046534
        %v1253 = vsel %vm1252, %v1215, %v1229
        %v1254 = vrot.slane %v1253, 6
        %v1255 = vsel %vm1164, %v1216, %v1230
        %v1256 = vsel %vm1237, %v1216, %v1230
        %v1257 = vrot.slane %v1256, 1
        %v1258 = vsel %vm1240, %v1216, %v1230
        %v1259 = vrot.slane %v1258, 2
        %v1260 = vsel %vm1243, %v1216, %v1230
        %v1261 = vrot.slane %v1260, 3
        %v1262 = vsel %vm1246, %v1216, %v1230
        %v1263 = vrot.slane %v1262, 4
        %v1264 = vsel %vm1249, %v1216, %v1230
        %v1265 = vrot.slane %v1264, 5
        %v1266 = vsel %vm1252, %v1216, %v1230
        %v1267 = vrot.slane %v1266, 6
        %v1268 = vsel %vm1164, %v1217, %v1231
        %v1269 = vsel %vm1237, %v1217, %v1231
        %v1270 = vrot.slane %v1269, 1
        %v1271 = vsel %vm1240, %v1217, %v1231
        %v1272 = vrot.slane %v1271, 2
        %v1273 = vsel %vm1243, %v1217, %v1231
        %v1274 = vrot.slane %v1273, 3
        %v1275 = vsel %vm1246, %v1217, %v1231
        %v1276 = vrot.slane %v1275, 4
        %v1277 = vsel %vm1249, %v1217, %v1231
        %v1278 = vrot.slane %v1277, 5
        %v1279 = vsel %vm1252, %v1217, %v1231
        %v1280 = vrot.slane %v1279, 6
        %v1281 = vsel %vm1164, %v1218, %v1232
        %v1282 = vsel %vm1237, %v1218, %v1232
        %v1283 = vrot.slane %v1282, 1
        %v1284 = vsel %vm1240, %v1218, %v1232
        %v1285 = vrot.slane %v1284, 2
        %v1286 = vsel %vm1243, %v1218, %v1232
        %v1287 = vrot.slane %v1286, 3
        %v1288 = vsel %vm1246, %v1218, %v1232
        %v1289 = vrot.slane %v1288, 4
        %v1290 = vsel %vm1249, %v1218, %v1232
        %v1291 = vrot.slane %v1290, 5
        %v1292 = vsel %vm1252, %v1218, %v1232
        %v1293 = vrot.slane %v1292, 6
        %v1294 = vsel %vm1164, %v1219, %v1233
        %v1295 = vsel %vm1237, %v1219, %v1233
        %v1296 = vrot.slane %v1295, 1
        %v1297 = vsel %vm1240, %v1219, %v1233
        %v1298 = vrot.slane %v1297, 2
        %v1299 = vsel %vm1243, %v1219, %v1233
        %v1300 = vrot.slane %v1299, 3
        %v1301 = vsel %vm1246, %v1219, %v1233
        %v1302 = vrot.slane %v1301, 4
        %v1303 = vsel %vm1249, %v1219, %v1233
        %v1304 = vrot.slane %v1303, 5
        %v1305 = vsel %vm1252, %v1219, %v1233
        %v1306 = vrot.slane %v1305, 6
        %v1307 = vsel %vm1164, %v1220, %v1234
        %v1308 = vsel %vm1237, %v1220, %v1234
        %v1309 = vrot.slane %v1308, 1
        %v1310 = vsel %vm1240, %v1220, %v1234
        %v1311 = vrot.slane %v1310, 2
        %v1312 = vsel %vm1243, %v1220, %v1234
        %v1313 = vrot.slane %v1312, 3
        %v1314 = vsel %vm1246, %v1220, %v1234
        %v1315 = vrot.slane %v1314, 4
        %v1316 = vsel %vm1249, %v1220, %v1234
        %v1317 = vrot.slane %v1316, 5
        %v1318 = vsel %vm1252, %v1220, %v1234
        %v1319 = vrot.slane %v1318, 6
        %v1320 = vsel %vm1164, %v1221, %v1235
        %v1321 = vsel %vm1237, %v1221, %v1235
        %v1322 = vrot.slane %v1321, 1
        %v1323 = vsel %vm1240, %v1221, %v1235
        %v1324 = vrot.slane %v1323, 2
        %v1325 = vsel %vm1243, %v1221, %v1235
        %v1326 = vrot.slane %v1325, 3
        %v1327 = vsel %vm1246, %v1221, %v1235
        %v1328 = vrot.slane %v1327, 4
        %v1329 = vsel %vm1249, %v1221, %v1235
        %v1330 = vrot.slane %v1329, 5
        %v1331 = vsel %vm1252, %v1221, %v1235
        %v1332 = vrot.slane %v1331, 6
        %v1333 = vld [vmem:[%s5] sm:$0xff]
        %v1334 = vld [vmem:[%s5 + $0x8] sm:$0xff]
        %v1335 = vld [vmem:[%s5 + $0x10] sm:$0xff]
        %v1336 = vld [vmem:[%s5 + $0x18] sm:$0xff]
        %v1337 = vld [vmem:[%s5 + $0x20] sm:$0xff]
        %v1338 = vld [vmem:[%s5 + $0x28] sm:$0xff]
        %v1339 = vld [vmem:[%s5 + $0x30] sm:$0xff]
        %v1340 = vld [vmem:[%s5 + $0x38] sm:$0xff]
        %v1341 = vld [vmem:[%s5 + $0x40] sm:$0xff]
        %v1342 = vld [vmem:[%s5 + $0x48] sm:$0xff]
        %v1343 = vld [vmem:[%s5 + $0x50] sm:$0xff]
        %v1344 = vld [vmem:[%s5 + $0x58] sm:$0xff]
        %v1345 = vld [vmem:[%s5 + $0x60] sm:$0xff]
        %v1346 = vld [vmem:[%s5 + $0x68] sm:$0xff]
        %v1347 = vld [vmem:[%s5 + $0x70] sm:$0xff]
        %v1348 = vld [vmem:[%s5 + $0x78] sm:$0xff]
        %v1349 = vld [vmem:[%s5 + $0x80] sm:$0xff]
        %v1350 = vld [vmem:[%s5 + $0x88] sm:$0xff]
        %v1351 = vld [vmem:[%s5 + $0x90] sm:$0xff]
        %v1352 = vld [vmem:[%s5 + $0x98] sm:$0xff]
        %v1353 = vld [vmem:[%s5 + $0xa0] sm:$0xff]
        %v1354 = vld [vmem:[%s5 + $0xa8] sm:$0xff]
        %v1355 = vld [vmem:[%s5 + $0xb0] sm:$0xff]
        %v1356 = vld [vmem:[%s5 + $0xb8] sm:$0xff]
        %v1357 = vld [vmem:[%s5 + $0xc0] sm:$0xff]
        %v1358 = vld [vmem:[%s5 + $0xc8] sm:$0xff]
        %v1359 = vld [vmem:[%s5 + $0xd0] sm:$0xff]
        %v1360 = vld [vmem:[%s5 + $0xd8] sm:$0xff]
        %v1361 = vld [vmem:[%s5 + $0xe0] sm:$0xff]
        %v1362 = vld [vmem:[%s5 + $0xe8] sm:$0xff]
        %v1363 = vld [vmem:[%s5 + $0xf0] sm:$0xff]
        %v1364 = vld [vmem:[%s5 + $0xf8] sm:$0xff]
        %v1365 = vld [vmem:[#allocation7] sm:$0x1]
        %v1367 = vperm.slane %v1365, 0
        %1369 = vst [vmem:[#allocation1] ss:$9 sm:$0xff] %v1236
        %s1370 = scalar_lea.vmem [#allocation1], 1
        %1371 = vst [vmem:[%s1370] ss:$9 sm:$0xff] %v1239
        %s1372 = scalar_lea.vmem [#allocation1], 2
        %1373 = vst [vmem:[%s1372] ss:$9 sm:$0xff] %v1242
        %s1374 = scalar_lea.vmem [#allocation1], 3
        %1375 = vst [vmem:[%s1374] ss:$9 sm:$0xff] %v1245
        %s1376 = scalar_lea.vmem [#allocation1], 4
        %1377 = vst [vmem:[%s1376] ss:$9 sm:$0xff] %v1248
        %s1378 = scalar_lea.vmem [#allocation1], 5
        %1379 = vst [vmem:[%s1378] ss:$9 sm:$0xff] %v1251
        %s1380 = scalar_lea.vmem [#allocation1], 6
        %1381 = vst [vmem:[%s1380] ss:$9 sm:$0xff] %v1254
        %s1382 = scalar_lea.vmem [#allocation1], 7
        %1383 = vst [vmem:[%s1382] ss:$9 sm:$0xff] %v1255
        %v1384 = vld [vmem:[#allocation1] sm:$0xff]
        %v1385 = vld [vmem:[#allocation1 + $0x9] sm:$0xff]
        %1386 = vst [vmem:[#allocation1] ss:$9 sm:$0xff] %v1257
        %1387 = vst [vmem:[%s1370] ss:$9 sm:$0xff] %v1259
        %1388 = vst [vmem:[%s1372] ss:$9 sm:$0xff] %v1261
        %1389 = vst [vmem:[%s1374] ss:$9 sm:$0xff] %v1263
        %1390 = vst [vmem:[%s1376] ss:$9 sm:$0xff] %v1265
        %1391 = vst [vmem:[%s1378] ss:$9 sm:$0xff] %v1267
        %1392 = vst [vmem:[%s1380] ss:$9 sm:$0xff] %v1268
        %1393 = vst [vmem:[%s1382] ss:$9 sm:$0xff] %v1270
        %v1394 = vld [vmem:[#allocation1] sm:$0xff]
        %v1395 = vld [vmem:[#allocation1 + $0x9] sm:$0xff]
        %1396 = vst [vmem:[#allocation1] ss:$9 sm:$0xff] %v1272
        %1397 = vst [vmem:[%s1370] ss:$9 sm:$0xff] %v1274
        %1398 = vst [vmem:[%s1372] ss:$9 sm:$0xff] %v1276
        %1399 = vst [vmem:[%s1374] ss:$9 sm:$0xff] %v1278
        %1400 = vst [vmem:[%s1376] ss:$9 sm:$0xff] %v1280
        %1401 = vst [vmem:[%s1378] ss:$9 sm:$0xff] %v1281
        %1402 = vst [vmem:[%s1380] ss:$9 sm:$0xff] %v1283
        %1403 = vst [vmem:[%s1382] ss:$9 sm:$0xff] %v1285
        %v1404 = vld [vmem:[#allocation1] sm:$0xff]
        %v1405 = vld [vmem:[#allocation1 + $0x9] sm:$0xff]
        %1406 = vst [vmem:[#allocation1] ss:$9 sm:$0xff] %v1287
        %1407 = vst [vmem:[%s1370] ss:$9 sm:$0xff] %v1289
        %1408 = vst [vmem:[%s1372] ss:$9 sm:$0xff] %v1291
        %1409 = vst [vmem:[%s1374] ss:$9 sm:$0xff] %v1293
        %1410 = vst [vmem:[%s1376] ss:$9 sm:$0xff] %v1294
        %1411 = vst [vmem:[%s1378] ss:$9 sm:$0xff] %v1296
        %1412 = vst [vmem:[%s1380] ss:$9 sm:$0xff] %v1298
        %1413 = vst [vmem:[%s1382] ss:$9 sm:$0xff] %v1300
        %v1414 = vld [vmem:[#allocation1] sm:$0xff]
        %v1415 = vld [vmem:[#allocation1 + $0x9] sm:$0xff]
        %1416 = vst [vmem:[#allocation1] ss:$9 sm:$0xff] %v1302
        %1417 = vst [vmem:[%s1370] ss:$9 sm:$0xff] %v1304
        %1418 = vst [vmem:[%s1372] ss:$9 sm:$0xff] %v1306
        %1419 = vst [vmem:[%s1374] ss:$9 sm:$0xff] %v1307
        %1420 = vst [vmem:[%s1376] ss:$9 sm:$0xff] %v1309
        %1421 = vst [vmem:[%s1378] ss:$9 sm:$0xff] %v1311
        %1422 = vst [vmem:[%s1380] ss:$9 sm:$0xff] %v1313
        %1423 = vst [vmem:[%s1382] ss:$9 sm:$0xff] %v1315
        %v1424 = vld [vmem:[#allocation1] sm:$0xff]
        %v1425 = vld [vmem:[#allocation1 + $0x9] sm:$0xff]
        %1426 = vst [vmem:[#allocation1] ss:$9 sm:$0xff] %v1317
        %1427 = vst [vmem:[%s1370] ss:$9 sm:$0xff] %v1319
        %1428 = vst [vmem:[%s1372] ss:$9 sm:$0xff] %v1320
        %1429 = vst [vmem:[%s1374] ss:$9 sm:$0xff] %v1322
        %1430 = vst [vmem:[%s1376] ss:$9 sm:$0xff] %v1324
        %1431 = vst [vmem:[%s1378] ss:$9 sm:$0xff] %v1326
        %1432 = vst [vmem:[%s1380] ss:$9 sm:$0xff] %v1328
        %1433 = vst [vmem:[%s1382] ss:$9 sm:$0xff] %v1330
        %v1434 = vld [vmem:[#allocation1] sm:$0xff]
        %v1435 = vld [vmem:[#allocation1 + $0x9] sm:$0xff]
        %1436 = vst [vmem:[#allocation1] ss:$9 sm:$0xff] %v1332
        %v1437 = vld [vmem:[#allocation1] sm:$0xff]
        %v1438 = vld [vmem:[#allocation1 + $0x9] sm:$0xff]
        %1453 = vmatpush.msra.mxu0 %v1348
        %1454 = vmatpush.msra.mxu0 %v1347
        %1455 = vmatpush.msra.mxu0 %v1346
        %1456 = vmatpush.msra.mxu0 %v1345
        %1457 = vmatpush.msra.mxu0 %v1344
        %1458 = vmatpush.msra.mxu0 %v1343
        %1459 = vmatpush.msra.mxu0 %v1342
        %1460 = vmatpush.msra.mxu0 %v1341
        %1461 = vmatpush.msra.mxu0 %v1340
        %1462 = vmatpush.msra.mxu0 %v1339
        %1463 = vmatpush.msra.mxu0 %v1338
        %1464 = vmatpush.msra.mxu0 %v1337
        %1465 = vmatpush.msra.mxu0 %v1336
        %1466 = vmatpush.msra.mxu0 %v1335
        %1467 = vmatpush.msra.mxu0 %v1334
        %1468 = vmatpush.msra.mxu0 %v1333
        %1469 = vmatmul.f32.gmra.mxu0 %v1384
        %v1470 = vpop.f32.mrf.mxu0
        %v1471 = vadd.f32 %v1367, %v1470
        %1472 = vmatmul.f32.gmra.mxu0 %v1394
        %v1473 = vpop.f32.mrf.mxu0
        %v1474 = vadd.f32 %v1367, %v1473
        %1475 = vmatmul.f32.gmra.mxu0 %v1404
        %v1476 = vpop.f32.mrf.mxu0
        %v1477 = vadd.f32 %v1367, %v1476
        %1478 = vmatmul.f32.gmra.mxu0 %v1414
        %v1479 = vpop.f32.mrf.mxu0
        %v1480 = vadd.f32 %v1367, %v1479
        %1481 = vmatmul.f32.gmra.mxu0 %v1424
        %v1482 = vpop.f32.mrf.mxu0
        %v1483 = vadd.f32 %v1367, %v1482
        %1484 = vmatmul.f32.gmra.mxu0 %v1434
        %v1485 = vpop.f32.mrf.mxu0
        %v1486 = vadd.f32 %v1367, %v1485
        %1487 = vmatmul.f32.gmra.mxu0 %v1437
        %v1488 = vpop.f32.mrf.mxu0
        %v1489 = vadd.f32 %v1367, %v1488
        %1490 = vdwg.mxu0
        %1491 = vmatpush.msra.mxu0 %v1364
        %1492 = vmatpush.msra.mxu0 %v1363
        %1493 = vmatpush.msra.mxu0 %v1362
        %1494 = vmatpush.msra.mxu0 %v1361
        %1495 = vmatpush.msra.mxu0 %v1360
        %1496 = vmatpush.msra.mxu0 %v1359
        %1497 = vmatpush.msra.mxu0 %v1358
        %1498 = vmatpush.msra.mxu0 %v1357
        %1499 = vmatpush.msra.mxu0 %v1356
        %1500 = vmatpush.msra.mxu0 %v1355
        %1501 = vmatpush.msra.mxu0 %v1354
        %1502 = vmatpush.msra.mxu0 %v1353
        %1503 = vmatpush.msra.mxu0 %v1352
        %1504 = vmatpush.msra.mxu0 %v1351
        %1505 = vmatpush.msra.mxu0 %v1350
        %1506 = vmatpush.msra.mxu0 %v1349
        %1507 = vmatmul.f32.gmra.mxu0 %v1385
        %v1508 = vpop.f32.mrf.mxu0
        %v1509 = vadd.f32 %v1471, %v1508
        %1510 = vmatmul.f32.gmra.mxu0 %v1395
        %v1511 = vpop.f32.mrf.mxu0
        %v1512 = vadd.f32 %v1474, %v1511
        %1513 = vmatmul.f32.gmra.mxu0 %v1405
        %v1514 = vpop.f32.mrf.mxu0
        %v1515 = vadd.f32 %v1477, %v1514
        %1516 = vmatmul.f32.gmra.mxu0 %v1415
        %v1517 = vpop.f32.mrf.mxu0
        %v1518 = vadd.f32 %v1480, %v1517
        %1519 = vmatmul.f32.gmra.mxu0 %v1425
        %v1520 = vpop.f32.mrf.mxu0
        %v1521 = vadd.f32 %v1483, %v1520
        %1522 = vmatmul.f32.gmra.mxu0 %v1435
        %v1523 = vpop.f32.mrf.mxu0
        %v1524 = vadd.f32 %v1486, %v1523
        %1525 = vmatmul.f32.gmra.mxu0 %v1438
        %v1526 = vpop.f32.mrf.mxu0
        %v1527 = vadd.f32 %v1489, %v1526
        %1528 = vdwg.mxu0
        %v1529 = vmax.f32 %v1509, 0.0
        %v1530 = vmax.f32 %v1512, 0.0
        %v1531 = vmax.f32 %v1515, 0.0
        %v1532 = vmax.f32 %v1518, 0.0
        %v1533 = vmax.f32 %v1521, 0.0
        %v1534 = vmax.f32 %v1524, 0.0
        %v1535 = vmax.f32 %v1527, 0.0
        %v1542 = vrot.slane %v1529, 1
        %v1543 = vrot.slane %v1529, 2
        %v1544 = vrot.slane %v1529, 3
        %v1545 = vrot.slane %v1529, 4
        %v1546 = vrot.slane %v1529, 5
        %v1547 = vrot.slane %v1529, 6
        %v1548 = vrot.slane %v1529, 7
        %v1549 = vrot.slane %v1530, 1
        %v1550 = vrot.slane %v1530, 2
        %v1551 = vrot.slane %v1530, 3
        %v1552 = vrot.slane %v1530, 4
        %v1553 = vrot.slane %v1530, 5
        %v1554 = vrot.slane %v1530, 6
        %v1555 = vrot.slane %v1530, 7
        %v1556 = vrot.slane %v1531, 1
        %v1557 = vrot.slane %v1531, 2
        %v1558 = vrot.slane %v1531, 3
        %v1559 = vrot.slane %v1531, 4
        %v1560 = vrot.slane %v1531, 5
        %v1561 = vrot.slane %v1531, 6
        %v1562 = vrot.slane %v1531, 7
        %v1563 = vrot.slane %v1532, 1
        %v1564 = vrot.slane %v1532, 2
        %v1565 = vrot.slane %v1532, 3
        %v1566 = vrot.slane %v1532, 4
        %v1567 = vrot.slane %v1532, 5
        %v1568 = vrot.slane %v1532, 6
        %v1569 = vrot.slane %v1532, 7
        %v1570 = vrot.slane %v1533, 1
        %v1571 = vrot.slane %v1533, 2
        %v1572 = vrot.slane %v1533, 3
        %v1573 = vrot.slane %v1533, 4
        %v1574 = vrot.slane %v1533, 5
        %v1575 = vrot.slane %v1533, 6
        %v1576 = vrot.slane %v1533, 7
        %v1577 = vrot.slane %v1534, 1
        %v1578 = vrot.slane %v1534, 2
        %v1579 = vrot.slane %v1534, 3
        %v1580 = vrot.slane %v1534, 4
        %v1581 = vrot.slane %v1534, 5
        %v1582 = vrot.slane %v1534, 6
        %v1583 = vrot.slane %v1534, 7
        %s1626 = scalar_lea.vmem %s5, 256
        %v1627 = vld [vmem:[%s1626] sm:$0xff]
        %v1628 = vld [vmem:[%s1626 + $0x8] sm:$0xff]
        %v1629 = vld [vmem:[%s1626 + $0x10] sm:$0xff]
        %v1630 = vld [vmem:[%s1626 + $0x18] sm:$0xff]
        %v1631 = vld [vmem:[%s1626 + $0x20] sm:$0xff]
        %v1632 = vld [vmem:[%s1626 + $0x28] sm:$0xff]
        %v1633 = vld [vmem:[%s1626 + $0x30] sm:$0xff]
        %v1634 = vld [vmem:[%s1626 + $0x38] sm:$0xff]
        %v1635 = vld [vmem:[%s1626 + $0x40] sm:$0xff]
        %v1636 = vld [vmem:[%s1626 + $0x48] sm:$0xff]
        %v1637 = vld [vmem:[%s1626 + $0x50] sm:$0xff]
        %v1638 = vld [vmem:[%s1626 + $0x58] sm:$0xff]
        %v1639 = vld [vmem:[%s1626 + $0x60] sm:$0xff]
        %v1640 = vld [vmem:[%s1626 + $0x68] sm:$0xff]
        %v1641 = vld [vmem:[%s1626 + $0x70] sm:$0xff]
        %v1642 = vld [vmem:[%s1626 + $0x78] sm:$0xff]
        %v1643 = vld [vmem:[%s1626 + $0x80] sm:$0xff]
        %v1644 = vld [vmem:[%s1626 + $0x88] sm:$0xff]
        %v1645 = vld [vmem:[%s1626 + $0x90] sm:$0xff]
        %v1646 = vld [vmem:[%s1626 + $0x98] sm:$0xff]
        %v1647 = vld [vmem:[%s1626 + $0xa0] sm:$0xff]
        %v1648 = vld [vmem:[%s1626 + $0xa8] sm:$0xff]
        %v1649 = vld [vmem:[%s1626 + $0xb0] sm:$0xff]
        %v1650 = vld [vmem:[%s1626 + $0xb8] sm:$0xff]
        %v1651 = vld [vmem:[%s1626 + $0xc0] sm:$0xff]
        %v1652 = vld [vmem:[%s1626 + $0xc8] sm:$0xff]
        %v1653 = vld [vmem:[%s1626 + $0xd0] sm:$0xff]
        %v1654 = vld [vmem:[%s1626 + $0xd8] sm:$0xff]
        %v1655 = vld [vmem:[%s1626 + $0xe0] sm:$0xff]
        %v1656 = vld [vmem:[%s1626 + $0xe8] sm:$0xff]
        %v1657 = vld [vmem:[%s1626 + $0xf0] sm:$0xff]
        %v1658 = vld [vmem:[%s1626 + $0xf8] sm:$0xff]
        %1659 = vst [vmem:[#allocation1] ss:$9 sm:$0xff] %v1236
        %s1660 = scalar_lea.vmem [#allocation1], 1
        %1661 = vst [vmem:[%s1660] ss:$9 sm:$0xff] %v1239
        %s1662 = scalar_lea.vmem [#allocation1], 2
        %1663 = vst [vmem:[%s1662] ss:$9 sm:$0xff] %v1242
        %s1664 = scalar_lea.vmem [#allocation1], 3
        %1665 = vst [vmem:[%s1664] ss:$9 sm:$0xff] %v1245
        %s1666 = scalar_lea.vmem [#allocation1], 4
        %1667 = vst [vmem:[%s1666] ss:$9 sm:$0xff] %v1248
        %s1668 = scalar_lea.vmem [#allocation1], 5
        %1669 = vst [vmem:[%s1668] ss:$9 sm:$0xff] %v1251
        %s1670 = scalar_lea.vmem [#allocation1], 6
        %1671 = vst [vmem:[%s1670] ss:$9 sm:$0xff] %v1254
        %s1672 = scalar_lea.vmem [#allocation1], 7
        %1673 = vst [vmem:[%s1672] ss:$9 sm:$0xff] %v1255
        %v1674 = vld [vmem:[#allocation1] sm:$0xff]
        %v1675 = vld [vmem:[#allocation1 + $0x9] sm:$0xff]
        %1676 = vst [vmem:[#allocation1] ss:$9 sm:$0xff] %v1257
        %1677 = vst [vmem:[%s1660] ss:$9 sm:$0xff] %v1259
        %1678 = vst [vmem:[%s1662] ss:$9 sm:$0xff] %v1261
        %1679 = vst [vmem:[%s1664] ss:$9 sm:$0xff] %v1263
        %1680 = vst [vmem:[%s1666] ss:$9 sm:$0xff] %v1265
        %1681 = vst [vmem:[%s1668] ss:$9 sm:$0xff] %v1267
        %1682 = vst [vmem:[%s1670] ss:$9 sm:$0xff] %v1268
        %1683 = vst [vmem:[%s1672] ss:$9 sm:$0xff] %v1270
        %v1684 = vld [vmem:[#allocation1] sm:$0xff]
        %v1685 = vld [vmem:[#allocation1 + $0x9] sm:$0xff]
        %1686 = vst [vmem:[#allocation1] ss:$9 sm:$0xff] %v1272
        %1687 = vst [vmem:[%s1660] ss:$9 sm:$0xff] %v1274
        %1688 = vst [vmem:[%s1662] ss:$9 sm:$0xff] %v1276
        %1689 = vst [vmem:[%s1664] ss:$9 sm:$0xff] %v1278
        %1690 = vst [vmem:[%s1666] ss:$9 sm:$0xff] %v1280
        %1691 = vst [vmem:[%s1668] ss:$9 sm:$0xff] %v1281
        %1692 = vst [vmem:[%s1670] ss:$9 sm:$0xff] %v1283
        %1693 = vst [vmem:[%s1672] ss:$9 sm:$0xff] %v1285
        %v1694 = vld [vmem:[#allocation1] sm:$0xff]
        %v1695 = vld [vmem:[#allocation1 + $0x9] sm:$0xff]
        %1696 = vst [vmem:[#allocation1] ss:$9 sm:$0xff] %v1287
        %1697 = vst [vmem:[%s1660] ss:$9 sm:$0xff] %v1289
        %1698 = vst [vmem:[%s1662] ss:$9 sm:$0xff] %v1291
        %1699 = vst [vmem:[%s1664] ss:$9 sm:$0xff] %v1293
        %1700 = vst [vmem:[%s1666] ss:$9 sm:$0xff] %v1294
        %1701 = vst [vmem:[%s1668] ss:$9 sm:$0xff] %v1296
        %1702 = vst [vmem:[%s1670] ss:$9 sm:$0xff] %v1298
        %1703 = vst [vmem:[%s1672] ss:$9 sm:$0xff] %v1300
        %v1704 = vld [vmem:[#allocation1] sm:$0xff]
        %v1705 = vld [vmem:[#allocation1 + $0x9] sm:$0xff]
        %1706 = vst [vmem:[#allocation1] ss:$9 sm:$0xff] %v1302
        %1707 = vst [vmem:[%s1660] ss:$9 sm:$0xff] %v1304
        %1708 = vst [vmem:[%s1662] ss:$9 sm:$0xff] %v1306
        %1709 = vst [vmem:[%s1664] ss:$9 sm:$0xff] %v1307
        %1710 = vst [vmem:[%s1666] ss:$9 sm:$0xff] %v1309
        %1711 = vst [vmem:[%s1668] ss:$9 sm:$0xff] %v1311
        %1712 = vst [vmem:[%s1670] ss:$9 sm:$0xff] %v1313
        %1713 = vst [vmem:[%s1672] ss:$9 sm:$0xff] %v1315
        %v1714 = vld [vmem:[#allocation1] sm:$0xff]
        %v1715 = vld [vmem:[#allocation1 + $0x9] sm:$0xff]
        %1716 = vst [vmem:[#allocation1] ss:$9 sm:$0xff] %v1317
        %1717 = vst [vmem:[%s1660] ss:$9 sm:$0xff] %v1319
        %1718 = vst [vmem:[%s1662] ss:$9 sm:$0xff] %v1320
        %1719 = vst [vmem:[%s1664] ss:$9 sm:$0xff] %v1322
        %1720 = vst [vmem:[%s1666] ss:$9 sm:$0xff] %v1324
        %1721 = vst [vmem:[%s1668] ss:$9 sm:$0xff] %v1326
        %1722 = vst [vmem:[%s1670] ss:$9 sm:$0xff] %v1328
        %1723 = vst [vmem:[%s1672] ss:$9 sm:$0xff] %v1330
        %v1724 = vld [vmem:[#allocation1] sm:$0xff]
        %v1725 = vld [vmem:[#allocation1 + $0x9] sm:$0xff]
        %1726 = vst [vmem:[#allocation1] ss:$9 sm:$0xff] %v1332
        %v1727 = vld [vmem:[#allocation1] sm:$0xff]
        %v1728 = vld [vmem:[#allocation1 + $0x9] sm:$0xff]
        %1743 = vmatpush.msra.mxu0 %v1642
        %1744 = vmatpush.msra.mxu0 %v1641
        %1745 = vmatpush.msra.mxu0 %v1640
        %1746 = vmatpush.msra.mxu0 %v1639
        %1747 = vmatpush.msra.mxu0 %v1638
        %1748 = vmatpush.msra.mxu0 %v1637
        %1749 = vmatpush.msra.mxu0 %v1636
        %1750 = vmatpush.msra.mxu0 %v1635
        %1751 = vmatpush.msra.mxu0 %v1634
        %1752 = vmatpush.msra.mxu0 %v1633
        %1753 = vmatpush.msra.mxu0 %v1632
        %1754 = vmatpush.msra.mxu0 %v1631
        %1755 = vmatpush.msra.mxu0 %v1630
        %1756 = vmatpush.msra.mxu0 %v1629
        %1757 = vmatpush.msra.mxu0 %v1628
        %1758 = vmatpush.msra.mxu0 %v1627
        %1759 = vmatmul.f32.gmra.mxu0 %v1674
        %v1760 = vpop.f32.mrf.mxu0
        %v1761 = vadd.f32 %v1367, %v1760
        %1762 = vmatmul.f32.gmra.mxu0 %v1684
        %v1763 = vpop.f32.mrf.mxu0
        %v1764 = vadd.f32 %v1367, %v1763
        %1765 = vmatmul.f32.gmra.mxu0 %v1694
        %v1766 = vpop.f32.mrf.mxu0
        %v1767 = vadd.f32 %v1367, %v1766
        %1768 = vmatmul.f32.gmra.mxu0 %v1704
        %v1769 = vpop.f32.mrf.mxu0
        %v1770 = vadd.f32 %v1367, %v1769
        %1771 = vmatmul.f32.gmra.mxu0 %v1714
        %v1772 = vpop.f32.mrf.mxu0
        %v1773 = vadd.f32 %v1367, %v1772
        %1774 = vmatmul.f32.gmra.mxu0 %v1724
        %v1775 = vpop.f32.mrf.mxu0
        %v1776 = vadd.f32 %v1367, %v1775
        %1777 = vmatmul.f32.gmra.mxu0 %v1727
        %v1778 = vpop.f32.mrf.mxu0
        %v1779 = vadd.f32 %v1367, %v1778
        %1780 = vdwg.mxu0
        %1781 = vmatpush.msra.mxu0 %v1658
        %1782 = vmatpush.msra.mxu0 %v1657
        %1783 = vmatpush.msra.mxu0 %v1656
        %1784 = vmatpush.msra.mxu0 %v1655
        %1785 = vmatpush.msra.mxu0 %v1654
        %1786 = vmatpush.msra.mxu0 %v1653
        %1787 = vmatpush.msra.mxu0 %v1652
        %1788 = vmatpush.msra.mxu0 %v1651
        %1789 = vmatpush.msra.mxu0 %v1650
        %1790 = vmatpush.msra.mxu0 %v1649
        %1791 = vmatpush.msra.mxu0 %v1648
        %1792 = vmatpush.msra.mxu0 %v1647
        %1793 = vmatpush.msra.mxu0 %v1646
        %1794 = vmatpush.msra.mxu0 %v1645
        %1795 = vmatpush.msra.mxu0 %v1644
        %1796 = vmatpush.msra.mxu0 %v1643
        %1797 = vmatmul.f32.gmra.mxu0 %v1675
        %v1798 = vpop.f32.mrf.mxu0
        %v1799 = vadd.f32 %v1761, %v1798
        %1800 = vmatmul.f32.gmra.mxu0 %v1685
        %v1801 = vpop.f32.mrf.mxu0
        %v1802 = vadd.f32 %v1764, %v1801
        %1803 = vmatmul.f32.gmra.mxu0 %v1695
        %v1804 = vpop.f32.mrf.mxu0
        %v1805 = vadd.f32 %v1767, %v1804
        %1806 = vmatmul.f32.gmra.mxu0 %v1705
        %v1807 = vpop.f32.mrf.mxu0
        %v1808 = vadd.f32 %v1770, %v1807
        %1809 = vmatmul.f32.gmra.mxu0 %v1715
        %v1810 = vpop.f32.mrf.mxu0
        %v1811 = vadd.f32 %v1773, %v1810
        %1812 = vmatmul.f32.gmra.mxu0 %v1725
        %v1813 = vpop.f32.mrf.mxu0
        %v1814 = vadd.f32 %v1776, %v1813
        %1815 = vmatmul.f32.gmra.mxu0 %v1728
        %v1816 = vpop.f32.mrf.mxu0
        %v1817 = vadd.f32 %v1779, %v1816
        %1818 = vdwg.mxu0
        %v1819 = vmax.f32 %v1799, 0.0
        %v1820 = vmax.f32 %v1802, 0.0
        %v1821 = vmax.f32 %v1805, 0.0
        %v1822 = vmax.f32 %v1808, 0.0
        %v1823 = vmax.f32 %v1811, 0.0
        %v1824 = vmax.f32 %v1814, 0.0
        %v1825 = vmax.f32 %v1817, 0.0
        %v1833 = vrot.slane %v1819, 1
        %v1834 = vrot.slane %v1819, 2
        %v1835 = vrot.slane %v1819, 3
        %v1836 = vrot.slane %v1819, 4
        %v1837 = vrot.slane %v1819, 5
        %v1838 = vrot.slane %v1819, 6
        %v1839 = vrot.slane %v1819, 7
        %v1840 = vrot.slane %v1820, 1
        %v1841 = vrot.slane %v1820, 2
        %v1842 = vrot.slane %v1820, 3
        %v1843 = vrot.slane %v1820, 4
        %v1844 = vrot.slane %v1820, 5
        %v1845 = vrot.slane %v1820, 6
        %v1846 = vrot.slane %v1820, 7
        %v1847 = vrot.slane %v1821, 1
        %v1848 = vrot.slane %v1821, 2
        %v1849 = vrot.slane %v1821, 3
        %v1850 = vrot.slane %v1821, 4
        %v1851 = vrot.slane %v1821, 5
        %v1852 = vrot.slane %v1821, 6
        %v1853 = vrot.slane %v1821, 7
        %v1854 = vrot.slane %v1822, 1
        %v1855 = vrot.slane %v1822, 2
        %v1856 = vrot.slane %v1822, 3
        %v1857 = vrot.slane %v1822, 4
        %v1858 = vrot.slane %v1822, 5
        %v1859 = vrot.slane %v1822, 6
        %v1860 = vrot.slane %v1822, 7
        %v1861 = vrot.slane %v1823, 1
        %v1862 = vrot.slane %v1823, 2
        %v1863 = vrot.slane %v1823, 3
        %v1864 = vrot.slane %v1823, 4
        %v1865 = vrot.slane %v1823, 5
        %v1866 = vrot.slane %v1823, 6
        %v1867 = vrot.slane %v1823, 7
        %v1868 = vrot.slane %v1824, 1
        %v1869 = vrot.slane %v1824, 2
        %v1870 = vrot.slane %v1824, 3
        %v1871 = vrot.slane %v1824, 4
        %v1872 = vrot.slane %v1824, 5
        %v1873 = vrot.slane %v1824, 6
        %v1874 = vrot.slane %v1824, 7
        %v1875 = vperm.slane %v1819, 0
        %v1876 = vperm.slane %v1833, 0
        %v1877 = vperm.slane %v1834, 0
        %v1878 = vperm.slane %v1835, 0
        %v1879 = vperm.slane %v1836, 0
        %v1880 = vperm.slane %v1837, 0
        %v1881 = vperm.slane %v1838, 0
        %v1882 = vperm.slane %v1839, 0
        %v1883 = vperm.slane %v1820, 0
        %v1884 = vperm.slane %v1840, 0
        %v1885 = vperm.slane %v1841, 0
        %v1886 = vperm.slane %v1842, 0
        %v1887 = vperm.slane %v1843, 0
        %v1888 = vperm.slane %v1844, 0
        %v1889 = vperm.slane %v1845, 0
        %v1890 = vperm.slane %v1846, 0
        %v1891 = vperm.slane %v1821, 0
        %v1892 = vperm.slane %v1847, 0
        %v1893 = vperm.slane %v1848, 0
        %v1894 = vperm.slane %v1849, 0
        %v1895 = vperm.slane %v1850, 0
        %v1896 = vperm.slane %v1851, 0
        %v1897 = vperm.slane %v1852, 0
        %v1898 = vperm.slane %v1853, 0
        %v1899 = vperm.slane %v1822, 0
        %v1900 = vperm.slane %v1854, 0
        %v1901 = vperm.slane %v1855, 0
        %v1902 = vperm.slane %v1856, 0
        %v1903 = vperm.slane %v1857, 0
        %v1904 = vperm.slane %v1858, 0
        %v1905 = vperm.slane %v1859, 0
        %v1906 = vperm.slane %v1860, 0
        %v1907 = vperm.slane %v1823, 0
        %v1908 = vperm.slane %v1861, 0
        %v1909 = vperm.slane %v1862, 0
        %v1910 = vperm.slane %v1863, 0
        %v1911 = vperm.slane %v1864, 0
        %v1912 = vperm.slane %v1865, 0
        %v1913 = vperm.slane %v1866, 0
        %v1914 = vperm.slane %v1867, 0
        %v1915 = vperm.slane %v1824, 0
        %v1916 = vperm.slane %v1868, 0
        %v1917 = vperm.slane %v1869, 0
        %v1918 = vperm.slane %v1870, 0
        %v1919 = vperm.slane %v1871, 0
        %v1920 = vperm.slane %v1872, 0
        %v1921 = vperm.slane %v1873, 0
        %v1922 = vperm.slane %v1874, 0
        %v1923 = vperm.slane %v1825, 0
        %v1973 = vsel %vm1164, %v1529, %v1875
        %v1974 = vsel %vm1164, %v1542, %v1876
        %v1975 = vsel %vm1164, %v1543, %v1877
        %v1976 = vsel %vm1164, %v1544, %v1878
        %v1977 = vsel %vm1164, %v1545, %v1879
        %v1978 = vsel %vm1164, %v1546, %v1880
        %v1979 = vsel %vm1164, %v1547, %v1881
        %v1980 = vsel %vm1164, %v1548, %v1882
        %v1981 = vsel %vm1164, %v1530, %v1883
        %v1982 = vsel %vm1164, %v1549, %v1884
        %v1983 = vsel %vm1164, %v1550, %v1885
        %v1984 = vsel %vm1164, %v1551, %v1886
        %v1985 = vsel %vm1164, %v1552, %v1887
        %v1986 = vsel %vm1164, %v1553, %v1888
        %v1987 = vsel %vm1164, %v1554, %v1889
        %v1988 = vsel %vm1164, %v1555, %v1890
        %v1989 = vsel %vm1164, %v1531, %v1891
        %v1990 = vsel %vm1164, %v1556, %v1892
        %v1991 = vsel %vm1164, %v1557, %v1893
        %v1992 = vsel %vm1164, %v1558, %v1894
        %v1993 = vsel %vm1164, %v1559, %v1895
        %v1994 = vsel %vm1164, %v1560, %v1896
        %v1995 = vsel %vm1164, %v1561, %v1897
        %v1996 = vsel %vm1164, %v1562, %v1898
        %v1997 = vsel %vm1164, %v1532, %v1899
        %v1998 = vsel %vm1164, %v1563, %v1900
        %v1999 = vsel %vm1164, %v1564, %v1901
        %v2000 = vsel %vm1164, %v1565, %v1902
        %v2001 = vsel %vm1164, %v1566, %v1903
        %v2002 = vsel %vm1164, %v1567, %v1904
        %v2003 = vsel %vm1164, %v1568, %v1905
        %v2004 = vsel %vm1164, %v1569, %v1906
        %v2005 = vsel %vm1164, %v1533, %v1907
        %v2006 = vsel %vm1164, %v1570, %v1908
        %v2007 = vsel %vm1164, %v1571, %v1909
        %v2008 = vsel %vm1164, %v1572, %v1910
        %v2009 = vsel %vm1164, %v1573, %v1911
        %v2010 = vsel %vm1164, %v1574, %v1912
        %v2011 = vsel %vm1164, %v1575, %v1913
        %v2012 = vsel %vm1164, %v1576, %v1914
        %v2013 = vsel %vm1164, %v1534, %v1915
        %v2014 = vsel %vm1164, %v1577, %v1916
        %v2015 = vsel %vm1164, %v1578, %v1917
        %v2016 = vsel %vm1164, %v1579, %v1918
        %v2017 = vsel %vm1164, %v1580, %v1919
        %v2018 = vsel %vm1164, %v1581, %v1920
        %v2019 = vsel %vm1164, %v1582, %v1921
        %v2020 = vsel %vm1164, %v1583, %v1922
        %v2021 = vsel %vm1164, %v1535, %v1923
        %s2022 = scalar_lea.vmem %s5, 512
        %v2023 = vld [vmem:[%s2022] sm:$0xff]
        %v2024 = vld [vmem:[%s2022 + $0x8] sm:$0xff]
        %v2025 = vld [vmem:[%s2022 + $0x10] sm:$0xff]
        %v2026 = vld [vmem:[%s2022 + $0x18] sm:$0xff]
        %v2027 = vld [vmem:[%s2022 + $0x20] sm:$0xff]
        %v2028 = vld [vmem:[%s2022 + $0x28] sm:$0xff]
        %v2029 = vld [vmem:[%s2022 + $0x30] sm:$0xff]
        %v2030 = vld [vmem:[%s2022 + $0x38] sm:$0xff]
        %v2031 = vld [vmem:[%s2022 + $0x40] sm:$0xff]
        %v2032 = vld [vmem:[%s2022 + $0x48] sm:$0xff]
        %v2033 = vld [vmem:[%s2022 + $0x50] sm:$0xff]
        %v2034 = vld [vmem:[%s2022 + $0x58] sm:$0xff]
        %v2035 = vld [vmem:[%s2022 + $0x60] sm:$0xff]
        %v2036 = vld [vmem:[%s2022 + $0x68] sm:$0xff]
        %v2037 = vld [vmem:[%s2022 + $0x70] sm:$0xff]
        %v2038 = vld [vmem:[%s2022 + $0x78] sm:$0xff]
        %v2039 = vld [vmem:[%s2022 + $0x80] sm:$0xff]
        %v2040 = vld [vmem:[%s2022 + $0x88] sm:$0xff]
        %v2041 = vld [vmem:[%s2022 + $0x90] sm:$0xff]
        %v2042 = vld [vmem:[%s2022 + $0x98] sm:$0xff]
        %v2043 = vld [vmem:[%s2022 + $0xa0] sm:$0xff]
        %v2044 = vld [vmem:[%s2022 + $0xa8] sm:$0xff]
        %v2045 = vld [vmem:[%s2022 + $0xb0] sm:$0xff]
        %v2046 = vld [vmem:[%s2022 + $0xb8] sm:$0xff]
        %v2047 = vld [vmem:[%s2022 + $0xc0] sm:$0xff]
        %v2048 = vld [vmem:[%s2022 + $0xc8] sm:$0xff]
        %v2049 = vld [vmem:[%s2022 + $0xd0] sm:$0xff]
        %v2050 = vld [vmem:[%s2022 + $0xd8] sm:$0xff]
        %v2051 = vld [vmem:[%s2022 + $0xe0] sm:$0xff]
        %v2052 = vld [vmem:[%s2022 + $0xe8] sm:$0xff]
        %v2053 = vld [vmem:[%s2022 + $0xf0] sm:$0xff]
        %v2054 = vld [vmem:[%s2022 + $0xf8] sm:$0xff]
        %2055 = vst [vmem:[#allocation1] ss:$9 sm:$0xff] %v1236
        %s2056 = scalar_lea.vmem [#allocation1], 1
        %2057 = vst [vmem:[%s2056] ss:$9 sm:$0xff] %v1239
        %s2058 = scalar_lea.vmem [#allocation1], 2
        %2059 = vst [vmem:[%s2058] ss:$9 sm:$0xff] %v1242
        %s2060 = scalar_lea.vmem [#allocation1], 3
        %2061 = vst [vmem:[%s2060] ss:$9 sm:$0xff] %v1245
        %s2062 = scalar_lea.vmem [#allocation1], 4
        %2063 = vst [vmem:[%s2062] ss:$9 sm:$0xff] %v1248
        %s2064 = scalar_lea.vmem [#allocation1], 5
        %2065 = vst [vmem:[%s2064] ss:$9 sm:$0xff] %v1251
        %s2066 = scalar_lea.vmem [#allocation1], 6
        %2067 = vst [vmem:[%s2066] ss:$9 sm:$0xff] %v1254
        %s2068 = scalar_lea.vmem [#allocation1], 7
        %2069 = vst [vmem:[%s2068] ss:$9 sm:$0xff] %v1255
        %v2070 = vld [vmem:[#allocation1] sm:$0xff]
        %v2071 = vld [vmem:[#allocation1 + $0x9] sm:$0xff]
        %2072 = vst [vmem:[#allocation1] ss:$9 sm:$0xff] %v1257
        %2073 = vst [vmem:[%s2056] ss:$9 sm:$0xff] %v1259
        %2074 = vst [vmem:[%s2058] ss:$9 sm:$0xff] %v1261
        %2075 = vst [vmem:[%s2060] ss:$9 sm:$0xff] %v1263
        %2076 = vst [vmem:[%s2062] ss:$9 sm:$0xff] %v1265
        %2077 = vst [vmem:[%s2064] ss:$9 sm:$0xff] %v1267
        %2078 = vst [vmem:[%s2066] ss:$9 sm:$0xff] %v1268
        %2079 = vst [vmem:[%s2068] ss:$9 sm:$0xff] %v1270
        %v2080 = vld [vmem:[#allocation1] sm:$0xff]
        %v2081 = vld [vmem:[#allocation1 + $0x9] sm:$0xff]
        %2082 = vst [vmem:[#allocation1] ss:$9 sm:$0xff] %v1272
        %2083 = vst [vmem:[%s2056] ss:$9 sm:$0xff] %v1274
        %2084 = vst [vmem:[%s2058] ss:$9 sm:$0xff] %v1276
        %2085 = vst [vmem:[%s2060] ss:$9 sm:$0xff] %v1278
        %2086 = vst [vmem:[%s2062] ss:$9 sm:$0xff] %v1280
        %2087 = vst [vmem:[%s2064] ss:$9 sm:$0xff] %v1281
        %2088 = vst [vmem:[%s2066] ss:$9 sm:$0xff] %v1283
        %2089 = vst [vmem:[%s2068] ss:$9 sm:$0xff] %v1285
        %v2090 = vld [vmem:[#allocation1] sm:$0xff]
        %v2091 = vld [vmem:[#allocation1 + $0x9] sm:$0xff]
        %2092 = vst [vmem:[#allocation1] ss:$9 sm:$0xff] %v1287
        %2093 = vst [vmem:[%s2056] ss:$9 sm:$0xff] %v1289
        %2094 = vst [vmem:[%s2058] ss:$9 sm:$0xff] %v1291
        %2095 = vst [vmem:[%s2060] ss:$9 sm:$0xff] %v1293
        %2096 = vst [vmem:[%s2062] ss:$9 sm:$0xff] %v1294
        %2097 = vst [vmem:[%s2064] ss:$9 sm:$0xff] %v1296
        %2098 = vst [vmem:[%s2066] ss:$9 sm:$0xff] %v1298
        %2099 = vst [vmem:[%s2068] ss:$9 sm:$0xff] %v1300
        %v2100 = vld [vmem:[#allocation1] sm:$0xff]
        %v2101 = vld [vmem:[#allocation1 + $0x9] sm:$0xff]
        %2102 = vst [vmem:[#allocation1] ss:$9 sm:$0xff] %v1302
        %2103 = vst [vmem:[%s2056] ss:$9 sm:$0xff] %v1304
        %2104 = vst [vmem:[%s2058] ss:$9 sm:$0xff] %v1306
        %2105 = vst [vmem:[%s2060] ss:$9 sm:$0xff] %v1307
        %2106 = vst [vmem:[%s2062] ss:$9 sm:$0xff] %v1309
        %2107 = vst [vmem:[%s2064] ss:$9 sm:$0xff] %v1311
        %2108 = vst [vmem:[%s2066] ss:$9 sm:$0xff] %v1313
        %2109 = vst [vmem:[%s2068] ss:$9 sm:$0xff] %v1315
        %v2110 = vld [vmem:[#allocation1] sm:$0xff]
        %v2111 = vld [vmem:[#allocation1 + $0x9] sm:$0xff]
        %2112 = vst [vmem:[#allocation1] ss:$9 sm:$0xff] %v1317
        %2113 = vst [vmem:[%s2056] ss:$9 sm:$0xff] %v1319
        %2114 = vst [vmem:[%s2058] ss:$9 sm:$0xff] %v1320
        %2115 = vst [vmem:[%s2060] ss:$9 sm:$0xff] %v1322
        %2116 = vst [vmem:[%s2062] ss:$9 sm:$0xff] %v1324
        %2117 = vst [vmem:[%s2064] ss:$9 sm:$0xff] %v1326
        %2118 = vst [vmem:[%s2066] ss:$9 sm:$0xff] %v1328
        %2119 = vst [vmem:[%s2068] ss:$9 sm:$0xff] %v1330
        %v2120 = vld [vmem:[#allocation1] sm:$0xff]
        %v2121 = vld [vmem:[#allocation1 + $0x9] sm:$0xff]
        %2122 = vst [vmem:[#allocation1] ss:$9 sm:$0xff] %v1332
        %v2123 = vld [vmem:[#allocation1] sm:$0xff]
        %v2124 = vld [vmem:[#allocation1 + $0x9] sm:$0xff]
        %2139 = vmatpush.msra.mxu0 %v2038
        %2140 = vmatpush.msra.mxu0 %v2037
        %2141 = vmatpush.msra.mxu0 %v2036
        %2142 = vmatpush.msra.mxu0 %v2035
        %2143 = vmatpush.msra.mxu0 %v2034
        %2144 = vmatpush.msra.mxu0 %v2033
        %2145 = vmatpush.msra.mxu0 %v2032
        %2146 = vmatpush.msra.mxu0 %v2031
        %2147 = vmatpush.msra.mxu0 %v2030
        %2148 = vmatpush.msra.mxu0 %v2029
        %2149 = vmatpush.msra.mxu0 %v2028
        %2150 = vmatpush.msra.mxu0 %v2027
        %2151 = vmatpush.msra.mxu0 %v2026
        %2152 = vmatpush.msra.mxu0 %v2025
        %2153 = vmatpush.msra.mxu0 %v2024
        %2154 = vmatpush.msra.mxu0 %v2023
        %2155 = vmatmul.f32.gmra.mxu0 %v2070
        %v2156 = vpop.f32.mrf.mxu0
        %v2157 = vadd.f32 %v1367, %v2156
        %2158 = vmatmul.f32.gmra.mxu0 %v2080
        %v2159 = vpop.f32.mrf.mxu0
        %v2160 = vadd.f32 %v1367, %v2159
        %2161 = vmatmul.f32.gmra.mxu0 %v2090
        %v2162 = vpop.f32.mrf.mxu0
        %v2163 = vadd.f32 %v1367, %v2162
        %2164 = vmatmul.f32.gmra.mxu0 %v2100
        %v2165 = vpop.f32.mrf.mxu0
        %v2166 = vadd.f32 %v1367, %v2165
        %2167 = vmatmul.f32.gmra.mxu0 %v2110
        %v2168 = vpop.f32.mrf.mxu0
        %v2169 = vadd.f32 %v1367, %v2168
        %2170 = vmatmul.f32.gmra.mxu0 %v2120
        %v2171 = vpop.f32.mrf.mxu0
        %v2172 = vadd.f32 %v1367, %v2171
        %2173 = vmatmul.f32.gmra.mxu0 %v2123
        %v2174 = vpop.f32.mrf.mxu0
        %v2175 = vadd.f32 %v1367, %v2174
        %2176 = vdwg.mxu0
        %2177 = vmatpush.msra.mxu0 %v2054
        %2178 = vmatpush.msra.mxu0 %v2053
        %2179 = vmatpush.msra.mxu0 %v2052
        %2180 = vmatpush.msra.mxu0 %v2051
        %2181 = vmatpush.msra.mxu0 %v2050
        %2182 = vmatpush.msra.mxu0 %v2049
        %2183 = vmatpush.msra.mxu0 %v2048
        %2184 = vmatpush.msra.mxu0 %v2047
        %2185 = vmatpush.msra.mxu0 %v2046
        %2186 = vmatpush.msra.mxu0 %v2045
        %2187 = vmatpush.msra.mxu0 %v2044
        %2188 = vmatpush.msra.mxu0 %v2043
        %2189 = vmatpush.msra.mxu0 %v2042
        %2190 = vmatpush.msra.mxu0 %v2041
        %2191 = vmatpush.msra.mxu0 %v2040
        %2192 = vmatpush.msra.mxu0 %v2039
        %2193 = vmatmul.f32.gmra.mxu0 %v2071
        %v2194 = vpop.f32.mrf.mxu0
        %v2195 = vadd.f32 %v2157, %v2194
        %2196 = vmatmul.f32.gmra.mxu0 %v2081
        %v2197 = vpop.f32.mrf.mxu0
        %v2198 = vadd.f32 %v2160, %v2197
        %2199 = vmatmul.f32.gmra.mxu0 %v2091
        %v2200 = vpop.f32.mrf.mxu0
        %v2201 = vadd.f32 %v2163, %v2200
        %2202 = vmatmul.f32.gmra.mxu0 %v2101
        %v2203 = vpop.f32.mrf.mxu0
        %v2204 = vadd.f32 %v2166, %v2203
        %2205 = vmatmul.f32.gmra.mxu0 %v2111
        %v2206 = vpop.f32.mrf.mxu0
        %v2207 = vadd.f32 %v2169, %v2206
        %2208 = vmatmul.f32.gmra.mxu0 %v2121
        %v2209 = vpop.f32.mrf.mxu0
        %v2210 = vadd.f32 %v2172, %v2209
        %2211 = vmatmul.f32.gmra.mxu0 %v2124
        %v2212 = vpop.f32.mrf.mxu0
        %v2213 = vadd.f32 %v2175, %v2212
        %2214 = vdwg.mxu0
        %v2215 = vmax.f32 %v2195, 0.0
        %v2216 = vmax.f32 %v2198, 0.0
        %v2217 = vmax.f32 %v2201, 0.0
        %v2218 = vmax.f32 %v2204, 0.0
        %v2219 = vmax.f32 %v2207, 0.0
        %v2220 = vmax.f32 %v2210, 0.0
        %v2221 = vmax.f32 %v2213, 0.0
        %v2228 = vrot.slane %v2215, 1
        %v2229 = vrot.slane %v2215, 2
        %v2230 = vrot.slane %v2215, 3
        %v2231 = vrot.slane %v2215, 4
        %v2232 = vrot.slane %v2215, 5
        %v2233 = vrot.slane %v2215, 6
        %v2234 = vrot.slane %v2215, 7
        %v2235 = vrot.slane %v2216, 1
        %v2236 = vrot.slane %v2216, 2
        %v2237 = vrot.slane %v2216, 3
        %v2238 = vrot.slane %v2216, 4
        %v2239 = vrot.slane %v2216, 5
        %v2240 = vrot.slane %v2216, 6
        %v2241 = vrot.slane %v2216, 7
        %v2242 = vrot.slane %v2217, 1
        %v2243 = vrot.slane %v2217, 2
        %v2244 = vrot.slane %v2217, 3
        %v2245 = vrot.slane %v2217, 4
        %v2246 = vrot.slane %v2217, 5
        %v2247 = vrot.slane %v2217, 6
        %v2248 = vrot.slane %v2217, 7
        %v2249 = vrot.slane %v2218, 1
        %v2250 = vrot.slane %v2218, 2
        %v2251 = vrot.slane %v2218, 3
        %v2252 = vrot.slane %v2218, 4
        %v2253 = vrot.slane %v2218, 5
        %v2254 = vrot.slane %v2218, 6
        %v2255 = vrot.slane %v2218, 7
        %v2256 = vrot.slane %v2219, 1
        %v2257 = vrot.slane %v2219, 2
        %v2258 = vrot.slane %v2219, 3
        %v2259 = vrot.slane %v2219, 4
        %v2260 = vrot.slane %v2219, 5
        %v2261 = vrot.slane %v2219, 6
        %v2262 = vrot.slane %v2219, 7
        %v2263 = vrot.slane %v2220, 1
        %v2264 = vrot.slane %v2220, 2
        %v2265 = vrot.slane %v2220, 3
        %v2266 = vrot.slane %v2220, 4
        %v2267 = vrot.slane %v2220, 5
        %v2268 = vrot.slane %v2220, 6
        %v2269 = vrot.slane %v2220, 7
        %s2312 = scalar_lea.vmem %s5, 768
        %v2313 = vld [vmem:[%s2312] sm:$0xff]
        %v2314 = vld [vmem:[%s2312 + $0x8] sm:$0xff]
        %v2315 = vld [vmem:[%s2312 + $0x10] sm:$0xff]
        %v2316 = vld [vmem:[%s2312 + $0x18] sm:$0xff]
        %v2317 = vld [vmem:[%s2312 + $0x20] sm:$0xff]
        %v2318 = vld [vmem:[%s2312 + $0x28] sm:$0xff]
        %v2319 = vld [vmem:[%s2312 + $0x30] sm:$0xff]
        %v2320 = vld [vmem:[%s2312 + $0x38] sm:$0xff]
        %v2321 = vld [vmem:[%s2312 + $0x40] sm:$0xff]
        %v2322 = vld [vmem:[%s2312 + $0x48] sm:$0xff]
        %v2323 = vld [vmem:[%s2312 + $0x50] sm:$0xff]
        %v2324 = vld [vmem:[%s2312 + $0x58] sm:$0xff]
        %v2325 = vld [vmem:[%s2312 + $0x60] sm:$0xff]
        %v2326 = vld [vmem:[%s2312 + $0x68] sm:$0xff]
        %v2327 = vld [vmem:[%s2312 + $0x70] sm:$0xff]
        %v2328 = vld [vmem:[%s2312 + $0x78] sm:$0xff]
        %v2329 = vld [vmem:[%s2312 + $0x80] sm:$0xff]
        %v2330 = vld [vmem:[%s2312 + $0x88] sm:$0xff]
        %v2331 = vld [vmem:[%s2312 + $0x90] sm:$0xff]
        %v2332 = vld [vmem:[%s2312 + $0x98] sm:$0xff]
        %v2333 = vld [vmem:[%s2312 + $0xa0] sm:$0xff]
        %v2334 = vld [vmem:[%s2312 + $0xa8] sm:$0xff]
        %v2335 = vld [vmem:[%s2312 + $0xb0] sm:$0xff]
        %v2336 = vld [vmem:[%s2312 + $0xb8] sm:$0xff]
        %v2337 = vld [vmem:[%s2312 + $0xc0] sm:$0xff]
        %v2338 = vld [vmem:[%s2312 + $0xc8] sm:$0xff]
        %v2339 = vld [vmem:[%s2312 + $0xd0] sm:$0xff]
        %v2340 = vld [vmem:[%s2312 + $0xd8] sm:$0xff]
        %v2341 = vld [vmem:[%s2312 + $0xe0] sm:$0xff]
        %v2342 = vld [vmem:[%s2312 + $0xe8] sm:$0xff]
        %v2343 = vld [vmem:[%s2312 + $0xf0] sm:$0xff]
        %v2344 = vld [vmem:[%s2312 + $0xf8] sm:$0xff]
        %2345 = vst [vmem:[#allocation1] ss:$9 sm:$0xff] %v1236
        %s2346 = scalar_lea.vmem [#allocation1], 1
        %2347 = vst [vmem:[%s2346] ss:$9 sm:$0xff] %v1239
        %s2348 = scalar_lea.vmem [#allocation1], 2
        %2349 = vst [vmem:[%s2348] ss:$9 sm:$0xff] %v1242
        %s2350 = scalar_lea.vmem [#allocation1], 3
        %2351 = vst [vmem:[%s2350] ss:$9 sm:$0xff] %v1245
        %s2352 = scalar_lea.vmem [#allocation1], 4
        %2353 = vst [vmem:[%s2352] ss:$9 sm:$0xff] %v1248
        %s2354 = scalar_lea.vmem [#allocation1], 5
        %2355 = vst [vmem:[%s2354] ss:$9 sm:$0xff] %v1251
        %s2356 = scalar_lea.vmem [#allocation1], 6
        %2357 = vst [vmem:[%s2356] ss:$9 sm:$0xff] %v1254
        %s2358 = scalar_lea.vmem [#allocation1], 7
        %2359 = vst [vmem:[%s2358] ss:$9 sm:$0xff] %v1255
        %v2360 = vld [vmem:[#allocation1] sm:$0xff]
        %v2361 = vld [vmem:[#allocation1 + $0x9] sm:$0xff]
        %2362 = vst [vmem:[#allocation1] ss:$9 sm:$0xff] %v1257
        %2363 = vst [vmem:[%s2346] ss:$9 sm:$0xff] %v1259
        %2364 = vst [vmem:[%s2348] ss:$9 sm:$0xff] %v1261
        %2365 = vst [vmem:[%s2350] ss:$9 sm:$0xff] %v1263
        %2366 = vst [vmem:[%s2352] ss:$9 sm:$0xff] %v1265
        %2367 = vst [vmem:[%s2354] ss:$9 sm:$0xff] %v1267
        %2368 = vst [vmem:[%s2356] ss:$9 sm:$0xff] %v1268
        %2369 = vst [vmem:[%s2358] ss:$9 sm:$0xff] %v1270
        %v2370 = vld [vmem:[#allocation1] sm:$0xff]
        %v2371 = vld [vmem:[#allocation1 + $0x9] sm:$0xff]
        %2372 = vst [vmem:[#allocation1] ss:$9 sm:$0xff] %v1272
        %2373 = vst [vmem:[%s2346] ss:$9 sm:$0xff] %v1274
        %2374 = vst [vmem:[%s2348] ss:$9 sm:$0xff] %v1276
        %2375 = vst [vmem:[%s2350] ss:$9 sm:$0xff] %v1278
        %2376 = vst [vmem:[%s2352] ss:$9 sm:$0xff] %v1280
        %2377 = vst [vmem:[%s2354] ss:$9 sm:$0xff] %v1281
        %2378 = vst [vmem:[%s2356] ss:$9 sm:$0xff] %v1283
        %2379 = vst [vmem:[%s2358] ss:$9 sm:$0xff] %v1285
        %v2380 = vld [vmem:[#allocation1] sm:$0xff]
        %v2381 = vld [vmem:[#allocation1 + $0x9] sm:$0xff]
        %2382 = vst [vmem:[#allocation1] ss:$9 sm:$0xff] %v1287
        %2383 = vst [vmem:[%s2346] ss:$9 sm:$0xff] %v1289
        %2384 = vst [vmem:[%s2348] ss:$9 sm:$0xff] %v1291
        %2385 = vst [vmem:[%s2350] ss:$9 sm:$0xff] %v1293
        %2386 = vst [vmem:[%s2352] ss:$9 sm:$0xff] %v1294
        %2387 = vst [vmem:[%s2354] ss:$9 sm:$0xff] %v1296
        %2388 = vst [vmem:[%s2356] ss:$9 sm:$0xff] %v1298
        %2389 = vst [vmem:[%s2358] ss:$9 sm:$0xff] %v1300
        %v2390 = vld [vmem:[#allocation1] sm:$0xff]
        %v2391 = vld [vmem:[#allocation1 + $0x9] sm:$0xff]
        %2392 = vst [vmem:[#allocation1] ss:$9 sm:$0xff] %v1302
        %2393 = vst [vmem:[%s2346] ss:$9 sm:$0xff] %v1304
        %2394 = vst [vmem:[%s2348] ss:$9 sm:$0xff] %v1306
        %2395 = vst [vmem:[%s2350] ss:$9 sm:$0xff] %v1307
        %2396 = vst [vmem:[%s2352] ss:$9 sm:$0xff] %v1309
        %2397 = vst [vmem:[%s2354] ss:$9 sm:$0xff] %v1311
        %2398 = vst [vmem:[%s2356] ss:$9 sm:$0xff] %v1313
        %2399 = vst [vmem:[%s2358] ss:$9 sm:$0xff] %v1315
        %v2400 = vld [vmem:[#allocation1] sm:$0xff]
        %v2401 = vld [vmem:[#allocation1 + $0x9] sm:$0xff]
        %2402 = vst [vmem:[#allocation1] ss:$9 sm:$0xff] %v1317
        %2403 = vst [vmem:[%s2346] ss:$9 sm:$0xff] %v1319
        %2404 = vst [vmem:[%s2348] ss:$9 sm:$0xff] %v1320
        %2405 = vst [vmem:[%s2350] ss:$9 sm:$0xff] %v1322
        %2406 = vst [vmem:[%s2352] ss:$9 sm:$0xff] %v1324
        %2407 = vst [vmem:[%s2354] ss:$9 sm:$0xff] %v1326
        %2408 = vst [vmem:[%s2356] ss:$9 sm:$0xff] %v1328
        %2409 = vst [vmem:[%s2358] ss:$9 sm:$0xff] %v1330
        %v2410 = vld [vmem:[#allocation1] sm:$0xff]
        %v2411 = vld [vmem:[#allocation1 + $0x9] sm:$0xff]
        %2412 = vst [vmem:[#allocation1] ss:$9 sm:$0xff] %v1332
        %v2413 = vld [vmem:[#allocation1] sm:$0xff]
        %v2414 = vld [vmem:[#allocation1 + $0x9] sm:$0xff]
        %2429 = vmatpush.msra.mxu0 %v2328
        %2430 = vmatpush.msra.mxu0 %v2327
        %2431 = vmatpush.msra.mxu0 %v2326
        %2432 = vmatpush.msra.mxu0 %v2325
        %2433 = vmatpush.msra.mxu0 %v2324
        %2434 = vmatpush.msra.mxu0 %v2323
        %2435 = vmatpush.msra.mxu0 %v2322
        %2436 = vmatpush.msra.mxu0 %v2321
        %2437 = vmatpush.msra.mxu0 %v2320
        %2438 = vmatpush.msra.mxu0 %v2319
        %2439 = vmatpush.msra.mxu0 %v2318
        %2440 = vmatpush.msra.mxu0 %v2317
        %2441 = vmatpush.msra.mxu0 %v2316
        %2442 = vmatpush.msra.mxu0 %v2315
        %2443 = vmatpush.msra.mxu0 %v2314
        %2444 = vmatpush.msra.mxu0 %v2313
        %2445 = vmatmul.f32.gmra.mxu0 %v2360
        %v2446 = vpop.f32.mrf.mxu0
        %v2447 = vadd.f32 %v1367, %v2446
        %2448 = vmatmul.f32.gmra.mxu0 %v2370
        %v2449 = vpop.f32.mrf.mxu0
        %v2450 = vadd.f32 %v1367, %v2449
        %2451 = vmatmul.f32.gmra.mxu0 %v2380
        %v2452 = vpop.f32.mrf.mxu0
        %v2453 = vadd.f32 %v1367, %v2452
        %2454 = vmatmul.f32.gmra.mxu0 %v2390
        %v2455 = vpop.f32.mrf.mxu0
        %v2456 = vadd.f32 %v1367, %v2455
        %2457 = vmatmul.f32.gmra.mxu0 %v2400
        %v2458 = vpop.f32.mrf.mxu0
        %v2459 = vadd.f32 %v1367, %v2458
        %2460 = vmatmul.f32.gmra.mxu0 %v2410
        %v2461 = vpop.f32.mrf.mxu0
        %v2462 = vadd.f32 %v1367, %v2461
        %2463 = vmatmul.f32.gmra.mxu0 %v2413
        %v2464 = vpop.f32.mrf.mxu0
        %v2465 = vadd.f32 %v1367, %v2464
        %2466 = vdwg.mxu0
        %2467 = vmatpush.msra.mxu0 %v2344
        %2468 = vmatpush.msra.mxu0 %v2343
        %2469 = vmatpush.msra.mxu0 %v2342
        %2470 = vmatpush.msra.mxu0 %v2341
        %2471 = vmatpush.msra.mxu0 %v2340
        %2472 = vmatpush.msra.mxu0 %v2339
        %2473 = vmatpush.msra.mxu0 %v2338
        %2474 = vmatpush.msra.mxu0 %v2337
        %2475 = vmatpush.msra.mxu0 %v2336
        %2476 = vmatpush.msra.mxu0 %v2335
        %2477 = vmatpush.msra.mxu0 %v2334
        %2478 = vmatpush.msra.mxu0 %v2333
        %2479 = vmatpush.msra.mxu0 %v2332
        %2480 = vmatpush.msra.mxu0 %v2331
        %2481 = vmatpush.msra.mxu0 %v2330
        %2482 = vmatpush.msra.mxu0 %v2329
        %2483 = vmatmul.f32.gmra.mxu0 %v2361
        %v2484 = vpop.f32.mrf.mxu0
        %v2485 = vadd.f32 %v2447, %v2484
        %2486 = vmatmul.f32.gmra.mxu0 %v2371
        %v2487 = vpop.f32.mrf.mxu0
        %v2488 = vadd.f32 %v2450, %v2487
        %2489 = vmatmul.f32.gmra.mxu0 %v2381
        %v2490 = vpop.f32.mrf.mxu0
        %v2491 = vadd.f32 %v2453, %v2490
        %2492 = vmatmul.f32.gmra.mxu0 %v2391
        %v2493 = vpop.f32.mrf.mxu0
        %v2494 = vadd.f32 %v2456, %v2493
        %2495 = vmatmul.f32.gmra.mxu0 %v2401
        %v2496 = vpop.f32.mrf.mxu0
        %v2497 = vadd.f32 %v2459, %v2496
        %2498 = vmatmul.f32.gmra.mxu0 %v2411
        %v2499 = vpop.f32.mrf.mxu0
        %v2500 = vadd.f32 %v2462, %v2499
        %2501 = vmatmul.f32.gmra.mxu0 %v2414
        %v2502 = vpop.f32.mrf.mxu0
        %v2503 = vadd.f32 %v2465, %v2502
        %2504 = vdwg.mxu0
        %v2505 = vmax.f32 %v2485, 0.0
        %v2506 = vmax.f32 %v2488, 0.0
        %v2507 = vmax.f32 %v2491, 0.0
        %v2508 = vmax.f32 %v2494, 0.0
        %v2509 = vmax.f32 %v2497, 0.0
        %v2510 = vmax.f32 %v2500, 0.0
        %v2511 = vmax.f32 %v2503, 0.0
        %v2519 = vrot.slane %v2505, 1
        %v2520 = vrot.slane %v2505, 2
        %v2521 = vrot.slane %v2505, 3
        %v2522 = vrot.slane %v2505, 4
        %v2523 = vrot.slane %v2505, 5
        %v2524 = vrot.slane %v2505, 6
        %v2525 = vrot.slane %v2505, 7
        %v2526 = vrot.slane %v2506, 1
        %v2527 = vrot.slane %v2506, 2
        %v2528 = vrot.slane %v2506, 3
        %v2529 = vrot.slane %v2506, 4
        %v2530 = vrot.slane %v2506, 5
        %v2531 = vrot.slane %v2506, 6
        %v2532 = vrot.slane %v2506, 7
        %v2533 = vrot.slane %v2507, 1
        %v2534 = vrot.slane %v2507, 2
        %v2535 = vrot.slane %v2507, 3
        %v2536 = vrot.slane %v2507, 4
        %v2537 = vrot.slane %v2507, 5
        %v2538 = vrot.slane %v2507, 6
        %v2539 = vrot.slane %v2507, 7
        %v2540 = vrot.slane %v2508, 1
        %v2541 = vrot.slane %v2508, 2
        %v2542 = vrot.slane %v2508, 3
        %v2543 = vrot.slane %v2508, 4
        %v2544 = vrot.slane %v2508, 5
        %v2545 = vrot.slane %v2508, 6
        %v2546 = vrot.slane %v2508, 7
        %v2547 = vrot.slane %v2509, 1
        %v2548 = vrot.slane %v2509, 2
        %v2549 = vrot.slane %v2509, 3
        %v2550 = vrot.slane %v2509, 4
        %v2551 = vrot.slane %v2509, 5
        %v2552 = vrot.slane %v2509, 6
        %v2553 = vrot.slane %v2509, 7
        %v2554 = vrot.slane %v2510, 1
        %v2555 = vrot.slane %v2510, 2
        %v2556 = vrot.slane %v2510, 3
        %v2557 = vrot.slane %v2510, 4
        %v2558 = vrot.slane %v2510, 5
        %v2559 = vrot.slane %v2510, 6
        %v2560 = vrot.slane %v2510, 7
        %v2561 = vperm.slane %v2505, 0
        %v2562 = vperm.slane %v2519, 0
        %v2563 = vperm.slane %v2520, 0
        %v2564 = vperm.slane %v2521, 0
        %v2565 = vperm.slane %v2522, 0
        %v2566 = vperm.slane %v2523, 0
        %v2567 = vperm.slane %v2524, 0
        %v2568 = vperm.slane %v2525, 0
        %v2569 = vperm.slane %v2506, 0
        %v2570 = vperm.slane %v2526, 0
        %v2571 = vperm.slane %v2527, 0
        %v2572 = vperm.slane %v2528, 0
        %v2573 = vperm.slane %v2529, 0
        %v2574 = vperm.slane %v2530, 0
        %v2575 = vperm.slane %v2531, 0
        %v2576 = vperm.slane %v2532, 0
        %v2577 = vperm.slane %v2507, 0
        %v2578 = vperm.slane %v2533, 0
        %v2579 = vperm.slane %v2534, 0
        %v2580 = vperm.slane %v2535, 0
        %v2581 = vperm.slane %v2536, 0
        %v2582 = vperm.slane %v2537, 0
        %v2583 = vperm.slane %v2538, 0
        %v2584 = vperm.slane %v2539, 0
        %v2585 = vperm.slane %v2508, 0
        %v2586 = vperm.slane %v2540, 0
        %v2587 = vperm.slane %v2541, 0
        %v2588 = vperm.slane %v2542, 0
        %v2589 = vperm.slane %v2543, 0
        %v2590 = vperm.slane %v2544, 0
        %v2591 = vperm.slane %v2545, 0
        %v2592 = vperm.slane %v2546, 0
        %v2593 = vperm.slane %v2509, 0
        %v2594 = vperm.slane %v2547, 0
        %v2595 = vperm.slane %v2548, 0
        %v2596 = vperm.slane %v2549, 0
        %v2597 = vperm.slane %v2550, 0
        %v2598 = vperm.slane %v2551, 0
        %v2599 = vperm.slane %v2552, 0
        %v2600 = vperm.slane %v2553, 0
        %v2601 = vperm.slane %v2510, 0
        %v2602 = vperm.slane %v2554, 0
        %v2603 = vperm.slane %v2555, 0
        %v2604 = vperm.slane %v2556, 0
        %v2605 = vperm.slane %v2557, 0
        %v2606 = vperm.slane %v2558, 0
        %v2607 = vperm.slane %v2559, 0
        %v2608 = vperm.slane %v2560, 0
        %v2609 = vperm.slane %v2511, 0
        %v2659 = vsel %vm1164, %v2215, %v2561
        %v2660 = vsel %vm1164, %v2228, %v2562
        %v2661 = vsel %vm1164, %v2229, %v2563
        %v2662 = vsel %vm1164, %v2230, %v2564
        %v2663 = vsel %vm1164, %v2231, %v2565
        %v2664 = vsel %vm1164, %v2232, %v2566
        %v2665 = vsel %vm1164, %v2233, %v2567
        %v2666 = vsel %vm1164, %v2234, %v2568
        %v2667 = vsel %vm1164, %v2216, %v2569
        %v2668 = vsel %vm1164, %v2235, %v2570
        %v2669 = vsel %vm1164, %v2236, %v2571
        %v2670 = vsel %vm1164, %v2237, %v2572
        %v2671 = vsel %vm1164, %v2238, %v2573
        %v2672 = vsel %vm1164, %v2239, %v2574
        %v2673 = vsel %vm1164, %v2240, %v2575
        %v2674 = vsel %vm1164, %v2241, %v2576
        %v2675 = vsel %vm1164, %v2217, %v2577
        %v2676 = vsel %vm1164, %v2242, %v2578
        %v2677 = vsel %vm1164, %v2243, %v2579
        %v2678 = vsel %vm1164, %v2244, %v2580
        %v2679 = vsel %vm1164, %v2245, %v2581
        %v2680 = vsel %vm1164, %v2246, %v2582
        %v2681 = vsel %vm1164, %v2247, %v2583
        %v2682 = vsel %vm1164, %v2248, %v2584
        %v2683 = vsel %vm1164, %v2218, %v2585
        %v2684 = vsel %vm1164, %v2249, %v2586
        %v2685 = vsel %vm1164, %v2250, %v2587
        %v2686 = vsel %vm1164, %v2251, %v2588
        %v2687 = vsel %vm1164, %v2252, %v2589
        %v2688 = vsel %vm1164, %v2253, %v2590
        %v2689 = vsel %vm1164, %v2254, %v2591
        %v2690 = vsel %vm1164, %v2255, %v2592
        %v2691 = vsel %vm1164, %v2219, %v2593
        %v2692 = vsel %vm1164, %v2256, %v2594
        %v2693 = vsel %vm1164, %v2257, %v2595
        %v2694 = vsel %vm1164, %v2258, %v2596
        %v2695 = vsel %vm1164, %v2259, %v2597
        %v2696 = vsel %vm1164, %v2260, %v2598
        %v2697 = vsel %vm1164, %v2261, %v2599
        %v2698 = vsel %vm1164, %v2262, %v2600
        %v2699 = vsel %vm1164, %v2220, %v2601
        %v2700 = vsel %vm1164, %v2263, %v2602
        %v2701 = vsel %vm1164, %v2264, %v2603
        %v2702 = vsel %vm1164, %v2265, %v2604
        %v2703 = vsel %vm1164, %v2266, %v2605
        %v2704 = vsel %vm1164, %v2267, %v2606
        %v2705 = vsel %vm1164, %v2268, %v2607
        %v2706 = vsel %vm1164, %v2269, %v2608
        %v2707 = vsel %vm1164, %v2221, %v2609
        %2806 = vst [vmem:[#allocation1] ss:$4 sm:$0xff] %v1973
        %s2807 = scalar_lea.vmem [#allocation1], 1
        %2808 = vst [vmem:[%s2807] ss:$4 sm:$0xff] %v1974
        %s2809 = scalar_lea.vmem [#allocation1], 2
        %2810 = vst [vmem:[%s2809] ss:$4 sm:$0xff] %v1975
        %s2811 = scalar_lea.vmem [#allocation1], 3
        %2812 = vst [vmem:[%s2811] ss:$4 sm:$0xff] %v1976
        %s2813 = scalar_lea.vmem [#allocation1], 32
        %2814 = vst [vmem:[%s2813] ss:$4 sm:$0xff] %v1977
        %s2815 = scalar_lea.vmem [#allocation1], 33
        %2816 = vst [vmem:[%s2815] ss:$4 sm:$0xff] %v1978
        %s2817 = scalar_lea.vmem [#allocation1], 34
        %2818 = vst [vmem:[%s2817] ss:$4 sm:$0xff] %v1979
        %v2819 = vld.sshfl [vmem:[#allocation1] sm:$0xff pattern:$0x73625140]
        %v2820 = vld.sshfl [vmem:[#allocation1 + $0x20] sm:$0xff pattern:$0x73625140]
        %2821 = vst [vmem:[#allocation1] ss:$4 sm:$0xff] %v2659
        %2822 = vst [vmem:[%s2807] ss:$4 sm:$0xff] %v2660
        %2823 = vst [vmem:[%s2809] ss:$4 sm:$0xff] %v2661
        %2824 = vst [vmem:[%s2811] ss:$4 sm:$0xff] %v2662
        %2825 = vst [vmem:[%s2813] ss:$4 sm:$0xff] %v2663
        %2826 = vst [vmem:[%s2815] ss:$4 sm:$0xff] %v2664
        %2827 = vst [vmem:[%s2817] ss:$4 sm:$0xff] %v2665
        %v2828 = vld.sshfl [vmem:[#allocation1] sm:$0xff pattern:$0x73625140]
        %v2829 = vld.sshfl [vmem:[#allocation1 + $0x20] sm:$0xff pattern:$0x73625140]
        %2830 = vst [vmem:[#allocation1] ss:$4 sm:$0xff] %v1980
        %2831 = vst [vmem:[%s2807] ss:$4 sm:$0xff] %v1981
        %2832 = vst [vmem:[%s2809] ss:$4 sm:$0xff] %v1982
        %2833 = vst [vmem:[%s2811] ss:$4 sm:$0xff] %v1983
        %2834 = vst [vmem:[%s2813] ss:$4 sm:$0xff] %v1984
        %2835 = vst [vmem:[%s2815] ss:$4 sm:$0xff] %v1985
        %2836 = vst [vmem:[%s2817] ss:$4 sm:$0xff] %v1986
        %v2837 = vld.sshfl [vmem:[#allocation1] sm:$0xff pattern:$0x73625140]
        %v2838 = vld.sshfl [vmem:[#allocation1 + $0x20] sm:$0xff pattern:$0x73625140]
        %2839 = vst [vmem:[#allocation1] ss:$4 sm:$0xff] %v2666
        %2840 = vst [vmem:[%s2807] ss:$4 sm:$0xff] %v2667
        %2841 = vst [vmem:[%s2809] ss:$4 sm:$0xff] %v2668
        %2842 = vst [vmem:[%s2811] ss:$4 sm:$0xff] %v2669
        %2843 = vst [vmem:[%s2813] ss:$4 sm:$0xff] %v2670
        %2844 = vst [vmem:[%s2815] ss:$4 sm:$0xff] %v2671
        %2845 = vst [vmem:[%s2817] ss:$4 sm:$0xff] %v2672
        %v2846 = vld.sshfl [vmem:[#allocation1] sm:$0xff pattern:$0x73625140]
        %v2847 = vld.sshfl [vmem:[#allocation1 + $0x20] sm:$0xff pattern:$0x73625140]
        %2848 = vst [vmem:[#allocation1] ss:$4 sm:$0xff] %v1987
        %2849 = vst [vmem:[%s2807] ss:$4 sm:$0xff] %v1988
        %2850 = vst [vmem:[%s2809] ss:$4 sm:$0xff] %v1989
        %2851 = vst [vmem:[%s2811] ss:$4 sm:$0xff] %v1990
        %2852 = vst [vmem:[%s2813] ss:$4 sm:$0xff] %v1991
        %2853 = vst [vmem:[%s2815] ss:$4 sm:$0xff] %v1992
        %2854 = vst [vmem:[%s2817] ss:$4 sm:$0xff] %v1993
        %v2855 = vld.sshfl [vmem:[#allocation1] sm:$0xff pattern:$0x73625140]
        %v2856 = vld.sshfl [vmem:[#allocation1 + $0x20] sm:$0xff pattern:$0x73625140]
        %2857 = vst [vmem:[#allocation1] ss:$4 sm:$0xff] %v2673
        %2858 = vst [vmem:[%s2807] ss:$4 sm:$0xff] %v2674
        %2859 = vst [vmem:[%s2809] ss:$4 sm:$0xff] %v2675
        %2860 = vst [vmem:[%s2811] ss:$4 sm:$0xff] %v2676
        %2861 = vst [vmem:[%s2813] ss:$4 sm:$0xff] %v2677
        %2862 = vst [vmem:[%s2815] ss:$4 sm:$0xff] %v2678
        %2863 = vst [vmem:[%s2817] ss:$4 sm:$0xff] %v2679
        %v2864 = vld.sshfl [vmem:[#allocation1] sm:$0xff pattern:$0x73625140]
        %v2865 = vld.sshfl [vmem:[#allocation1 + $0x20] sm:$0xff pattern:$0x73625140]
        %2866 = vst [vmem:[#allocation1] ss:$4 sm:$0xff] %v1994
        %2867 = vst [vmem:[%s2807] ss:$4 sm:$0xff] %v1995
        %2868 = vst [vmem:[%s2809] ss:$4 sm:$0xff] %v1996
        %2869 = vst [vmem:[%s2811] ss:$4 sm:$0xff] %v1997
        %2870 = vst [vmem:[%s2813] ss:$4 sm:$0xff] %v1998
        %2871 = vst [vmem:[%s2815] ss:$4 sm:$0xff] %v1999
        %2872 = vst [vmem:[%s2817] ss:$4 sm:$0xff] %v2000
        %v2873 = vld.sshfl [vmem:[#allocation1] sm:$0xff pattern:$0x73625140]
        %v2874 = vld.sshfl [vmem:[#allocation1 + $0x20] sm:$0xff pattern:$0x73625140]
        %2875 = vst [vmem:[#allocation1] ss:$4 sm:$0xff] %v2680
        %2876 = vst [vmem:[%s2807] ss:$4 sm:$0xff] %v2681
        %2877 = vst [vmem:[%s2809] ss:$4 sm:$0xff] %v2682
        %2878 = vst [vmem:[%s2811] ss:$4 sm:$0xff] %v2683
        %2879 = vst [vmem:[%s2813] ss:$4 sm:$0xff] %v2684
        %2880 = vst [vmem:[%s2815] ss:$4 sm:$0xff] %v2685
        %2881 = vst [vmem:[%s2817] ss:$4 sm:$0xff] %v2686
        %v2882 = vld.sshfl [vmem:[#allocation1] sm:$0xff pattern:$0x73625140]
        %v2883 = vld.sshfl [vmem:[#allocation1 + $0x20] sm:$0xff pattern:$0x73625140]
        %2884 = vst [vmem:[#allocation1] ss:$4 sm:$0xff] %v2001
        %2885 = vst [vmem:[%s2807] ss:$4 sm:$0xff] %v2002
        %2886 = vst [vmem:[%s2809] ss:$4 sm:$0xff] %v2003
        %2887 = vst [vmem:[%s2811] ss:$4 sm:$0xff] %v2004
        %2888 = vst [vmem:[%s2813] ss:$4 sm:$0xff] %v2005
        %2889 = vst [vmem:[%s2815] ss:$4 sm:$0xff] %v2006
        %2890 = vst [vmem:[%s2817] ss:$4 sm:$0xff] %v2007
        %v2891 = vld.sshfl [vmem:[#allocation1] sm:$0xff pattern:$0x73625140]
        %v2892 = vld.sshfl [vmem:[#allocation1 + $0x20] sm:$0xff pattern:$0x73625140]
        %2893 = vst [vmem:[#allocation1] ss:$4 sm:$0xff] %v2687
        %2894 = vst [vmem:[%s2807] ss:$4 sm:$0xff] %v2688
        %2895 = vst [vmem:[%s2809] ss:$4 sm:$0xff] %v2689
        %2896 = vst [vmem:[%s2811] ss:$4 sm:$0xff] %v2690
        %2897 = vst [vmem:[%s2813] ss:$4 sm:$0xff] %v2691
        %2898 = vst [vmem:[%s2815] ss:$4 sm:$0xff] %v2692
        %2899 = vst [vmem:[%s2817] ss:$4 sm:$0xff] %v2693
        %v2900 = vld.sshfl [vmem:[#allocation1] sm:$0xff pattern:$0x73625140]
        %v2901 = vld.sshfl [vmem:[#allocation1 + $0x20] sm:$0xff pattern:$0x73625140]
        %2902 = vst [vmem:[#allocation1] ss:$4 sm:$0xff] %v2008
        %2903 = vst [vmem:[%s2807] ss:$4 sm:$0xff] %v2009
        %2904 = vst [vmem:[%s2809] ss:$4 sm:$0xff] %v2010
        %2905 = vst [vmem:[%s2811] ss:$4 sm:$0xff] %v2011
        %2906 = vst [vmem:[%s2813] ss:$4 sm:$0xff] %v2012
        %2907 = vst [vmem:[%s2815] ss:$4 sm:$0xff] %v2013
        %2908 = vst [vmem:[%s2817] ss:$4 sm:$0xff] %v2014
        %v2909 = vld.sshfl [vmem:[#allocation1] sm:$0xff pattern:$0x73625140]
        %v2910 = vld.sshfl [vmem:[#allocation1 + $0x20] sm:$0xff pattern:$0x73625140]
        %2911 = vst [vmem:[#allocation1] ss:$4 sm:$0xff] %v2694
        %2912 = vst [vmem:[%s2807] ss:$4 sm:$0xff] %v2695
        %2913 = vst [vmem:[%s2809] ss:$4 sm:$0xff] %v2696
        %2914 = vst [vmem:[%s2811] ss:$4 sm:$0xff] %v2697
        %2915 = vst [vmem:[%s2813] ss:$4 sm:$0xff] %v2698
        %2916 = vst [vmem:[%s2815] ss:$4 sm:$0xff] %v2699
        %2917 = vst [vmem:[%s2817] ss:$4 sm:$0xff] %v2700
        %v2918 = vld.sshfl [vmem:[#allocation1] sm:$0xff pattern:$0x73625140]
        %v2919 = vld.sshfl [vmem:[#allocation1 + $0x20] sm:$0xff pattern:$0x73625140]
        %2920 = vst [vmem:[#allocation1] ss:$4 sm:$0xff] %v2015
        %2921 = vst [vmem:[%s2807] ss:$4 sm:$0xff] %v2016
        %2922 = vst [vmem:[%s2809] ss:$4 sm:$0xff] %v2017
        %2923 = vst [vmem:[%s2811] ss:$4 sm:$0xff] %v2018
        %2924 = vst [vmem:[%s2813] ss:$4 sm:$0xff] %v2019
        %2925 = vst [vmem:[%s2815] ss:$4 sm:$0xff] %v2020
        %2926 = vst [vmem:[%s2817] ss:$4 sm:$0xff] %v2021
        %v2927 = vld.sshfl [vmem:[#allocation1] sm:$0xff pattern:$0x73625140]
        %v2928 = vld.sshfl [vmem:[#allocation1 + $0x20] sm:$0xff pattern:$0x73625140]
        %2929 = vst [vmem:[#allocation1] ss:$4 sm:$0xff] %v2701
        %2930 = vst [vmem:[%s2807] ss:$4 sm:$0xff] %v2702
        %2931 = vst [vmem:[%s2809] ss:$4 sm:$0xff] %v2703
        %2932 = vst [vmem:[%s2811] ss:$4 sm:$0xff] %v2704
        %2933 = vst [vmem:[%s2813] ss:$4 sm:$0xff] %v2705
        %2934 = vst [vmem:[%s2815] ss:$4 sm:$0xff] %v2706
        %2935 = vst [vmem:[%s2817] ss:$4 sm:$0xff] %v2707
        %v2936 = vld.sshfl [vmem:[#allocation1] sm:$0xff pattern:$0x73625140]
        %v2937 = vld.sshfl [vmem:[#allocation1 + $0x20] sm:$0xff pattern:$0x73625140]
        %v2938 = vsel %vm1164, %v1150, %v1150
        %v2939 = vrot.slane %v2819, 7
        %v2940 = vrot.slane %v2820, 7
        %v2941 = vsel %vm1164, %v2939, %v2940
        %v2942 = vrot.slane %v2828, 7
        %v2943 = vrot.slane %v2829, 7
        %v2944 = vsel %vm1164, %v2942, %v2943
        %v2945 = vrot.slane %v2837, 7
        %v2946 = vrot.slane %v2838, 7
        %v2947 = vsel %vm1164, %v2945, %v2946
        %v2948 = vrot.slane %v2846, 7
        %v2949 = vrot.slane %v2847, 7
        %v2950 = vsel %vm1164, %v2948, %v2949
        %v2951 = vrot.slane %v2855, 7
        %v2952 = vrot.slane %v2856, 7
        %v2953 = vsel %vm1164, %v2951, %v2952
        %v2954 = vrot.slane %v2864, 7
        %v2955 = vrot.slane %v2865, 7
        %v2956 = vsel %vm1164, %v2954, %v2955
        %v2957 = vrot.slane %v2873, 7
        %v2958 = vrot.slane %v2874, 7
        %v2959 = vsel %vm1164, %v2957, %v2958
        %v2960 = vrot.slane %v2882, 7
        %v2961 = vrot.slane %v2883, 7
        %v2962 = vsel %vm1164, %v2960, %v2961
        %v2963 = vrot.slane %v2891, 7
        %v2964 = vrot.slane %v2892, 7
        %v2965 = vsel %vm1164, %v2963, %v2964
        %v2966 = vrot.slane %v2900, 7
        %v2967 = vrot.slane %v2901, 7
        %v2968 = vsel %vm1164, %v2966, %v2967
        %v2969 = vrot.slane %v2909, 7
        %v2970 = vrot.slane %v2910, 7
        %v2971 = vsel %vm1164, %v2969, %v2970
        %v2972 = vrot.slane %v2918, 7
        %v2973 = vrot.slane %v2919, 7
        %v2974 = vsel %vm1164, %v2972, %v2973
        %v2975 = vrot.slane %v2927, 7
        %v2976 = vrot.slane %v2928, 7
        %v2977 = vsel %vm1164, %v2975, %v2976
        %v2978 = vrot.slane %v2936, 7
        %v2979 = vrot.slane %v2937, 7
        %v2980 = vsel %vm1164, %v2978, %v2979
        %v3010 = vsel %vm1164, 0.0, %v2939
        %v3011 = vsel %vm1164, 0.0, %v2942
        %v3012 = vsel %vm1164, 0.0, %v2945
        %v3013 = vsel %vm1164, 0.0, %v2948
        %v3014 = vsel %vm1164, 0.0, %v2951
        %v3015 = vsel %vm1164, 0.0, %v2954
        %v3016 = vsel %vm1164, 0.0, %v2957
        %v3017 = vsel %vm1164, 0.0, %v2960
        %v3018 = vsel %vm1164, 0.0, %v2963
        %v3019 = vsel %vm1164, 0.0, %v2966
        %v3020 = vsel %vm1164, 0.0, %v2969
        %v3021 = vsel %vm1164, 0.0, %v2972
        %v3022 = vsel %vm1164, 0.0, %v2975
        %v3023 = vsel %vm1164, 0.0, %v2978
        %v3024 = vsel %vm1172, %v2938, 0.0
        %v3025 = vsel %vm1172, %v2941, 0.0
        %v3026 = vsel %vm1172, %v2944, 0.0
        %v3027 = vsel %vm1172, %v2947, 0.0
        %v3028 = vsel %vm1172, %v2950, 0.0
        %v3029 = vsel %vm1172, %v2953, 0.0
        %v3030 = vsel %vm1172, %v2956, 0.0
        %v3031 = vsel %vm1172, %v2959, 0.0
        %v3032 = vsel %vm1172, %v2962, 0.0
        %v3033 = vsel %vm1172, %v2965, 0.0
        %v3034 = vsel %vm1172, %v2968, 0.0
        %v3035 = vsel %vm1172, %v2971, 0.0
        %v3036 = vsel %vm1172, %v2974, 0.0
        %v3037 = vsel %vm1172, %v2977, 0.0
        %v3038 = vsel %vm1172, %v2980, 0.0
        %v3069 = vrot.slane %v1165, 1
        %v3070 = vrot.slane %v3024, 1
        %v3071 = vsel %vm1172, %v3069, %v3070
        %v3072 = vrot.slane %v3010, 1
        %v3073 = vrot.slane %v3025, 1
        %v3074 = vsel %vm1172, %v3072, %v3073
        %v3075 = vrot.slane %v3011, 1
        %v3076 = vrot.slane %v3026, 1
        %v3077 = vsel %vm1172, %v3075, %v3076
        %v3078 = vrot.slane %v3012, 1
        %v3079 = vrot.slane %v3027, 1
        %v3080 = vsel %vm1172, %v3078, %v3079
        %v3081 = vrot.slane %v3013, 1
        %v3082 = vrot.slane %v3028, 1
        %v3083 = vsel %vm1172, %v3081, %v3082
        %v3084 = vrot.slane %v3014, 1
        %v3085 = vrot.slane %v3029, 1
        %v3086 = vsel %vm1172, %v3084, %v3085
        %v3087 = vrot.slane %v3015, 1
        %v3088 = vrot.slane %v3030, 1
        %v3089 = vsel %vm1172, %v3087, %v3088
        %v3090 = vrot.slane %v3016, 1
        %v3091 = vrot.slane %v3031, 1
        %v3092 = vsel %vm1172, %v3090, %v3091
        %v3093 = vrot.slane %v3017, 1
        %v3094 = vrot.slane %v3032, 1
        %v3095 = vsel %vm1172, %v3093, %v3094
        %v3096 = vrot.slane %v3018, 1
        %v3097 = vrot.slane %v3033, 1
        %v3098 = vsel %vm1172, %v3096, %v3097
        %v3099 = vrot.slane %v3019, 1
        %v3100 = vrot.slane %v3034, 1
        %v3101 = vsel %vm1172, %v3099, %v3100
        %v3102 = vrot.slane %v3020, 1
        %v3103 = vrot.slane %v3035, 1
        %v3104 = vsel %vm1172, %v3102, %v3103
        %v3105 = vrot.slane %v3021, 1
        %v3106 = vrot.slane %v3036, 1
        %v3107 = vsel %vm1172, %v3105, %v3106
        %v3108 = vrot.slane %v3022, 1
        %v3109 = vrot.slane %v3037, 1
        %v3110 = vsel %vm1172, %v3108, %v3109
        %v3111 = vrot.slane %v3023, 1
        %v3112 = vrot.slane %v3038, 1
        %v3113 = vsel %vm1172, %v3111, %v3112
        %3114 = vrot.lane.b32.xlu0 %v3071, 64
        %v3115 = vpop.permute.xlu0 %3114
        %3116 = vrot.lane.b32.xlu0 %v3070, 64
        %v3117 = vpop.permute.xlu0 %3116
        %3118 = vrot.lane.b32.xlu0 %v3074, 64
        %v3119 = vpop.permute.xlu0 %3118
        %3120 = vrot.lane.b32.xlu0 %v3073, 64
        %v3121 = vpop.permute.xlu0 %3120
        %3122 = vrot.lane.b32.xlu0 %v3077, 64
        %v3123 = vpop.permute.xlu0 %3122
        %3124 = vrot.lane.b32.xlu0 %v3076, 64
        %v3125 = vpop.permute.xlu0 %3124
        %3126 = vrot.lane.b32.xlu0 %v3080, 64
        %v3127 = vpop.permute.xlu0 %3126
        %3128 = vrot.lane.b32.xlu0 %v3079, 64
        %v3129 = vpop.permute.xlu0 %3128
        %3130 = vrot.lane.b32.xlu0 %v3083, 64
        %v3131 = vpop.permute.xlu0 %3130
        %3132 = vrot.lane.b32.xlu0 %v3082, 64
        %v3133 = vpop.permute.xlu0 %3132
        %3134 = vrot.lane.b32.xlu0 %v3086, 64
        %v3135 = vpop.permute.xlu0 %3134
        %3136 = vrot.lane.b32.xlu0 %v3085, 64
        %v3137 = vpop.permute.xlu0 %3136
        %3138 = vrot.lane.b32.xlu0 %v3089, 64
        %v3139 = vpop.permute.xlu0 %3138
        %3140 = vrot.lane.b32.xlu0 %v3088, 64
        %v3141 = vpop.permute.xlu0 %3140
        %3142 = vrot.lane.b32.xlu0 %v3092, 64
        %v3143 = vpop.permute.xlu0 %3142
        %3144 = vrot.lane.b32.xlu0 %v3091, 64
        %v3145 = vpop.permute.xlu0 %3144
        %3146 = vrot.lane.b32.xlu0 %v3095, 64
        %v3147 = vpop.permute.xlu0 %3146
        %3148 = vrot.lane.b32.xlu0 %v3094, 64
        %v3149 = vpop.permute.xlu0 %3148
        %3150 = vrot.lane.b32.xlu0 %v3098, 64
        %v3151 = vpop.permute.xlu0 %3150
        %3152 = vrot.lane.b32.xlu0 %v3097, 64
        %v3153 = vpop.permute.xlu0 %3152
        %3154 = vrot.lane.b32.xlu0 %v3101, 64
        %v3155 = vpop.permute.xlu0 %3154
        %3156 = vrot.lane.b32.xlu0 %v3100, 64
        %v3157 = vpop.permute.xlu0 %3156
        %3158 = vrot.lane.b32.xlu0 %v3104, 64
        %v3159 = vpop.permute.xlu0 %3158
        %3160 = vrot.lane.b32.xlu0 %v3103, 64
        %v3161 = vpop.permute.xlu0 %3160
        %3162 = vrot.lane.b32.xlu0 %v3107, 64
        %v3163 = vpop.permute.xlu0 %3162
        %3164 = vrot.lane.b32.xlu0 %v3106, 64
        %v3165 = vpop.permute.xlu0 %3164
        %3166 = vrot.lane.b32.xlu0 %v3110, 64
        %v3167 = vpop.permute.xlu0 %3166
        %3168 = vrot.lane.b32.xlu0 %v3109, 64
        %v3169 = vpop.permute.xlu0 %3168
        %3170 = vrot.lane.b32.xlu0 %v3113, 64
        %v3171 = vpop.permute.xlu0 %3170
        %3172 = vrot.lane.b32.xlu0 %v3112, 64
        %v3173 = vpop.permute.xlu0 %3172
        %v3204 = vsel %vm619, %v1165, %v3115
        %v3205 = vsel %vm619, %v3024, %v3117
        %v3206 = vsel %vm619, %v3010, %v3119
        %v3207 = vsel %vm619, %v3025, %v3121
        %v3208 = vsel %vm619, %v3011, %v3123
        %v3209 = vsel %vm619, %v3026, %v3125
        %v3210 = vsel %vm619, %v3012, %v3127
        %v3211 = vsel %vm619, %v3027, %v3129
        %v3212 = vsel %vm619, %v3013, %v3131
        %v3213 = vsel %vm619, %v3028, %v3133
        %v3214 = vsel %vm619, %v3014, %v3135
        %v3215 = vsel %vm619, %v3029, %v3137
        %v3216 = vsel %vm619, %v3015, %v3139
        %v3217 = vsel %vm619, %v3030, %v3141
        %v3218 = vsel %vm619, %v3016, %v3143
        %v3219 = vsel %vm619, %v3031, %v3145
        %v3220 = vsel %vm619, %v3017, %v3147
        %v3221 = vsel %vm619, %v3032, %v3149
        %v3222 = vsel %vm619, %v3018, %v3151
        %v3223 = vsel %vm619, %v3033, %v3153
        %v3224 = vsel %vm619, %v3019, %v3155
        %v3225 = vsel %vm619, %v3034, %v3157
        %v3226 = vsel %vm619, %v3020, %v3159
        %v3227 = vsel %vm619, %v3035, %v3161
        %v3228 = vsel %vm619, %v3021, %v3163
        %v3229 = vsel %vm619, %v3036, %v3165
        %v3230 = vsel %vm619, %v3022, %v3167
        %v3231 = vsel %vm619, %v3037, %v3169
        %v3232 = vsel %vm619, %v3023, %v3171
        %v3233 = vsel %vm619, %v3038, %v3173
        %v3264 = vrot.slane %v3206, 7
        %v3265 = vrot.slane %v3207, 7
        %v3266 = vrot.slane %v3208, 7
        %v3267 = vrot.slane %v3209, 7
        %v3268 = vrot.slane %v3210, 7
        %v3269 = vrot.slane %v3211, 7
        %v3270 = vrot.slane %v3212, 7
        %v3271 = vrot.slane %v3213, 7
        %v3272 = vrot.slane %v3214, 7
        %v3273 = vrot.slane %v3215, 7
        %v3274 = vrot.slane %v3216, 7
        %v3275 = vrot.slane %v3217, 7
        %v3276 = vrot.slane %v3218, 7
        %v3277 = vrot.slane %v3219, 7
        %v3278 = vrot.slane %v3220, 7
        %v3279 = vrot.slane %v3221, 7
        %v3280 = vrot.slane %v3222, 7
        %v3281 = vrot.slane %v3223, 7
        %v3282 = vrot.slane %v3224, 7
        %v3283 = vrot.slane %v3225, 7
        %v3284 = vrot.slane %v3226, 7
        %v3285 = vrot.slane %v3227, 7
        %v3286 = vrot.slane %v3228, 7
        %v3287 = vrot.slane %v3229, 7
        %v3288 = vrot.slane %v3230, 7
        %v3289 = vrot.slane %v3231, 7
        %v3290 = vrot.slane %v3232, 7
        %v3291 = vrot.slane %v3233, 7
        %v3292 = vrot.slane %v3204, 7
        %v3293 = vrot.slane %v3205, 7
        %v3294 = vsel %vm1164, %v3204, %v3264
        %v3295 = vsel %vm1237, %v3204, %v3264
        %v3296 = vrot.slane %v3295, 1
        %v3297 = vsel %vm1240, %v3204, %v3264
        %v3298 = vrot.slane %v3297, 2
        %v3299 = vsel %vm1243, %v3204, %v3264
        %v3300 = vrot.slane %v3299, 3
        %v3301 = vsel %vm1246, %v3204, %v3264
        %v3302 = vrot.slane %v3301, 4
        %v3303 = vsel %vm1249, %v3204, %v3264
        %v3304 = vrot.slane %v3303, 5
        %v3305 = vsel %vm1252, %v3204, %v3264
        %v3306 = vrot.slane %v3305, 6
        %v3307 = vsel %vm1172, %v3264, %v3204
        %v3308 = vrot.slane %v3307, 7
        %v3309 = vsel %vm1164, %v3205, %v3265
        %v3310 = vsel %vm1237, %v3205, %v3265
        %v3311 = vrot.slane %v3310, 1
        %v3312 = vsel %vm1240, %v3205, %v3265
        %v3313 = vrot.slane %v3312, 2
        %v3314 = vsel %vm1243, %v3205, %v3265
        %v3315 = vrot.slane %v3314, 3
        %v3316 = vsel %vm1246, %v3205, %v3265
        %v3317 = vrot.slane %v3316, 4
        %v3318 = vsel %vm1249, %v3205, %v3265
        %v3319 = vrot.slane %v3318, 5
        %v3320 = vsel %vm1252, %v3205, %v3265
        %v3321 = vrot.slane %v3320, 6
        %v3322 = vsel %vm1164, %v3206, %v3266
        %v3323 = vsel %vm1237, %v3206, %v3266
        %v3324 = vrot.slane %v3323, 1
        %v3325 = vsel %vm1240, %v3206, %v3266
        %v3326 = vrot.slane %v3325, 2
        %v3327 = vsel %vm1243, %v3206, %v3266
        %v3328 = vrot.slane %v3327, 3
        %v3329 = vsel %vm1246, %v3206, %v3266
        %v3330 = vrot.slane %v3329, 4
        %v3331 = vsel %vm1249, %v3206, %v3266
        %v3332 = vrot.slane %v3331, 5
        %v3333 = vsel %vm1252, %v3206, %v3266
        %v3334 = vrot.slane %v3333, 6
        %v3335 = vsel %vm1172, %v3266, %v3206
        %v3336 = vrot.slane %v3335, 7
        %v3337 = vsel %vm1164, %v3207, %v3267
        %v3338 = vsel %vm1237, %v3207, %v3267
        %v3339 = vrot.slane %v3338, 1
        %v3340 = vsel %vm1240, %v3207, %v3267
        %v3341 = vrot.slane %v3340, 2
        %v3342 = vsel %vm1243, %v3207, %v3267
        %v3343 = vrot.slane %v3342, 3
        %v3344 = vsel %vm1246, %v3207, %v3267
        %v3345 = vrot.slane %v3344, 4
        %v3346 = vsel %vm1249, %v3207, %v3267
        %v3347 = vrot.slane %v3346, 5
        %v3348 = vsel %vm1252, %v3207, %v3267
        %v3349 = vrot.slane %v3348, 6
        %v3350 = vsel %vm1164, %v3208, %v3268
        %v3351 = vsel %vm1237, %v3208, %v3268
        %v3352 = vrot.slane %v3351, 1
        %v3353 = vsel %vm1240, %v3208, %v3268
        %v3354 = vrot.slane %v3353, 2
        %v3355 = vsel %vm1243, %v3208, %v3268
        %v3356 = vrot.slane %v3355, 3
        %v3357 = vsel %vm1246, %v3208, %v3268
        %v3358 = vrot.slane %v3357, 4
        %v3359 = vsel %vm1249, %v3208, %v3268
        %v3360 = vrot.slane %v3359, 5
        %v3361 = vsel %vm1252, %v3208, %v3268
        %v3362 = vrot.slane %v3361, 6
        %v3363 = vsel %vm1172, %v3268, %v3208
        %v3364 = vrot.slane %v3363, 7
        %v3365 = vsel %vm1164, %v3209, %v3269
        %v3366 = vsel %vm1237, %v3209, %v3269
        %v3367 = vrot.slane %v3366, 1
        %v3368 = vsel %vm1240, %v3209, %v3269
        %v3369 = vrot.slane %v3368, 2
        %v3370 = vsel %vm1243, %v3209, %v3269
        %v3371 = vrot.slane %v3370, 3
        %v3372 = vsel %vm1246, %v3209, %v3269
        %v3373 = vrot.slane %v3372, 4
        %v3374 = vsel %vm1249, %v3209, %v3269
        %v3375 = vrot.slane %v3374, 5
        %v3376 = vsel %vm1252, %v3209, %v3269
        %v3377 = vrot.slane %v3376, 6
        %v3378 = vsel %vm1164, %v3210, %v3270
        %v3379 = vsel %vm1237, %v3210, %v3270
        %v3380 = vrot.slane %v3379, 1
        %v3381 = vsel %vm1240, %v3210, %v3270
        %v3382 = vrot.slane %v3381, 2
        %v3383 = vsel %vm1243, %v3210, %v3270
        %v3384 = vrot.slane %v3383, 3
        %v3385 = vsel %vm1246, %v3210, %v3270
        %v3386 = vrot.slane %v3385, 4
        %v3387 = vsel %vm1249, %v3210, %v3270
        %v3388 = vrot.slane %v3387, 5
        %v3389 = vsel %vm1252, %v3210, %v3270
        %v3390 = vrot.slane %v3389, 6
        %v3391 = vsel %vm1172, %v3270, %v3210
        %v3392 = vrot.slane %v3391, 7
        %v3393 = vsel %vm1164, %v3211, %v3271
        %v3394 = vsel %vm1237, %v3211, %v3271
        %v3395 = vrot.slane %v3394, 1
        %v3396 = vsel %vm1240, %v3211, %v3271
        %v3397 = vrot.slane %v3396, 2
        %v3398 = vsel %vm1243, %v3211, %v3271
        %v3399 = vrot.slane %v3398, 3
        %v3400 = vsel %vm1246, %v3211, %v3271
        %v3401 = vrot.slane %v3400, 4
        %v3402 = vsel %vm1249, %v3211, %v3271
        %v3403 = vrot.slane %v3402, 5
        %v3404 = vsel %vm1252, %v3211, %v3271
        %v3405 = vrot.slane %v3404, 6
        %v3406 = vsel %vm1164, %v3212, %v3272
        %v3407 = vsel %vm1237, %v3212, %v3272
        %v3408 = vrot.slane %v3407, 1
        %v3409 = vsel %vm1240, %v3212, %v3272
        %v3410 = vrot.slane %v3409, 2
        %v3411 = vsel %vm1243, %v3212, %v3272
        %v3412 = vrot.slane %v3411, 3
        %v3413 = vsel %vm1246, %v3212, %v3272
        %v3414 = vrot.slane %v3413, 4
        %v3415 = vsel %vm1249, %v3212, %v3272
        %v3416 = vrot.slane %v3415, 5
        %v3417 = vsel %vm1252, %v3212, %v3272
        %v3418 = vrot.slane %v3417, 6
        %v3419 = vsel %vm1172, %v3272, %v3212
        %v3420 = vrot.slane %v3419, 7
        %v3421 = vsel %vm1164, %v3213, %v3273
        %v3422 = vsel %vm1237, %v3213, %v3273
        %v3423 = vrot.slane %v3422, 1
        %v3424 = vsel %vm1240, %v3213, %v3273
        %v3425 = vrot.slane %v3424, 2
        %v3426 = vsel %vm1243, %v3213, %v3273
        %v3427 = vrot.slane %v3426, 3
        %v3428 = vsel %vm1246, %v3213, %v3273
        %v3429 = vrot.slane %v3428, 4
        %v3430 = vsel %vm1249, %v3213, %v3273
        %v3431 = vrot.slane %v3430, 5
        %v3432 = vsel %vm1252, %v3213, %v3273
        %v3433 = vrot.slane %v3432, 6
        %v3434 = vsel %vm1164, %v3214, %v3274
        %v3435 = vsel %vm1237, %v3214, %v3274
        %v3436 = vrot.slane %v3435, 1
        %v3437 = vsel %vm1240, %v3214, %v3274
        %v3438 = vrot.slane %v3437, 2
        %v3439 = vsel %vm1243, %v3214, %v3274
        %v3440 = vrot.slane %v3439, 3
        %v3441 = vsel %vm1246, %v3214, %v3274
        %v3442 = vrot.slane %v3441, 4
        %v3443 = vsel %vm1249, %v3214, %v3274
        %v3444 = vrot.slane %v3443, 5
        %v3445 = vsel %vm1252, %v3214, %v3274
        %v3446 = vrot.slane %v3445, 6
        %v3447 = vsel %vm1172, %v3274, %v3214
        %v3448 = vrot.slane %v3447, 7
        %v3449 = vsel %vm1164, %v3215, %v3275
        %v3450 = vsel %vm1237, %v3215, %v3275
        %v3451 = vrot.slane %v3450, 1
        %v3452 = vsel %vm1240, %v3215, %v3275
        %v3453 = vrot.slane %v3452, 2
        %v3454 = vsel %vm1243, %v3215, %v3275
        %v3455 = vrot.slane %v3454, 3
        %v3456 = vsel %vm1246, %v3215, %v3275
        %v3457 = vrot.slane %v3456, 4
        %v3458 = vsel %vm1249, %v3215, %v3275
        %v3459 = vrot.slane %v3458, 5
        %v3460 = vsel %vm1252, %v3215, %v3275
        %v3461 = vrot.slane %v3460, 6
        %v3462 = vsel %vm1164, %v3216, %v3276
        %v3463 = vsel %vm1237, %v3216, %v3276
        %v3464 = vrot.slane %v3463, 1
        %v3465 = vsel %vm1240, %v3216, %v3276
        %v3466 = vrot.slane %v3465, 2
        %v3467 = vsel %vm1243, %v3216, %v3276
        %v3468 = vrot.slane %v3467, 3
        %v3469 = vsel %vm1246, %v3216, %v3276
        %v3470 = vrot.slane %v3469, 4
        %v3471 = vsel %vm1249, %v3216, %v3276
        %v3472 = vrot.slane %v3471, 5
        %v3473 = vsel %vm1252, %v3216, %v3276
        %v3474 = vrot.slane %v3473, 6
        %v3475 = vsel %vm1172, %v3276, %v3216
        %v3476 = vrot.slane %v3475, 7
        %v3477 = vsel %vm1164, %v3217, %v3277
        %v3478 = vsel %vm1237, %v3217, %v3277
        %v3479 = vrot.slane %v3478, 1
        %v3480 = vsel %vm1240, %v3217, %v3277
        %v3481 = vrot.slane %v3480, 2
        %v3482 = vsel %vm1243, %v3217, %v3277
        %v3483 = vrot.slane %v3482, 3
        %v3484 = vsel %vm1246, %v3217, %v3277
        %v3485 = vrot.slane %v3484, 4
        %v3486 = vsel %vm1249, %v3217, %v3277
        %v3487 = vrot.slane %v3486, 5
        %v3488 = vsel %vm1252, %v3217, %v3277
        %v3489 = vrot.slane %v3488, 6
        %v3490 = vsel %vm1164, %v3218, %v3278
        %v3491 = vsel %vm1237, %v3218, %v3278
        %v3492 = vrot.slane %v3491, 1
        %v3493 = vsel %vm1240, %v3218, %v3278
        %v3494 = vrot.slane %v3493, 2
        %v3495 = vsel %vm1243, %v3218, %v3278
        %v3496 = vrot.slane %v3495, 3
        %v3497 = vsel %vm1246, %v3218, %v3278
        %v3498 = vrot.slane %v3497, 4
        %v3499 = vsel %vm1249, %v3218, %v3278
        %v3500 = vrot.slane %v3499, 5
        %v3501 = vsel %vm1252, %v3218, %v3278
        %v3502 = vrot.slane %v3501, 6
        %v3503 = vsel %vm1172, %v3278, %v3218
        %v3504 = vrot.slane %v3503, 7
        %v3505 = vsel %vm1164, %v3219, %v3279
        %v3506 = vsel %vm1237, %v3219, %v3279
        %v3507 = vrot.slane %v3506, 1
        %v3508 = vsel %vm1240, %v3219, %v3279
        %v3509 = vrot.slane %v3508, 2
        %v3510 = vsel %vm1243, %v3219, %v3279
        %v3511 = vrot.slane %v3510, 3
        %v3512 = vsel %vm1246, %v3219, %v3279
        %v3513 = vrot.slane %v3512, 4
        %v3514 = vsel %vm1249, %v3219, %v3279
        %v3515 = vrot.slane %v3514, 5
        %v3516 = vsel %vm1252, %v3219, %v3279
        %v3517 = vrot.slane %v3516, 6
        %v3518 = vsel %vm1164, %v3220, %v3280
        %v3519 = vsel %vm1237, %v3220, %v3280
        %v3520 = vrot.slane %v3519, 1
        %v3521 = vsel %vm1240, %v3220, %v3280
        %v3522 = vrot.slane %v3521, 2
        %v3523 = vsel %vm1243, %v3220, %v3280
        %v3524 = vrot.slane %v3523, 3
        %v3525 = vsel %vm1246, %v3220, %v3280
        %v3526 = vrot.slane %v3525, 4
        %v3527 = vsel %vm1249, %v3220, %v3280
        %v3528 = vrot.slane %v3527, 5
        %v3529 = vsel %vm1252, %v3220, %v3280
        %v3530 = vrot.slane %v3529, 6
        %v3531 = vsel %vm1172, %v3280, %v3220
        %v3532 = vrot.slane %v3531, 7
        %v3533 = vsel %vm1164, %v3221, %v3281
        %v3534 = vsel %vm1237, %v3221, %v3281
        %v3535 = vrot.slane %v3534, 1
        %v3536 = vsel %vm1240, %v3221, %v3281
        %v3537 = vrot.slane %v3536, 2
        %v3538 = vsel %vm1243, %v3221, %v3281
        %v3539 = vrot.slane %v3538, 3
        %v3540 = vsel %vm1246, %v3221, %v3281
        %v3541 = vrot.slane %v3540, 4
        %v3542 = vsel %vm1249, %v3221, %v3281
        %v3543 = vrot.slane %v3542, 5
        %v3544 = vsel %vm1252, %v3221, %v3281
        %v3545 = vrot.slane %v3544, 6
        %v3546 = vsel %vm1164, %v3222, %v3282
        %v3547 = vsel %vm1237, %v3222, %v3282
        %v3548 = vrot.slane %v3547, 1
        %v3549 = vsel %vm1240, %v3222, %v3282
        %v3550 = vrot.slane %v3549, 2
        %v3551 = vsel %vm1243, %v3222, %v3282
        %v3552 = vrot.slane %v3551, 3
        %v3553 = vsel %vm1246, %v3222, %v3282
        %v3554 = vrot.slane %v3553, 4
        %v3555 = vsel %vm1249, %v3222, %v3282
        %v3556 = vrot.slane %v3555, 5
        %v3557 = vsel %vm1252, %v3222, %v3282
        %v3558 = vrot.slane %v3557, 6
        %v3559 = vsel %vm1172, %v3282, %v3222
        %v3560 = vrot.slane %v3559, 7
        %v3561 = vsel %vm1164, %v3223, %v3283
        %v3562 = vsel %vm1237, %v3223, %v3283
        %v3563 = vrot.slane %v3562, 1
        %v3564 = vsel %vm1240, %v3223, %v3283
        %v3565 = vrot.slane %v3564, 2
        %v3566 = vsel %vm1243, %v3223, %v3283
        %v3567 = vrot.slane %v3566, 3
        %v3568 = vsel %vm1246, %v3223, %v3283
        %v3569 = vrot.slane %v3568, 4
        %v3570 = vsel %vm1249, %v3223, %v3283
        %v3571 = vrot.slane %v3570, 5
        %v3572 = vsel %vm1252, %v3223, %v3283
        %v3573 = vrot.slane %v3572, 6
        %v3574 = vsel %vm1164, %v3224, %v3284
        %v3575 = vsel %vm1237, %v3224, %v3284
        %v3576 = vrot.slane %v3575, 1
        %v3577 = vsel %vm1240, %v3224, %v3284
        %v3578 = vrot.slane %v3577, 2
        %v3579 = vsel %vm1243, %v3224, %v3284
        %v3580 = vrot.slane %v3579, 3
        %v3581 = vsel %vm1246, %v3224, %v3284
        %v3582 = vrot.slane %v3581, 4
        %v3583 = vsel %vm1249, %v3224, %v3284
        %v3584 = vrot.slane %v3583, 5
        %v3585 = vsel %vm1252, %v3224, %v3284
        %v3586 = vrot.slane %v3585, 6
        %v3587 = vsel %vm1172, %v3284, %v3224
        %v3588 = vrot.slane %v3587, 7
        %v3589 = vsel %vm1164, %v3225, %v3285
        %v3590 = vsel %vm1237, %v3225, %v3285
        %v3591 = vrot.slane %v3590, 1
        %v3592 = vsel %vm1240, %v3225, %v3285
        %v3593 = vrot.slane %v3592, 2
        %v3594 = vsel %vm1243, %v3225, %v3285
        %v3595 = vrot.slane %v3594, 3
        %v3596 = vsel %vm1246, %v3225, %v3285
        %v3597 = vrot.slane %v3596, 4
        %v3598 = vsel %vm1249, %v3225, %v3285
        %v3599 = vrot.slane %v3598, 5
        %v3600 = vsel %vm1252, %v3225, %v3285
        %v3601 = vrot.slane %v3600, 6
        %v3602 = vsel %vm1164, %v3226, %v3286
        %v3603 = vsel %vm1237, %v3226, %v3286
        %v3604 = vrot.slane %v3603, 1
        %v3605 = vsel %vm1240, %v3226, %v3286
        %v3606 = vrot.slane %v3605, 2
        %v3607 = vsel %vm1243, %v3226, %v3286
        %v3608 = vrot.slane %v3607, 3
        %v3609 = vsel %vm1246, %v3226, %v3286
        %v3610 = vrot.slane %v3609, 4
        %v3611 = vsel %vm1249, %v3226, %v3286
        %v3612 = vrot.slane %v3611, 5
        %v3613 = vsel %vm1252, %v3226, %v3286
        %v3614 = vrot.slane %v3613, 6
        %v3615 = vsel %vm1172, %v3286, %v3226
        %v3616 = vrot.slane %v3615, 7
        %v3617 = vsel %vm1164, %v3227, %v3287
        %v3618 = vsel %vm1237, %v3227, %v3287
        %v3619 = vrot.slane %v3618, 1
        %v3620 = vsel %vm1240, %v3227, %v3287
        %v3621 = vrot.slane %v3620, 2
        %v3622 = vsel %vm1243, %v3227, %v3287
        %v3623 = vrot.slane %v3622, 3
        %v3624 = vsel %vm1246, %v3227, %v3287
        %v3625 = vrot.slane %v3624, 4
        %v3626 = vsel %vm1249, %v3227, %v3287
        %v3627 = vrot.slane %v3626, 5
        %v3628 = vsel %vm1252, %v3227, %v3287
        %v3629 = vrot.slane %v3628, 6
        %v3630 = vsel %vm1164, %v3228, %v3288
        %v3631 = vsel %vm1237, %v3228, %v3288
        %v3632 = vrot.slane %v3631, 1
        %v3633 = vsel %vm1240, %v3228, %v3288
        %v3634 = vrot.slane %v3633, 2
        %v3635 = vsel %vm1243, %v3228, %v3288
        %v3636 = vrot.slane %v3635, 3
        %v3637 = vsel %vm1246, %v3228, %v3288
        %v3638 = vrot.slane %v3637, 4
        %v3639 = vsel %vm1249, %v3228, %v3288
        %v3640 = vrot.slane %v3639, 5
        %v3641 = vsel %vm1252, %v3228, %v3288
        %v3642 = vrot.slane %v3641, 6
        %v3643 = vsel %vm1172, %v3288, %v3228
        %v3644 = vrot.slane %v3643, 7
        %v3645 = vsel %vm1164, %v3229, %v3289
        %v3646 = vsel %vm1237, %v3229, %v3289
        %v3647 = vrot.slane %v3646, 1
        %v3648 = vsel %vm1240, %v3229, %v3289
        %v3649 = vrot.slane %v3648, 2
        %v3650 = vsel %vm1243, %v3229, %v3289
        %v3651 = vrot.slane %v3650, 3
        %v3652 = vsel %vm1246, %v3229, %v3289
        %v3653 = vrot.slane %v3652, 4
        %v3654 = vsel %vm1249, %v3229, %v3289
        %v3655 = vrot.slane %v3654, 5
        %v3656 = vsel %vm1252, %v3229, %v3289
        %v3657 = vrot.slane %v3656, 6
        %v3658 = vsel %vm1164, %v3230, %v3290
        %v3659 = vsel %vm1237, %v3230, %v3290
        %v3660 = vrot.slane %v3659, 1
        %v3661 = vsel %vm1240, %v3230, %v3290
        %v3662 = vrot.slane %v3661, 2
        %v3663 = vsel %vm1243, %v3230, %v3290
        %v3664 = vrot.slane %v3663, 3
        %v3665 = vsel %vm1246, %v3230, %v3290
        %v3666 = vrot.slane %v3665, 4
        %v3667 = vsel %vm1249, %v3230, %v3290
        %v3668 = vrot.slane %v3667, 5
        %v3669 = vsel %vm1252, %v3230, %v3290
        %v3670 = vrot.slane %v3669, 6
        %v3671 = vsel %vm1172, %v3290, %v3230
        %v3672 = vrot.slane %v3671, 7
        %v3673 = vsel %vm1164, %v3231, %v3291
        %v3674 = vsel %vm1237, %v3231, %v3291
        %v3675 = vrot.slane %v3674, 1
        %v3676 = vsel %vm1240, %v3231, %v3291
        %v3677 = vrot.slane %v3676, 2
        %v3678 = vsel %vm1243, %v3231, %v3291
        %v3679 = vrot.slane %v3678, 3
        %v3680 = vsel %vm1246, %v3231, %v3291
        %v3681 = vrot.slane %v3680, 4
        %v3682 = vsel %vm1249, %v3231, %v3291
        %v3683 = vrot.slane %v3682, 5
        %v3684 = vsel %vm1252, %v3231, %v3291
        %v3685 = vrot.slane %v3684, 6
        %v3686 = vsel %vm1164, %v3232, %v3292
        %v3687 = vsel %vm1237, %v3232, %v3292
        %v3688 = vrot.slane %v3687, 1
        %v3689 = vsel %vm1240, %v3232, %v3292
        %v3690 = vrot.slane %v3689, 2
        %v3691 = vsel %vm1243, %v3232, %v3292
        %v3692 = vrot.slane %v3691, 3
        %v3693 = vsel %vm1246, %v3232, %v3292
        %v3694 = vrot.slane %v3693, 4
        %v3695 = vsel %vm1249, %v3232, %v3292
        %v3696 = vrot.slane %v3695, 5
        %v3697 = vsel %vm1252, %v3232, %v3292
        %v3698 = vrot.slane %v3697, 6
        %v3699 = vsel %vm1172, %v3292, %v3232
        %v3700 = vrot.slane %v3699, 7
        %v3701 = vsel %vm1164, %v3233, %v3293
        %v3702 = vsel %vm1237, %v3233, %v3293
        %v3703 = vrot.slane %v3702, 1
        %v3704 = vsel %vm1240, %v3233, %v3293
        %v3705 = vrot.slane %v3704, 2
        %v3706 = vsel %vm1243, %v3233, %v3293
        %v3707 = vrot.slane %v3706, 3
        %v3708 = vsel %vm1246, %v3233, %v3293
        %v3709 = vrot.slane %v3708, 4
        %v3710 = vsel %vm1249, %v3233, %v3293
        %v3711 = vrot.slane %v3710, 5
        %v3712 = vsel %vm1252, %v3233, %v3293
        %v3713 = vrot.slane %v3712, 6
        %v3714 = vld [vmem:[#allocation9] sm:$0xff]
        %v3715 = vld [vmem:[#allocation9 + $0x8] sm:$0xff]
        %v3716 = vld [vmem:[#allocation9 + $0x10] sm:$0xff]
        %v3717 = vld [vmem:[#allocation9 + $0x18] sm:$0xff]
        %v3718 = vld [vmem:[#allocation9 + $0x20] sm:$0xff]
        %v3719 = vld [vmem:[#allocation9 + $0x28] sm:$0xff]
        %v3720 = vld [vmem:[#allocation9 + $0x30] sm:$0xff]
        %v3721 = vld [vmem:[#allocation9 + $0x38] sm:$0xff]
        %v3722 = vld [vmem:[#allocation9 + $0x40] sm:$0xff]
        %v3723 = vld [vmem:[#allocation9 + $0x48] sm:$0xff]
        %v3724 = vld [vmem:[#allocation9 + $0x50] sm:$0xff]
        %v3725 = vld [vmem:[#allocation9 + $0x58] sm:$0xff]
        %v3726 = vld [vmem:[#allocation9 + $0x60] sm:$0xff]
        %v3727 = vld [vmem:[#allocation9 + $0x68] sm:$0xff]
        %v3728 = vld [vmem:[#allocation9 + $0x70] sm:$0xff]
        %v3729 = vld [vmem:[#allocation9 + $0x78] sm:$0xff]
        %v3730 = vld [vmem:[#allocation9 + $0x80] sm:$0xff]
        %v3731 = vld [vmem:[#allocation9 + $0x88] sm:$0xff]
        %v3732 = vld [vmem:[#allocation9 + $0x90] sm:$0xff]
        %v3733 = vld [vmem:[#allocation9 + $0x98] sm:$0xff]
        %v3734 = vld [vmem:[#allocation9 + $0xa0] sm:$0xff]
        %v3735 = vld [vmem:[#allocation9 + $0xa8] sm:$0xff]
        %v3736 = vld [vmem:[#allocation9 + $0xb0] sm:$0xff]
        %v3737 = vld [vmem:[#allocation9 + $0xb8] sm:$0xff]
        %v3738 = vld [vmem:[#allocation9 + $0xc0] sm:$0xff]
        %v3739 = vld [vmem:[#allocation9 + $0xc8] sm:$0xff]
        %v3740 = vld [vmem:[#allocation9 + $0xd0] sm:$0xff]
        %v3741 = vld [vmem:[#allocation9 + $0xd8] sm:$0xff]
        %v3742 = vld [vmem:[#allocation9 + $0xe0] sm:$0xff]
        %v3743 = vld [vmem:[#allocation9 + $0xe8] sm:$0xff]
        %v3744 = vld [vmem:[#allocation9 + $0xf0] sm:$0xff]
        %v3745 = vld [vmem:[#allocation9 + $0xf8] sm:$0xff]
        %v3746 = vld [vmem:[#allocation9 + $0x100] sm:$0xff]
        %v3747 = vld [vmem:[#allocation9 + $0x108] sm:$0xff]
        %v3748 = vld [vmem:[#allocation9 + $0x110] sm:$0xff]
        %v3749 = vld [vmem:[#allocation9 + $0x118] sm:$0xff]
        %v3750 = vld [vmem:[#allocation9 + $0x120] sm:$0xff]
        %v3751 = vld [vmem:[#allocation9 + $0x128] sm:$0xff]
        %v3752 = vld [vmem:[#allocation9 + $0x130] sm:$0xff]
        %v3753 = vld [vmem:[#allocation9 + $0x138] sm:$0xff]
        %v3754 = vld [vmem:[#allocation9 + $0x140] sm:$0xff]
        %v3755 = vld [vmem:[#allocation9 + $0x148] sm:$0xff]
        %v3756 = vld [vmem:[#allocation9 + $0x150] sm:$0xff]
        %v3757 = vld [vmem:[#allocation9 + $0x158] sm:$0xff]
        %v3758 = vld [vmem:[#allocation9 + $0x160] sm:$0xff]
        %v3759 = vld [vmem:[#allocation9 + $0x168] sm:$0xff]
        %v3760 = vld [vmem:[#allocation9 + $0x170] sm:$0xff]
        %v3761 = vld [vmem:[#allocation9 + $0x178] sm:$0xff]
        %v3762 = vld [vmem:[#allocation9 + $0x180] sm:$0xff]
        %v3763 = vld [vmem:[#allocation9 + $0x188] sm:$0xff]
        %v3764 = vld [vmem:[#allocation9 + $0x190] sm:$0xff]
        %v3765 = vld [vmem:[#allocation9 + $0x198] sm:$0xff]
        %v3766 = vld [vmem:[#allocation9 + $0x1a0] sm:$0xff]
        %v3767 = vld [vmem:[#allocation9 + $0x1a8] sm:$0xff]
        %v3768 = vld [vmem:[#allocation9 + $0x1b0] sm:$0xff]
        %v3769 = vld [vmem:[#allocation9 + $0x1b8] sm:$0xff]
        %v3770 = vld [vmem:[#allocation9 + $0x1c0] sm:$0xff]
        %v3771 = vld [vmem:[#allocation9 + $0x1c8] sm:$0xff]
        %v3772 = vld [vmem:[#allocation9 + $0x1d0] sm:$0xff]
        %v3773 = vld [vmem:[#allocation9 + $0x1d8] sm:$0xff]
        %v3774 = vld [vmem:[#allocation9 + $0x1e0] sm:$0xff]
        %v3775 = vld [vmem:[#allocation9 + $0x1e8] sm:$0xff]
        %v3776 = vld [vmem:[#allocation9 + $0x1f0] sm:$0xff]
        %v3777 = vld [vmem:[#allocation9 + $0x1f8] sm:$0xff]
        %v3778 = vld [vmem:[#allocation9 + $0x200] sm:$0xff]
        %v3779 = vld [vmem:[#allocation9 + $0x208] sm:$0xff]
        %v3780 = vld [vmem:[#allocation9 + $0x210] sm:$0xff]
        %v3781 = vld [vmem:[#allocation9 + $0x218] sm:$0xff]
        %v3782 = vld [vmem:[#allocation9 + $0x220] sm:$0xff]
        %v3783 = vld [vmem:[#allocation9 + $0x228] sm:$0xff]
        %v3784 = vld [vmem:[#allocation9 + $0x230] sm:$0xff]
        %v3785 = vld [vmem:[#allocation9 + $0x238] sm:$0xff]
        %v3786 = vld [vmem:[#allocation9 + $0x240] sm:$0xff]
        %v3787 = vld [vmem:[#allocation9 + $0x248] sm:$0xff]
        %v3788 = vld [vmem:[#allocation9 + $0x250] sm:$0xff]
        %v3789 = vld [vmem:[#allocation9 + $0x258] sm:$0xff]
        %v3790 = vld [vmem:[#allocation9 + $0x260] sm:$0xff]
        %v3791 = vld [vmem:[#allocation9 + $0x268] sm:$0xff]
        %v3792 = vld [vmem:[#allocation9 + $0x270] sm:$0xff]
        %v3793 = vld [vmem:[#allocation9 + $0x278] sm:$0xff]
        %v3794 = vld [vmem:[#allocation9 + $0x280] sm:$0xff]
        %v3795 = vld [vmem:[#allocation9 + $0x288] sm:$0xff]
        %v3796 = vld [vmem:[#allocation9 + $0x290] sm:$0xff]
        %v3797 = vld [vmem:[#allocation9 + $0x298] sm:$0xff]
        %v3798 = vld [vmem:[#allocation9 + $0x2a0] sm:$0xff]
        %v3799 = vld [vmem:[#allocation9 + $0x2a8] sm:$0xff]
        %v3800 = vld [vmem:[#allocation9 + $0x2b0] sm:$0xff]
        %v3801 = vld [vmem:[#allocation9 + $0x2b8] sm:$0xff]
        %v3802 = vld [vmem:[#allocation9 + $0x2c0] sm:$0xff]
        %v3803 = vld [vmem:[#allocation9 + $0x2c8] sm:$0xff]
        %v3804 = vld [vmem:[#allocation9 + $0x2d0] sm:$0xff]
        %v3805 = vld [vmem:[#allocation9 + $0x2d8] sm:$0xff]
        %v3806 = vld [vmem:[#allocation9 + $0x2e0] sm:$0xff]
        %v3807 = vld [vmem:[#allocation9 + $0x2e8] sm:$0xff]
        %v3808 = vld [vmem:[#allocation9 + $0x2f0] sm:$0xff]
        %v3809 = vld [vmem:[#allocation9 + $0x2f8] sm:$0xff]
        %v3810 = vld [vmem:[#allocation9 + $0x300] sm:$0xff]
        %v3811 = vld [vmem:[#allocation9 + $0x308] sm:$0xff]
        %v3812 = vld [vmem:[#allocation9 + $0x310] sm:$0xff]
        %v3813 = vld [vmem:[#allocation9 + $0x318] sm:$0xff]
        %v3814 = vld [vmem:[#allocation9 + $0x320] sm:$0xff]
        %v3815 = vld [vmem:[#allocation9 + $0x328] sm:$0xff]
        %v3816 = vld [vmem:[#allocation9 + $0x330] sm:$0xff]
        %v3817 = vld [vmem:[#allocation9 + $0x338] sm:$0xff]
        %v3818 = vld [vmem:[#allocation9 + $0x340] sm:$0xff]
        %v3819 = vld [vmem:[#allocation9 + $0x348] sm:$0xff]
        %v3820 = vld [vmem:[#allocation9 + $0x350] sm:$0xff]
        %v3821 = vld [vmem:[#allocation9 + $0x358] sm:$0xff]
        %v3822 = vld [vmem:[#allocation9 + $0x360] sm:$0xff]
        %v3823 = vld [vmem:[#allocation9 + $0x368] sm:$0xff]
        %v3824 = vld [vmem:[#allocation9 + $0x370] sm:$0xff]
        %v3825 = vld [vmem:[#allocation9 + $0x378] sm:$0xff]
        %v3826 = vld [vmem:[#allocation9 + $0x380] sm:$0xff]
        %v3827 = vld [vmem:[#allocation9 + $0x388] sm:$0xff]
        %v3828 = vld [vmem:[#allocation9 + $0x390] sm:$0xff]
        %v3829 = vld [vmem:[#allocation9 + $0x398] sm:$0xff]
        %v3830 = vld [vmem:[#allocation9 + $0x3a0] sm:$0xff]
        %v3831 = vld [vmem:[#allocation9 + $0x3a8] sm:$0xff]
        %v3832 = vld [vmem:[#allocation9 + $0x3b0] sm:$0xff]
        %v3833 = vld [vmem:[#allocation9 + $0x3b8] sm:$0xff]
        %v3834 = vld [vmem:[#allocation9 + $0x3c0] sm:$0xff]
        %v3835 = vld [vmem:[#allocation9 + $0x3c8] sm:$0xff]
        %v3836 = vld [vmem:[#allocation9 + $0x3d0] sm:$0xff]
        %v3837 = vld [vmem:[#allocation9 + $0x3d8] sm:$0xff]
        %v3838 = vld [vmem:[#allocation9 + $0x3e0] sm:$0xff]
        %v3839 = vld [vmem:[#allocation9 + $0x3e8] sm:$0xff]
        %v3840 = vld [vmem:[#allocation9 + $0x3f0] sm:$0xff]
        %v3841 = vld [vmem:[#allocation9 + $0x3f8] sm:$0xff]
        %v3842 = vld [vmem:[#allocation10] sm:$0xf]
        %v3844 = vperm.slane %v3842, 0
        %v3845 = vperm.slane %v3842, 1
        %v3846 = vperm.slane %v3842, 2
        %v3847 = vperm.slane %v3842, 3
        %3852 = vst [vmem:[#allocation1] ss:$9 sm:$0xff] %v3294
        %s3853 = scalar_lea.vmem [#allocation1], 1
        %3854 = vst [vmem:[%s3853] ss:$9 sm:$0xff] %v3296
        %s3855 = scalar_lea.vmem [#allocation1], 2
        %3856 = vst [vmem:[%s3855] ss:$9 sm:$0xff] %v3298
        %s3857 = scalar_lea.vmem [#allocation1], 3
        %3858 = vst [vmem:[%s3857] ss:$9 sm:$0xff] %v3300
        %s3859 = scalar_lea.vmem [#allocation1], 4
        %3860 = vst [vmem:[%s3859] ss:$9 sm:$0xff] %v3302
        %s3861 = scalar_lea.vmem [#allocation1], 5
        %3862 = vst [vmem:[%s3861] ss:$9 sm:$0xff] %v3304
        %s3863 = scalar_lea.vmem [#allocation1], 6
        %3864 = vst [vmem:[%s3863] ss:$9 sm:$0xff] %v3306
        %s3865 = scalar_lea.vmem [#allocation1], 7
        %3866 = vst [vmem:[%s3865] ss:$9 sm:$0xff] %v3308
        %v3867 = vld [vmem:[#allocation1] sm:$0xff]
        %v3868 = vld [vmem:[#allocation1 + $0x9] sm:$0xff]
        %3869 = vst [vmem:[#allocation1] ss:$9 sm:$0xff] %v3309
        %3870 = vst [vmem:[%s3853] ss:$9 sm:$0xff] %v3311
        %3871 = vst [vmem:[%s3855] ss:$9 sm:$0xff] %v3313
        %3872 = vst [vmem:[%s3857] ss:$9 sm:$0xff] %v3315
        %3873 = vst [vmem:[%s3859] ss:$9 sm:$0xff] %v3317
        %3874 = vst [vmem:[%s3861] ss:$9 sm:$0xff] %v3319
        %3875 = vst [vmem:[%s3863] ss:$9 sm:$0xff] %v3321
        %3876 = vst [vmem:[%s3865] ss:$9 sm:$0xff] %v3322
        %v3877 = vld [vmem:[#allocation1] sm:$0xff]
        %v3878 = vld [vmem:[#allocation1 + $0x9] sm:$0xff]
        %3879 = vst [vmem:[#allocation1] ss:$9 sm:$0xff] %v3324
        %3880 = vst [vmem:[%s3853] ss:$9 sm:$0xff] %v3326
        %3881 = vst [vmem:[%s3855] ss:$9 sm:$0xff] %v3328
        %3882 = vst [vmem:[%s3857] ss:$9 sm:$0xff] %v3330
        %3883 = vst [vmem:[%s3859] ss:$9 sm:$0xff] %v3332
        %3884 = vst [vmem:[%s3861] ss:$9 sm:$0xff] %v3334
        %3885 = vst [vmem:[%s3863] ss:$9 sm:$0xff] %v3336
        %3886 = vst [vmem:[%s3865] ss:$9 sm:$0xff] %v3337
        %v3887 = vld [vmem:[#allocation1] sm:$0xff]
        %v3888 = vld [vmem:[#allocation1 + $0x9] sm:$0xff]
        %3889 = vst [vmem:[#allocation1] ss:$9 sm:$0xff] %v3339
        %3890 = vst [vmem:[%s3853] ss:$9 sm:$0xff] %v3341
        %3891 = vst [vmem:[%s3855] ss:$9 sm:$0xff] %v3343
        %3892 = vst [vmem:[%s3857] ss:$9 sm:$0xff] %v3345
        %3893 = vst [vmem:[%s3859] ss:$9 sm:$0xff] %v3347
        %3894 = vst [vmem:[%s3861] ss:$9 sm:$0xff] %v3349
        %3895 = vst [vmem:[%s3863] ss:$9 sm:$0xff] %v3350
        %3896 = vst [vmem:[%s3865] ss:$9 sm:$0xff] %v3352
        %v3897 = vld [vmem:[#allocation1] sm:$0xff]
        %v3898 = vld [vmem:[#allocation1 + $0x9] sm:$0xff]
        %3899 = vst [vmem:[#allocation1] ss:$9 sm:$0xff] %v3354
        %3900 = vst [vmem:[%s3853] ss:$9 sm:$0xff] %v3356
        %3901 = vst [vmem:[%s3855] ss:$9 sm:$0xff] %v3358
        %3902 = vst [vmem:[%s3857] ss:$9 sm:$0xff] %v3360
        %3903 = vst [vmem:[%s3859] ss:$9 sm:$0xff] %v3362
        %3904 = vst [vmem:[%s3861] ss:$9 sm:$0xff] %v3364
        %3905 = vst [vmem:[%s3863] ss:$9 sm:$0xff] %v3365
        %3906 = vst [vmem:[%s3865] ss:$9 sm:$0xff] %v3367
        %v3907 = vld [vmem:[#allocation1] sm:$0xff]
        %v3908 = vld [vmem:[#allocation1 + $0x9] sm:$0xff]
        %3909 = vst [vmem:[#allocation1] ss:$9 sm:$0xff] %v3369
        %3910 = vst [vmem:[%s3853] ss:$9 sm:$0xff] %v3371
        %3911 = vst [vmem:[%s3855] ss:$9 sm:$0xff] %v3373
        %3912 = vst [vmem:[%s3857] ss:$9 sm:$0xff] %v3375
        %3913 = vst [vmem:[%s3859] ss:$9 sm:$0xff] %v3377
        %3914 = vst [vmem:[%s3861] ss:$9 sm:$0xff] %v3378
        %3915 = vst [vmem:[%s3863] ss:$9 sm:$0xff] %v3380
        %3916 = vst [vmem:[%s3865] ss:$9 sm:$0xff] %v3382
        %v3917 = vld [vmem:[#allocation1] sm:$0xff]
        %v3918 = vld [vmem:[#allocation1 + $0x9] sm:$0xff]
        %3919 = vst [vmem:[#allocation1] ss:$9 sm:$0xff] %v3384
        %3920 = vst [vmem:[%s3853] ss:$9 sm:$0xff] %v3386
        %3921 = vst [vmem:[%s3855] ss:$9 sm:$0xff] %v3388
        %3922 = vst [vmem:[%s3857] ss:$9 sm:$0xff] %v3390
        %3923 = vst [vmem:[%s3859] ss:$9 sm:$0xff] %v3392
        %3924 = vst [vmem:[%s3861] ss:$9 sm:$0xff] %v3393
        %3925 = vst [vmem:[%s3863] ss:$9 sm:$0xff] %v3395
        %3926 = vst [vmem:[%s3865] ss:$9 sm:$0xff] %v3397
        %v3927 = vld [vmem:[#allocation1] sm:$0xff]
        %v3928 = vld [vmem:[#allocation1 + $0x9] sm:$0xff]
        %3929 = vst [vmem:[#allocation1] ss:$9 sm:$0xff] %v3399
        %3930 = vst [vmem:[%s3853] ss:$9 sm:$0xff] %v3401
        %3931 = vst [vmem:[%s3855] ss:$9 sm:$0xff] %v3403
        %3932 = vst [vmem:[%s3857] ss:$9 sm:$0xff] %v3405
        %3933 = vst [vmem:[%s3859] ss:$9 sm:$0xff] %v3406
        %3934 = vst [vmem:[%s3861] ss:$9 sm:$0xff] %v3408
        %3935 = vst [vmem:[%s3863] ss:$9 sm:$0xff] %v3410
        %3936 = vst [vmem:[%s3865] ss:$9 sm:$0xff] %v3412
        %v3937 = vld [vmem:[#allocation1] sm:$0xff]
        %v3938 = vld [vmem:[#allocation1 + $0x9] sm:$0xff]
        %3939 = vst [vmem:[#allocation1] ss:$9 sm:$0xff] %v3414
        %3940 = vst [vmem:[%s3853] ss:$9 sm:$0xff] %v3416
        %3941 = vst [vmem:[%s3855] ss:$9 sm:$0xff] %v3418
        %3942 = vst [vmem:[%s3857] ss:$9 sm:$0xff] %v3420
        %3943 = vst [vmem:[%s3859] ss:$9 sm:$0xff] %v3421
        %3944 = vst [vmem:[%s3861] ss:$9 sm:$0xff] %v3423
        %3945 = vst [vmem:[%s3863] ss:$9 sm:$0xff] %v3425
        %3946 = vst [vmem:[%s3865] ss:$9 sm:$0xff] %v3427
        %v3947 = vld [vmem:[#allocation1] sm:$0xff]
        %v3948 = vld [vmem:[#allocation1 + $0x9] sm:$0xff]
        %3949 = vst [vmem:[#allocation1] ss:$9 sm:$0xff] %v3429
        %3950 = vst [vmem:[%s3853] ss:$9 sm:$0xff] %v3431
        %3951 = vst [vmem:[%s3855] ss:$9 sm:$0xff] %v3433
        %3952 = vst [vmem:[%s3857] ss:$9 sm:$0xff] %v3434
        %3953 = vst [vmem:[%s3859] ss:$9 sm:$0xff] %v3436
        %3954 = vst [vmem:[%s3861] ss:$9 sm:$0xff] %v3438
        %3955 = vst [vmem:[%s3863] ss:$9 sm:$0xff] %v3440
        %3956 = vst [vmem:[%s3865] ss:$9 sm:$0xff] %v3442
        %v3957 = vld [vmem:[#allocation1] sm:$0xff]
        %v3958 = vld [vmem:[#allocation1 + $0x9] sm:$0xff]
        %3959 = vst [vmem:[#allocation1] ss:$9 sm:$0xff] %v3444
        %3960 = vst [vmem:[%s3853] ss:$9 sm:$0xff] %v3446
        %3961 = vst [vmem:[%s3855] ss:$9 sm:$0xff] %v3448
        %3962 = vst [vmem:[%s3857] ss:$9 sm:$0xff] %v3449
        %3963 = vst [vmem:[%s3859] ss:$9 sm:$0xff] %v3451
        %3964 = vst [vmem:[%s3861] ss:$9 sm:$0xff] %v3453
        %3965 = vst [vmem:[%s3863] ss:$9 sm:$0xff] %v3455
        %3966 = vst [vmem:[%s3865] ss:$9 sm:$0xff] %v3457
        %v3967 = vld [vmem:[#allocation1] sm:$0xff]
        %v3968 = vld [vmem:[#allocation1 + $0x9] sm:$0xff]
        %3969 = vst [vmem:[#allocation1] ss:$9 sm:$0xff] %v3459
        %3970 = vst [vmem:[%s3853] ss:$9 sm:$0xff] %v3461
        %3971 = vst [vmem:[%s3855] ss:$9 sm:$0xff] %v3462
        %3972 = vst [vmem:[%s3857] ss:$9 sm:$0xff] %v3464
        %3973 = vst [vmem:[%s3859] ss:$9 sm:$0xff] %v3466
        %3974 = vst [vmem:[%s3861] ss:$9 sm:$0xff] %v3468
        %3975 = vst [vmem:[%s3863] ss:$9 sm:$0xff] %v3470
        %3976 = vst [vmem:[%s3865] ss:$9 sm:$0xff] %v3472
        %v3977 = vld [vmem:[#allocation1] sm:$0xff]
        %v3978 = vld [vmem:[#allocation1 + $0x9] sm:$0xff]
        %3979 = vst [vmem:[#allocation1] ss:$9 sm:$0xff] %v3474
        %3980 = vst [vmem:[%s3853] ss:$9 sm:$0xff] %v3476
        %3981 = vst [vmem:[%s3855] ss:$9 sm:$0xff] %v3477
        %3982 = vst [vmem:[%s3857] ss:$9 sm:$0xff] %v3479
        %3983 = vst [vmem:[%s3859] ss:$9 sm:$0xff] %v3481
        %3984 = vst [vmem:[%s3861] ss:$9 sm:$0xff] %v3483
        %3985 = vst [vmem:[%s3863] ss:$9 sm:$0xff] %v3485
        %3986 = vst [vmem:[%s3865] ss:$9 sm:$0xff] %v3487
        %v3987 = vld [vmem:[#allocation1] sm:$0xff]
        %v3988 = vld [vmem:[#allocation1 + $0x9] sm:$0xff]
        %3989 = vst [vmem:[#allocation1] ss:$9 sm:$0xff] %v3489
        %3990 = vst [vmem:[%s3853] ss:$9 sm:$0xff] %v3490
        %3991 = vst [vmem:[%s3855] ss:$9 sm:$0xff] %v3492
        %3992 = vst [vmem:[%s3857] ss:$9 sm:$0xff] %v3494
        %3993 = vst [vmem:[%s3859] ss:$9 sm:$0xff] %v3496
        %3994 = vst [vmem:[%s3861] ss:$9 sm:$0xff] %v3498
        %3995 = vst [vmem:[%s3863] ss:$9 sm:$0xff] %v3500
        %3996 = vst [vmem:[%s3865] ss:$9 sm:$0xff] %v3502
        %v3997 = vld [vmem:[#allocation1] sm:$0xff]
        %v3998 = vld [vmem:[#allocation1 + $0x9] sm:$0xff]
        %3999 = vst [vmem:[#allocation1] ss:$9 sm:$0xff] %v3504
        %4000 = vst [vmem:[%s3853] ss:$9 sm:$0xff] %v3505
        %4001 = vst [vmem:[%s3855] ss:$9 sm:$0xff] %v3507
        %4002 = vst [vmem:[%s3857] ss:$9 sm:$0xff] %v3509
        %4003 = vst [vmem:[%s3859] ss:$9 sm:$0xff] %v3511
        %4004 = vst [vmem:[%s3861] ss:$9 sm:$0xff] %v3513
        %4005 = vst [vmem:[%s3863] ss:$9 sm:$0xff] %v3515
        %4006 = vst [vmem:[%s3865] ss:$9 sm:$0xff] %v3517
        %v4007 = vld [vmem:[#allocation1] sm:$0xff]
        %v4008 = vld [vmem:[#allocation1 + $0x9] sm:$0xff]
        %4009 = vst [vmem:[#allocation1] ss:$9 sm:$0xff] %v3518
        %4010 = vst [vmem:[%s3853] ss:$9 sm:$0xff] %v3520
        %4011 = vst [vmem:[%s3855] ss:$9 sm:$0xff] %v3522
        %4012 = vst [vmem:[%s3857] ss:$9 sm:$0xff] %v3524
        %4013 = vst [vmem:[%s3859] ss:$9 sm:$0xff] %v3526
        %4014 = vst [vmem:[%s3861] ss:$9 sm:$0xff] %v3528
        %4015 = vst [vmem:[%s3863] ss:$9 sm:$0xff] %v3530
        %4016 = vst [vmem:[%s3865] ss:$9 sm:$0xff] %v3532
        %v4017 = vld [vmem:[#allocation1] sm:$0xff]
        %v4018 = vld [vmem:[#allocation1 + $0x9] sm:$0xff]
        %4019 = vst [vmem:[#allocation1] ss:$9 sm:$0xff] %v3533
        %4020 = vst [vmem:[%s3853] ss:$9 sm:$0xff] %v3535
        %4021 = vst [vmem:[%s3855] ss:$9 sm:$0xff] %v3537
        %4022 = vst [vmem:[%s3857] ss:$9 sm:$0xff] %v3539
        %4023 = vst [vmem:[%s3859] ss:$9 sm:$0xff] %v3541
        %4024 = vst [vmem:[%s3861] ss:$9 sm:$0xff] %v3543
        %4025 = vst [vmem:[%s3863] ss:$9 sm:$0xff] %v3545
        %4026 = vst [vmem:[%s3865] ss:$9 sm:$0xff] %v3546
        %v4027 = vld [vmem:[#allocation1] sm:$0xff]
        %v4028 = vld [vmem:[#allocation1 + $0x9] sm:$0xff]
        %4029 = vst [vmem:[#allocation1] ss:$9 sm:$0xff] %v3548
        %4030 = vst [vmem:[%s3853] ss:$9 sm:$0xff] %v3550
        %4031 = vst [vmem:[%s3855] ss:$9 sm:$0xff] %v3552
        %4032 = vst [vmem:[%s3857] ss:$9 sm:$0xff] %v3554
        %4033 = vst [vmem:[%s3859] ss:$9 sm:$0xff] %v3556
        %4034 = vst [vmem:[%s3861] ss:$9 sm:$0xff] %v3558
        %4035 = vst [vmem:[%s3863] ss:$9 sm:$0xff] %v3560
        %4036 = vst [vmem:[%s3865] ss:$9 sm:$0xff] %v3561
        %v4037 = vld [vmem:[#allocation1] sm:$0xff]
        %v4038 = vld [vmem:[#allocation1 + $0x9] sm:$0xff]
        %4039 = vst [vmem:[#allocation1] ss:$9 sm:$0xff] %v3563
        %4040 = vst [vmem:[%s3853] ss:$9 sm:$0xff] %v3565
        %4041 = vst [vmem:[%s3855] ss:$9 sm:$0xff] %v3567
        %4042 = vst [vmem:[%s3857] ss:$9 sm:$0xff] %v3569
        %4043 = vst [vmem:[%s3859] ss:$9 sm:$0xff] %v3571
        %4044 = vst [vmem:[%s3861] ss:$9 sm:$0xff] %v3573
        %4045 = vst [vmem:[%s3863] ss:$9 sm:$0xff] %v3574
        %4046 = vst [vmem:[%s3865] ss:$9 sm:$0xff] %v3576
        %v4047 = vld [vmem:[#allocation1] sm:$0xff]
        %v4048 = vld [vmem:[#allocation1 + $0x9] sm:$0xff]
        %4049 = vst [vmem:[#allocation1] ss:$9 sm:$0xff] %v3578
        %4050 = vst [vmem:[%s3853] ss:$9 sm:$0xff] %v3580
        %4051 = vst [vmem:[%s3855] ss:$9 sm:$0xff] %v3582
        %4052 = vst [vmem:[%s3857] ss:$9 sm:$0xff] %v3584
        %4053 = vst [vmem:[%s3859] ss:$9 sm:$0xff] %v3586
        %4054 = vst [vmem:[%s3861] ss:$9 sm:$0xff] %v3588
        %4055 = vst [vmem:[%s3863] ss:$9 sm:$0xff] %v3589
        %4056 = vst [vmem:[%s3865] ss:$9 sm:$0xff] %v3591
        %v4057 = vld [vmem:[#allocation1] sm:$0xff]
        %v4058 = vld [vmem:[#allocation1 + $0x9] sm:$0xff]
        %4059 = vst [vmem:[#allocation1] ss:$9 sm:$0xff] %v3593
        %4060 = vst [vmem:[%s3853] ss:$9 sm:$0xff] %v3595
        %4061 = vst [vmem:[%s3855] ss:$9 sm:$0xff] %v3597
        %4062 = vst [vmem:[%s3857] ss:$9 sm:$0xff] %v3599
        %4063 = vst [vmem:[%s3859] ss:$9 sm:$0xff] %v3601
        %4064 = vst [vmem:[%s3861] ss:$9 sm:$0xff] %v3602
        %4065 = vst [vmem:[%s3863] ss:$9 sm:$0xff] %v3604
        %4066 = vst [vmem:[%s3865] ss:$9 sm:$0xff] %v3606
        %v4067 = vld [vmem:[#allocation1] sm:$0xff]
        %v4068 = vld [vmem:[#allocation1 + $0x9] sm:$0xff]
        %4069 = vst [vmem:[#allocation1] ss:$9 sm:$0xff] %v3608
        %4070 = vst [vmem:[%s3853] ss:$9 sm:$0xff] %v3610
        %4071 = vst [vmem:[%s3855] ss:$9 sm:$0xff] %v3612
        %4072 = vst [vmem:[%s3857] ss:$9 sm:$0xff] %v3614
        %4073 = vst [vmem:[%s3859] ss:$9 sm:$0xff] %v3616
        %4074 = vst [vmem:[%s3861] ss:$9 sm:$0xff] %v3617
        %4075 = vst [vmem:[%s3863] ss:$9 sm:$0xff] %v3619
        %4076 = vst [vmem:[%s3865] ss:$9 sm:$0xff] %v3621
        %v4077 = vld [vmem:[#allocation1] sm:$0xff]
        %v4078 = vld [vmem:[#allocation1 + $0x9] sm:$0xff]
        %4079 = vst [vmem:[#allocation1] ss:$9 sm:$0xff] %v3623
        %4080 = vst [vmem:[%s3853] ss:$9 sm:$0xff] %v3625
        %4081 = vst [vmem:[%s3855] ss:$9 sm:$0xff] %v3627
        %4082 = vst [vmem:[%s3857] ss:$9 sm:$0xff] %v3629
        %4083 = vst [vmem:[%s3859] ss:$9 sm:$0xff] %v3630
        %4084 = vst [vmem:[%s3861] ss:$9 sm:$0xff] %v3632
        %4085 = vst [vmem:[%s3863] ss:$9 sm:$0xff] %v3634
        %4086 = vst [vmem:[%s3865] ss:$9 sm:$0xff] %v3636
        %v4087 = vld [vmem:[#allocation1] sm:$0xff]
        %v4088 = vld [vmem:[#allocation1 + $0x9] sm:$0xff]
        %4089 = vst [vmem:[#allocation1] ss:$9 sm:$0xff] %v3638
        %4090 = vst [vmem:[%s3853] ss:$9 sm:$0xff] %v3640
        %4091 = vst [vmem:[%s3855] ss:$9 sm:$0xff] %v3642
        %4092 = vst [vmem:[%s3857] ss:$9 sm:$0xff] %v3644
        %4093 = vst [vmem:[%s3859] ss:$9 sm:$0xff] %v3645
        %4094 = vst [vmem:[%s3861] ss:$9 sm:$0xff] %v3647
        %4095 = vst [vmem:[%s3863] ss:$9 sm:$0xff] %v3649
        %4096 = vst [vmem:[%s3865] ss:$9 sm:$0xff] %v3651
        %v4097 = vld [vmem:[#allocation1] sm:$0xff]
        %v4098 = vld [vmem:[#allocation1 + $0x9] sm:$0xff]
        %4099 = vst [vmem:[#allocation1] ss:$9 sm:$0xff] %v3653
        %4100 = vst [vmem:[%s3853] ss:$9 sm:$0xff] %v3655
        %4101 = vst [vmem:[%s3855] ss:$9 sm:$0xff] %v3657
        %4102 = vst [vmem:[%s3857] ss:$9 sm:$0xff] %v3658
        %4103 = vst [vmem:[%s3859] ss:$9 sm:$0xff] %v3660
        %4104 = vst [vmem:[%s3861] ss:$9 sm:$0xff] %v3662
        %4105 = vst [vmem:[%s3863] ss:$9 sm:$0xff] %v3664
        %4106 = vst [vmem:[%s3865] ss:$9 sm:$0xff] %v3666
        %v4107 = vld [vmem:[#allocation1] sm:$0xff]
        %v4108 = vld [vmem:[#allocation1 + $0x9] sm:$0xff]
        %4109 = vst [vmem:[#allocation1] ss:$9 sm:$0xff] %v3668
        %4110 = vst [vmem:[%s3853] ss:$9 sm:$0xff] %v3670
        %4111 = vst [vmem:[%s3855] ss:$9 sm:$0xff] %v3672
        %4112 = vst [vmem:[%s3857] ss:$9 sm:$0xff] %v3673
        %4113 = vst [vmem:[%s3859] ss:$9 sm:$0xff] %v3675
        %4114 = vst [vmem:[%s3861] ss:$9 sm:$0xff] %v3677
        %4115 = vst [vmem:[%s3863] ss:$9 sm:$0xff] %v3679
        %4116 = vst [vmem:[%s3865] ss:$9 sm:$0xff] %v3681
        %v4117 = vld [vmem:[#allocation1] sm:$0xff]
        %v4118 = vld [vmem:[#allocation1 + $0x9] sm:$0xff]
        %4119 = vst [vmem:[#allocation1] ss:$9 sm:$0xff] %v3683
        %4120 = vst [vmem:[%s3853] ss:$9 sm:$0xff] %v3685
        %4121 = vst [vmem:[%s3855] ss:$9 sm:$0xff] %v3686
        %4122 = vst [vmem:[%s3857] ss:$9 sm:$0xff] %v3688
        %4123 = vst [vmem:[%s3859] ss:$9 sm:$0xff] %v3690
        %4124 = vst [vmem:[%s3861] ss:$9 sm:$0xff] %v3692
        %4125 = vst [vmem:[%s3863] ss:$9 sm:$0xff] %v3694
        %4126 = vst [vmem:[%s3865] ss:$9 sm:$0xff] %v3696
        %v4127 = vld [vmem:[#allocation1] sm:$0xff]
        %v4128 = vld [vmem:[#allocation1 + $0x9] sm:$0xff]
        %4129 = vst [vmem:[#allocation1] ss:$9 sm:$0xff] %v3698
        %4130 = vst [vmem:[%s3853] ss:$9 sm:$0xff] %v3700
        %4131 = vst [vmem:[%s3855] ss:$9 sm:$0xff] %v3701
        %4132 = vst [vmem:[%s3857] ss:$9 sm:$0xff] %v3703
        %4133 = vst [vmem:[%s3859] ss:$9 sm:$0xff] %v3705
        %4134 = vst [vmem:[%s3861] ss:$9 sm:$0xff] %v3707
        %4135 = vst [vmem:[%s3863] ss:$9 sm:$0xff] %v3709
        %4136 = vst [vmem:[%s3865] ss:$9 sm:$0xff] %v3711
        %v4137 = vld [vmem:[#allocation1] sm:$0xff]
        %v4138 = vld [vmem:[#allocation1 + $0x9] sm:$0xff]
        %4139 = vst [vmem:[#allocation1] ss:$9 sm:$0xff] %v3713
        %v4140 = vld [vmem:[#allocation1] sm:$0xff]
        %v4141 = vld [vmem:[#allocation1 + $0x9] sm:$0xff]
        %4200 = vmatpush.msra.mxu0 %v3774
        %4201 = vmatpush.msra.mxu0 %v3770
        %4202 = vmatpush.msra.mxu0 %v3766
        %4203 = vmatpush.msra.mxu0 %v3762
        %4204 = vmatpush.msra.mxu0 %v3758
        %4205 = vmatpush.msra.mxu0 %v3754
        %4206 = vmatpush.msra.mxu0 %v3750
        %4207 = vmatpush.msra.mxu0 %v3746
        %4208 = vmatpush.msra.mxu0 %v3742
        %4209 = vmatpush.msra.mxu0 %v3738
        %4210 = vmatpush.msra.mxu0 %v3734
        %4211 = vmatpush.msra.mxu0 %v3730
        %4212 = vmatpush.msra.mxu0 %v3726
        %4213 = vmatpush.msra.mxu0 %v3722
        %4214 = vmatpush.msra.mxu0 %v3718
        %4215 = vmatpush.msra.mxu0 %v3714
        %4216 = vmatmul.f32.gmra.mxu0 %v3867
        %v4217 = vpop.f32.mrf.mxu0
        %v4218 = vadd.f32 %v3844, %v4217
        %4219 = vmatmul.f32.gmra.mxu0 %v3877
        %v4220 = vpop.f32.mrf.mxu0
        %v4221 = vadd.f32 %v3844, %v4220
        %4222 = vmatmul.f32.gmra.mxu0 %v3887
        %v4223 = vpop.f32.mrf.mxu0
        %v4224 = vadd.f32 %v3844, %v4223
        %4225 = vmatmul.f32.gmra.mxu0 %v3897
        %v4226 = vpop.f32.mrf.mxu0
        %v4227 = vadd.f32 %v3844, %v4226
        %4228 = vmatmul.f32.gmra.mxu0 %v3907
        %v4229 = vpop.f32.mrf.mxu0
        %v4230 = vadd.f32 %v3844, %v4229
        %4231 = vmatmul.f32.gmra.mxu0 %v3917
        %v4232 = vpop.f32.mrf.mxu0
        %v4233 = vadd.f32 %v3844, %v4232
        %4234 = vmatmul.f32.gmra.mxu0 %v3927
        %v4235 = vpop.f32.mrf.mxu0
        %v4236 = vadd.f32 %v3844, %v4235
        %4237 = vmatmul.f32.gmra.mxu0 %v3937
        %v4238 = vpop.f32.mrf.mxu0
        %v4239 = vadd.f32 %v3844, %v4238
        %4240 = vmatmul.f32.gmra.mxu0 %v3947
        %v4241 = vpop.f32.mrf.mxu0
        %v4242 = vadd.f32 %v3844, %v4241
        %4243 = vmatmul.f32.gmra.mxu0 %v3957
        %v4244 = vpop.f32.mrf.mxu0
        %v4245 = vadd.f32 %v3844, %v4244
        %4246 = vmatmul.f32.gmra.mxu0 %v3967
        %v4247 = vpop.f32.mrf.mxu0
        %v4248 = vadd.f32 %v3844, %v4247
        %4249 = vmatmul.f32.gmra.mxu0 %v3977
        %v4250 = vpop.f32.mrf.mxu0
        %v4251 = vadd.f32 %v3844, %v4250
        %4252 = vmatmul.f32.gmra.mxu0 %v3987
        %v4253 = vpop.f32.mrf.mxu0
        %v4254 = vadd.f32 %v3844, %v4253
        %4255 = vmatmul.f32.gmra.mxu0 %v3997
        %v4256 = vpop.f32.mrf.mxu0
        %v4257 = vadd.f32 %v3844, %v4256
        %4258 = vmatmul.f32.gmra.mxu0 %v4007
        %v4259 = vpop.f32.mrf.mxu0
        %v4260 = vadd.f32 %v3844, %v4259
        %4261 = vmatmul.f32.gmra.mxu0 %v4017
        %v4262 = vpop.f32.mrf.mxu0
        %v4263 = vadd.f32 %v3844, %v4262
        %4264 = vmatmul.f32.gmra.mxu0 %v4027
        %v4265 = vpop.f32.mrf.mxu0
        %v4266 = vadd.f32 %v3844, %v4265
        %4267 = vmatmul.f32.gmra.mxu0 %v4037
        %v4268 = vpop.f32.mrf.mxu0
        %v4269 = vadd.f32 %v3844, %v4268
        %4270 = vmatmul.f32.gmra.mxu0 %v4047
        %v4271 = vpop.f32.mrf.mxu0
        %v4272 = vadd.f32 %v3844, %v4271
        %4273 = vmatmul.f32.gmra.mxu0 %v4057
        %v4274 = vpop.f32.mrf.mxu0
        %v4275 = vadd.f32 %v3844, %v4274
        %4276 = vmatmul.f32.gmra.mxu0 %v4067
        %v4277 = vpop.f32.mrf.mxu0
        %v4278 = vadd.f32 %v3844, %v4277
        %4279 = vmatmul.f32.gmra.mxu0 %v4077
        %v4280 = vpop.f32.mrf.mxu0
        %v4281 = vadd.f32 %v3844, %v4280
        %4282 = vmatmul.f32.gmra.mxu0 %v4087
        %v4283 = vpop.f32.mrf.mxu0
        %v4284 = vadd.f32 %v3844, %v4283
        %4285 = vmatmul.f32.gmra.mxu0 %v4097
        %v4286 = vpop.f32.mrf.mxu0
        %v4287 = vadd.f32 %v3844, %v4286
        %4288 = vmatmul.f32.gmra.mxu0 %v4107
        %v4289 = vpop.f32.mrf.mxu0
        %v4290 = vadd.f32 %v3844, %v4289
        %4291 = vmatmul.f32.gmra.mxu0 %v4117
        %v4292 = vpop.f32.mrf.mxu0
        %v4293 = vadd.f32 %v3844, %v4292
        %4294 = vmatmul.f32.gmra.mxu0 %v4127
        %v4295 = vpop.f32.mrf.mxu0
        %v4296 = vadd.f32 %v3844, %v4295
        %4297 = vmatmul.f32.gmra.mxu0 %v4137
        %v4298 = vpop.f32.mrf.mxu0
        %v4299 = vadd.f32 %v3844, %v4298
        %4300 = vmatmul.f32.gmra.mxu0 %v4140
        %v4301 = vpop.f32.mrf.mxu0
        %v4302 = vadd.f32 %v3844, %v4301
        %4303 = vdwg.mxu0
        %4304 = vmatpush.msra.mxu0 %v3838
        %4305 = vmatpush.msra.mxu0 %v3834
        %4306 = vmatpush.msra.mxu0 %v3830
        %4307 = vmatpush.msra.mxu0 %v3826
        %4308 = vmatpush.msra.mxu0 %v3822
        %4309 = vmatpush.msra.mxu0 %v3818
        %4310 = vmatpush.msra.mxu0 %v3814
        %4311 = vmatpush.msra.mxu0 %v3810
        %4312 = vmatpush.msra.mxu0 %v3806
        %4313 = vmatpush.msra.mxu0 %v3802
        %4314 = vmatpush.msra.mxu0 %v3798
        %4315 = vmatpush.msra.mxu0 %v3794
        %4316 = vmatpush.msra.mxu0 %v3790
        %4317 = vmatpush.msra.mxu0 %v3786
        %4318 = vmatpush.msra.mxu0 %v3782
        %4319 = vmatpush.msra.mxu0 %v3778
        %4320 = vmatmul.f32.gmra.mxu0 %v3868
        %v4321 = vpop.f32.mrf.mxu0
        %v4322 = vadd.f32 %v4218, %v4321
        %4323 = vmatmul.f32.gmra.mxu0 %v3878
        %v4324 = vpop.f32.mrf.mxu0
        %v4325 = vadd.f32 %v4221, %v4324
        %4326 = vmatmul.f32.gmra.mxu0 %v3888
        %v4327 = vpop.f32.mrf.mxu0
        %v4328 = vadd.f32 %v4224, %v4327
        %4329 = vmatmul.f32.gmra.mxu0 %v3898
        %v4330 = vpop.f32.mrf.mxu0
        %v4331 = vadd.f32 %v4227, %v4330
        %4332 = vmatmul.f32.gmra.mxu0 %v3908
        %v4333 = vpop.f32.mrf.mxu0
        %v4334 = vadd.f32 %v4230, %v4333
        %4335 = vmatmul.f32.gmra.mxu0 %v3918
        %v4336 = vpop.f32.mrf.mxu0
        %v4337 = vadd.f32 %v4233, %v4336
        %4338 = vmatmul.f32.gmra.mxu0 %v3928
        %v4339 = vpop.f32.mrf.mxu0
        %v4340 = vadd.f32 %v4236, %v4339
        %4341 = vmatmul.f32.gmra.mxu0 %v3938
        %v4342 = vpop.f32.mrf.mxu0
        %v4343 = vadd.f32 %v4239, %v4342
        %4344 = vmatmul.f32.gmra.mxu0 %v3948
        %v4345 = vpop.f32.mrf.mxu0
        %v4346 = vadd.f32 %v4242, %v4345
        %4347 = vmatmul.f32.gmra.mxu0 %v3958
        %v4348 = vpop.f32.mrf.mxu0
        %v4349 = vadd.f32 %v4245, %v4348
        %4350 = vmatmul.f32.gmra.mxu0 %v3968
        %v4351 = vpop.f32.mrf.mxu0
        %v4352 = vadd.f32 %v4248, %v4351
        %4353 = vmatmul.f32.gmra.mxu0 %v3978
        %v4354 = vpop.f32.mrf.mxu0
        %v4355 = vadd.f32 %v4251, %v4354
        %4356 = vmatmul.f32.gmra.mxu0 %v3988
        %v4357 = vpop.f32.mrf.mxu0
        %v4358 = vadd.f32 %v4254, %v4357
        %4359 = vmatmul.f32.gmra.mxu0 %v3998
        %v4360 = vpop.f32.mrf.mxu0
        %v4361 = vadd.f32 %v4257, %v4360
        %4362 = vmatmul.f32.gmra.mxu0 %v4008
        %v4363 = vpop.f32.mrf.mxu0
        %v4364 = vadd.f32 %v4260, %v4363
        %4365 = vmatmul.f32.gmra.mxu0 %v4018
        %v4366 = vpop.f32.mrf.mxu0
        %v4367 = vadd.f32 %v4263, %v4366
        %4368 = vmatmul.f32.gmra.mxu0 %v4028
        %v4369 = vpop.f32.mrf.mxu0
        %v4370 = vadd.f32 %v4266, %v4369
        %4371 = vmatmul.f32.gmra.mxu0 %v4038
        %v4372 = vpop.f32.mrf.mxu0
        %v4373 = vadd.f32 %v4269, %v4372
        %4374 = vmatmul.f32.gmra.mxu0 %v4048
        %v4375 = vpop.f32.mrf.mxu0
        %v4376 = vadd.f32 %v4272, %v4375
        %4377 = vmatmul.f32.gmra.mxu0 %v4058
        %v4378 = vpop.f32.mrf.mxu0
        %v4379 = vadd.f32 %v4275, %v4378
        %4380 = vmatmul.f32.gmra.mxu0 %v4068
        %v4381 = vpop.f32.mrf.mxu0
        %v4382 = vadd.f32 %v4278, %v4381
        %4383 = vmatmul.f32.gmra.mxu0 %v4078
        %v4384 = vpop.f32.mrf.mxu0
        %v4385 = vadd.f32 %v4281, %v4384
        %4386 = vmatmul.f32.gmra.mxu0 %v4088
        %v4387 = vpop.f32.mrf.mxu0
        %v4388 = vadd.f32 %v4284, %v4387
        %4389 = vmatmul.f32.gmra.mxu0 %v4098
        %v4390 = vpop.f32.mrf.mxu0
        %v4391 = vadd.f32 %v4287, %v4390
        %4392 = vmatmul.f32.gmra.mxu0 %v4108
        %v4393 = vpop.f32.mrf.mxu0
        %v4394 = vadd.f32 %v4290, %v4393
        %4395 = vmatmul.f32.gmra.mxu0 %v4118
        %v4396 = vpop.f32.mrf.mxu0
        %v4397 = vadd.f32 %v4293, %v4396
        %4398 = vmatmul.f32.gmra.mxu0 %v4128
        %v4399 = vpop.f32.mrf.mxu0
        %v4400 = vadd.f32 %v4296, %v4399
        %4401 = vmatmul.f32.gmra.mxu0 %v4138
        %v4402 = vpop.f32.mrf.mxu0
        %v4403 = vadd.f32 %v4299, %v4402
        %4404 = vmatmul.f32.gmra.mxu0 %v4141
        %v4405 = vpop.f32.mrf.mxu0
        %v4406 = vadd.f32 %v4302, %v4405
        %4407 = vdwg.mxu0
        %4408 = vmatpush.msra.mxu0 %v3775
        %4409 = vmatpush.msra.mxu0 %v3771
        %4410 = vmatpush.msra.mxu0 %v3767
        %4411 = vmatpush.msra.mxu0 %v3763
        %4412 = vmatpush.msra.mxu0 %v3759
        %4413 = vmatpush.msra.mxu0 %v3755
        %4414 = vmatpush.msra.mxu0 %v3751
        %4415 = vmatpush.msra.mxu0 %v3747
        %4416 = vmatpush.msra.mxu0 %v3743
        %4417 = vmatpush.msra.mxu0 %v3739
        %4418 = vmatpush.msra.mxu0 %v3735
        %4419 = vmatpush.msra.mxu0 %v3731
        %4420 = vmatpush.msra.mxu0 %v3727
        %4421 = vmatpush.msra.mxu0 %v3723
        %4422 = vmatpush.msra.mxu0 %v3719
        %4423 = vmatpush.msra.mxu0 %v3715
        %4424 = vmatmul.f32.gmra.mxu0 %v3867
        %v4425 = vpop.f32.mrf.mxu0
        %v4426 = vadd.f32 %v3845, %v4425
        %4427 = vmatmul.f32.gmra.mxu0 %v3877
        %v4428 = vpop.f32.mrf.mxu0
        %v4429 = vadd.f32 %v3845, %v4428
        %4430 = vmatmul.f32.gmra.mxu0 %v3887
        %v4431 = vpop.f32.mrf.mxu0
        %v4432 = vadd.f32 %v3845, %v4431
        %4433 = vmatmul.f32.gmra.mxu0 %v3897
        %v4434 = vpop.f32.mrf.mxu0
        %v4435 = vadd.f32 %v3845, %v4434
        %4436 = vmatmul.f32.gmra.mxu0 %v3907
        %v4437 = vpop.f32.mrf.mxu0
        %v4438 = vadd.f32 %v3845, %v4437
        %4439 = vmatmul.f32.gmra.mxu0 %v3917
        %v4440 = vpop.f32.mrf.mxu0
        %v4441 = vadd.f32 %v3845, %v4440
        %4442 = vmatmul.f32.gmra.mxu0 %v3927
        %v4443 = vpop.f32.mrf.mxu0
        %v4444 = vadd.f32 %v3845, %v4443
        %4445 = vmatmul.f32.gmra.mxu0 %v3937
        %v4446 = vpop.f32.mrf.mxu0
        %v4447 = vadd.f32 %v3845, %v4446
        %4448 = vmatmul.f32.gmra.mxu0 %v3947
        %v4449 = vpop.f32.mrf.mxu0
        %v4450 = vadd.f32 %v3845, %v4449
        %4451 = vmatmul.f32.gmra.mxu0 %v3957
        %v4452 = vpop.f32.mrf.mxu0
        %v4453 = vadd.f32 %v3845, %v4452
        %4454 = vmatmul.f32.gmra.mxu0 %v3967
        %v4455 = vpop.f32.mrf.mxu0
        %v4456 = vadd.f32 %v3845, %v4455
        %4457 = vmatmul.f32.gmra.mxu0 %v3977
        %v4458 = vpop.f32.mrf.mxu0
        %v4459 = vadd.f32 %v3845, %v4458
        %4460 = vmatmul.f32.gmra.mxu0 %v3987
        %v4461 = vpop.f32.mrf.mxu0
        %v4462 = vadd.f32 %v3845, %v4461
        %4463 = vmatmul.f32.gmra.mxu0 %v3997
        %v4464 = vpop.f32.mrf.mxu0
        %v4465 = vadd.f32 %v3845, %v4464
        %4466 = vmatmul.f32.gmra.mxu0 %v4007
        %v4467 = vpop.f32.mrf.mxu0
        %v4468 = vadd.f32 %v3845, %v4467
        %4469 = vmatmul.f32.gmra.mxu0 %v4017
        %v4470 = vpop.f32.mrf.mxu0
        %v4471 = vadd.f32 %v3845, %v4470
        %4472 = vmatmul.f32.gmra.mxu0 %v4027
        %v4473 = vpop.f32.mrf.mxu0
        %v4474 = vadd.f32 %v3845, %v4473
        %4475 = vmatmul.f32.gmra.mxu0 %v4037
        %v4476 = vpop.f32.mrf.mxu0
        %v4477 = vadd.f32 %v3845, %v4476
        %4478 = vmatmul.f32.gmra.mxu0 %v4047
        %v4479 = vpop.f32.mrf.mxu0
        %v4480 = vadd.f32 %v3845, %v4479
        %4481 = vmatmul.f32.gmra.mxu0 %v4057
        %v4482 = vpop.f32.mrf.mxu0
        %v4483 = vadd.f32 %v3845, %v4482
        %4484 = vmatmul.f32.gmra.mxu0 %v4067
        %v4485 = vpop.f32.mrf.mxu0
        %v4486 = vadd.f32 %v3845, %v4485
        %4487 = vmatmul.f32.gmra.mxu0 %v4077
        %v4488 = vpop.f32.mrf.mxu0
        %v4489 = vadd.f32 %v3845, %v4488
        %4490 = vmatmul.f32.gmra.mxu0 %v4087
        %v4491 = vpop.f32.mrf.mxu0
        %v4492 = vadd.f32 %v3845, %v4491
        %4493 = vmatmul.f32.gmra.mxu0 %v4097
        %v4494 = vpop.f32.mrf.mxu0
        %v4495 = vadd.f32 %v3845, %v4494
        %4496 = vmatmul.f32.gmra.mxu0 %v4107
        %v4497 = vpop.f32.mrf.mxu0
        %v4498 = vadd.f32 %v3845, %v4497
        %4499 = vmatmul.f32.gmra.mxu0 %v4117
        %v4500 = vpop.f32.mrf.mxu0
        %v4501 = vadd.f32 %v3845, %v4500
        %4502 = vmatmul.f32.gmra.mxu0 %v4127
        %v4503 = vpop.f32.mrf.mxu0
        %v4504 = vadd.f32 %v3845, %v4503
        %4505 = vmatmul.f32.gmra.mxu0 %v4137
        %v4506 = vpop.f32.mrf.mxu0
        %v4507 = vadd.f32 %v3845, %v4506
        %4508 = vmatmul.f32.gmra.mxu0 %v4140
        %v4509 = vpop.f32.mrf.mxu0
        %v4510 = vadd.f32 %v3845, %v4509
        %4511 = vdwg.mxu0
        %4512 = vmatpush.msra.mxu0 %v3839
        %4513 = vmatpush.msra.mxu0 %v3835
        %4514 = vmatpush.msra.mxu0 %v3831
        %4515 = vmatpush.msra.mxu0 %v3827
        %4516 = vmatpush.msra.mxu0 %v3823
        %4517 = vmatpush.msra.mxu0 %v3819
        %4518 = vmatpush.msra.mxu0 %v3815
        %4519 = vmatpush.msra.mxu0 %v3811
        %4520 = vmatpush.msra.mxu0 %v3807
        %4521 = vmatpush.msra.mxu0 %v3803
        %4522 = vmatpush.msra.mxu0 %v3799
        %4523 = vmatpush.msra.mxu0 %v3795
        %4524 = vmatpush.msra.mxu0 %v3791
        %4525 = vmatpush.msra.mxu0 %v3787
        %4526 = vmatpush.msra.mxu0 %v3783
        %4527 = vmatpush.msra.mxu0 %v3779
        %4528 = vmatmul.f32.gmra.mxu0 %v3868
        %v4529 = vpop.f32.mrf.mxu0
        %v4530 = vadd.f32 %v4426, %v4529
        %4531 = vmatmul.f32.gmra.mxu0 %v3878
        %v4532 = vpop.f32.mrf.mxu0
        %v4533 = vadd.f32 %v4429, %v4532
        %4534 = vmatmul.f32.gmra.mxu0 %v3888
        %v4535 = vpop.f32.mrf.mxu0
        %v4536 = vadd.f32 %v4432, %v4535
        %4537 = vmatmul.f32.gmra.mxu0 %v3898
        %v4538 = vpop.f32.mrf.mxu0
        %v4539 = vadd.f32 %v4435, %v4538
        %4540 = vmatmul.f32.gmra.mxu0 %v3908
        %v4541 = vpop.f32.mrf.mxu0
        %v4542 = vadd.f32 %v4438, %v4541
        %4543 = vmatmul.f32.gmra.mxu0 %v3918
        %v4544 = vpop.f32.mrf.mxu0
        %v4545 = vadd.f32 %v4441, %v4544
        %4546 = vmatmul.f32.gmra.mxu0 %v3928
        %v4547 = vpop.f32.mrf.mxu0
        %v4548 = vadd.f32 %v4444, %v4547
        %4549 = vmatmul.f32.gmra.mxu0 %v3938
        %v4550 = vpop.f32.mrf.mxu0
        %v4551 = vadd.f32 %v4447, %v4550
        %4552 = vmatmul.f32.gmra.mxu0 %v3948
        %v4553 = vpop.f32.mrf.mxu0
        %v4554 = vadd.f32 %v4450, %v4553
        %4555 = vmatmul.f32.gmra.mxu0 %v3958
        %v4556 = vpop.f32.mrf.mxu0
        %v4557 = vadd.f32 %v4453, %v4556
        %4558 = vmatmul.f32.gmra.mxu0 %v3968
        %v4559 = vpop.f32.mrf.mxu0
        %v4560 = vadd.f32 %v4456, %v4559
        %4561 = vmatmul.f32.gmra.mxu0 %v3978
        %v4562 = vpop.f32.mrf.mxu0
        %v4563 = vadd.f32 %v4459, %v4562
        %4564 = vmatmul.f32.gmra.mxu0 %v3988
        %v4565 = vpop.f32.mrf.mxu0
        %v4566 = vadd.f32 %v4462, %v4565
        %4567 = vmatmul.f32.gmra.mxu0 %v3998
        %v4568 = vpop.f32.mrf.mxu0
        %v4569 = vadd.f32 %v4465, %v4568
        %4570 = vmatmul.f32.gmra.mxu0 %v4008
        %v4571 = vpop.f32.mrf.mxu0
        %v4572 = vadd.f32 %v4468, %v4571
        %4573 = vmatmul.f32.gmra.mxu0 %v4018
        %v4574 = vpop.f32.mrf.mxu0
        %v4575 = vadd.f32 %v4471, %v4574
        %4576 = vmatmul.f32.gmra.mxu0 %v4028
        %v4577 = vpop.f32.mrf.mxu0
        %v4578 = vadd.f32 %v4474, %v4577
        %4579 = vmatmul.f32.gmra.mxu0 %v4038
        %v4580 = vpop.f32.mrf.mxu0
        %v4581 = vadd.f32 %v4477, %v4580
        %4582 = vmatmul.f32.gmra.mxu0 %v4048
        %v4583 = vpop.f32.mrf.mxu0
        %v4584 = vadd.f32 %v4480, %v4583
        %4585 = vmatmul.f32.gmra.mxu0 %v4058
        %v4586 = vpop.f32.mrf.mxu0
        %v4587 = vadd.f32 %v4483, %v4586
        %4588 = vmatmul.f32.gmra.mxu0 %v4068
        %v4589 = vpop.f32.mrf.mxu0
        %v4590 = vadd.f32 %v4486, %v4589
        %4591 = vmatmul.f32.gmra.mxu0 %v4078
        %v4592 = vpop.f32.mrf.mxu0
        %v4593 = vadd.f32 %v4489, %v4592
        %4594 = vmatmul.f32.gmra.mxu0 %v4088
        %v4595 = vpop.f32.mrf.mxu0
        %v4596 = vadd.f32 %v4492, %v4595
        %4597 = vmatmul.f32.gmra.mxu0 %v4098
        %v4598 = vpop.f32.mrf.mxu0
        %v4599 = vadd.f32 %v4495, %v4598
        %4600 = vmatmul.f32.gmra.mxu0 %v4108
        %v4601 = vpop.f32.mrf.mxu0
        %v4602 = vadd.f32 %v4498, %v4601
        %4603 = vmatmul.f32.gmra.mxu0 %v4118
        %v4604 = vpop.f32.mrf.mxu0
        %v4605 = vadd.f32 %v4501, %v4604
        %4606 = vmatmul.f32.gmra.mxu0 %v4128
        %v4607 = vpop.f32.mrf.mxu0
        %v4608 = vadd.f32 %v4504, %v4607
        %4609 = vmatmul.f32.gmra.mxu0 %v4138
        %v4610 = vpop.f32.mrf.mxu0
        %v4611 = vadd.f32 %v4507, %v4610
        %4612 = vmatmul.f32.gmra.mxu0 %v4141
        %v4613 = vpop.f32.mrf.mxu0
        %v4614 = vadd.f32 %v4510, %v4613
        %4615 = vdwg.mxu0
        %4616 = vmatpush.msra.mxu0 %v3776
        %4617 = vmatpush.msra.mxu0 %v3772
        %4618 = vmatpush.msra.mxu0 %v3768
        %4619 = vmatpush.msra.mxu0 %v3764
        %4620 = vmatpush.msra.mxu0 %v3760
        %4621 = vmatpush.msra.mxu0 %v3756
        %4622 = vmatpush.msra.mxu0 %v3752
        %4623 = vmatpush.msra.mxu0 %v3748
        %4624 = vmatpush.msra.mxu0 %v3744
        %4625 = vmatpush.msra.mxu0 %v3740
        %4626 = vmatpush.msra.mxu0 %v3736
        %4627 = vmatpush.msra.mxu0 %v3732
        %4628 = vmatpush.msra.mxu0 %v3728
        %4629 = vmatpush.msra.mxu0 %v3724
        %4630 = vmatpush.msra.mxu0 %v3720
        %4631 = vmatpush.msra.mxu0 %v3716
        %4632 = vmatmul.f32.gmra.mxu0 %v3867
        %v4633 = vpop.f32.mrf.mxu0
        %v4634 = vadd.f32 %v3846, %v4633
        %4635 = vmatmul.f32.gmra.mxu0 %v3877
        %v4636 = vpop.f32.mrf.mxu0
        %v4637 = vadd.f32 %v3846, %v4636
        %4638 = vmatmul.f32.gmra.mxu0 %v3887
        %v4639 = vpop.f32.mrf.mxu0
        %v4640 = vadd.f32 %v3846, %v4639
        %4641 = vmatmul.f32.gmra.mxu0 %v3897
        %v4642 = vpop.f32.mrf.mxu0
        %v4643 = vadd.f32 %v3846, %v4642
        %4644 = vmatmul.f32.gmra.mxu0 %v3907
        %v4645 = vpop.f32.mrf.mxu0
        %v4646 = vadd.f32 %v3846, %v4645
        %4647 = vmatmul.f32.gmra.mxu0 %v3917
        %v4648 = vpop.f32.mrf.mxu0
        %v4649 = vadd.f32 %v3846, %v4648
        %4650 = vmatmul.f32.gmra.mxu0 %v3927
        %v4651 = vpop.f32.mrf.mxu0
        %v4652 = vadd.f32 %v3846, %v4651
        %4653 = vmatmul.f32.gmra.mxu0 %v3937
        %v4654 = vpop.f32.mrf.mxu0
        %v4655 = vadd.f32 %v3846, %v4654
        %4656 = vmatmul.f32.gmra.mxu0 %v3947
        %v4657 = vpop.f32.mrf.mxu0
        %v4658 = vadd.f32 %v3846, %v4657
        %4659 = vmatmul.f32.gmra.mxu0 %v3957
        %v4660 = vpop.f32.mrf.mxu0
        %v4661 = vadd.f32 %v3846, %v4660
        %4662 = vmatmul.f32.gmra.mxu0 %v3967
        %v4663 = vpop.f32.mrf.mxu0
        %v4664 = vadd.f32 %v3846, %v4663
        %4665 = vmatmul.f32.gmra.mxu0 %v3977
        %v4666 = vpop.f32.mrf.mxu0
        %v4667 = vadd.f32 %v3846, %v4666
        %4668 = vmatmul.f32.gmra.mxu0 %v3987
        %v4669 = vpop.f32.mrf.mxu0
        %v4670 = vadd.f32 %v3846, %v4669
        %4671 = vmatmul.f32.gmra.mxu0 %v3997
        %v4672 = vpop.f32.mrf.mxu0
        %v4673 = vadd.f32 %v3846, %v4672
        %4674 = vmatmul.f32.gmra.mxu0 %v4007
        %v4675 = vpop.f32.mrf.mxu0
        %v4676 = vadd.f32 %v3846, %v4675
        %4677 = vmatmul.f32.gmra.mxu0 %v4017
        %v4678 = vpop.f32.mrf.mxu0
        %v4679 = vadd.f32 %v3846, %v4678
        %4680 = vmatmul.f32.gmra.mxu0 %v4027
        %v4681 = vpop.f32.mrf.mxu0
        %v4682 = vadd.f32 %v3846, %v4681
        %4683 = vmatmul.f32.gmra.mxu0 %v4037
        %v4684 = vpop.f32.mrf.mxu0
        %v4685 = vadd.f32 %v3846, %v4684
        %4686 = vmatmul.f32.gmra.mxu0 %v4047
        %v4687 = vpop.f32.mrf.mxu0
        %v4688 = vadd.f32 %v3846, %v4687
        %4689 = vmatmul.f32.gmra.mxu0 %v4057
        %v4690 = vpop.f32.mrf.mxu0
        %v4691 = vadd.f32 %v3846, %v4690
        %4692 = vmatmul.f32.gmra.mxu0 %v4067
        %v4693 = vpop.f32.mrf.mxu0
        %v4694 = vadd.f32 %v3846, %v4693
        %4695 = vmatmul.f32.gmra.mxu0 %v4077
        %v4696 = vpop.f32.mrf.mxu0
        %v4697 = vadd.f32 %v3846, %v4696
        %4698 = vmatmul.f32.gmra.mxu0 %v4087
        %v4699 = vpop.f32.mrf.mxu0
        %v4700 = vadd.f32 %v3846, %v4699
        %4701 = vmatmul.f32.gmra.mxu0 %v4097
        %v4702 = vpop.f32.mrf.mxu0
        %v4703 = vadd.f32 %v3846, %v4702
        %4704 = vmatmul.f32.gmra.mxu0 %v4107
        %v4705 = vpop.f32.mrf.mxu0
        %v4706 = vadd.f32 %v3846, %v4705
        %4707 = vmatmul.f32.gmra.mxu0 %v4117
        %v4708 = vpop.f32.mrf.mxu0
        %v4709 = vadd.f32 %v3846, %v4708
        %4710 = vmatmul.f32.gmra.mxu0 %v4127
        %v4711 = vpop.f32.mrf.mxu0
        %v4712 = vadd.f32 %v3846, %v4711
        %4713 = vmatmul.f32.gmra.mxu0 %v4137
        %v4714 = vpop.f32.mrf.mxu0
        %v4715 = vadd.f32 %v3846, %v4714
        %4716 = vmatmul.f32.gmra.mxu0 %v4140
        %v4717 = vpop.f32.mrf.mxu0
        %v4718 = vadd.f32 %v3846, %v4717
        %4719 = vdwg.mxu0
        %4720 = vmatpush.msra.mxu0 %v3840
        %4721 = vmatpush.msra.mxu0 %v3836
        %4722 = vmatpush.msra.mxu0 %v3832
        %4723 = vmatpush.msra.mxu0 %v3828
        %4724 = vmatpush.msra.mxu0 %v3824
        %4725 = vmatpush.msra.mxu0 %v3820
        %4726 = vmatpush.msra.mxu0 %v3816
        %4727 = vmatpush.msra.mxu0 %v3812
        %4728 = vmatpush.msra.mxu0 %v3808
        %4729 = vmatpush.msra.mxu0 %v3804
        %4730 = vmatpush.msra.mxu0 %v3800
        %4731 = vmatpush.msra.mxu0 %v3796
        %4732 = vmatpush.msra.mxu0 %v3792
        %4733 = vmatpush.msra.mxu0 %v3788
        %4734 = vmatpush.msra.mxu0 %v3784
        %4735 = vmatpush.msra.mxu0 %v3780
        %4736 = vmatmul.f32.gmra.mxu0 %v3868
        %v4737 = vpop.f32.mrf.mxu0
        %v4738 = vadd.f32 %v4634, %v4737
        %4739 = vmatmul.f32.gmra.mxu0 %v3878
        %v4740 = vpop.f32.mrf.mxu0
        %v4741 = vadd.f32 %v4637, %v4740
        %4742 = vmatmul.f32.gmra.mxu0 %v3888
        %v4743 = vpop.f32.mrf.mxu0
        %v4744 = vadd.f32 %v4640, %v4743
        %4745 = vmatmul.f32.gmra.mxu0 %v3898
        %v4746 = vpop.f32.mrf.mxu0
        %v4747 = vadd.f32 %v4643, %v4746
        %4748 = vmatmul.f32.gmra.mxu0 %v3908
        %v4749 = vpop.f32.mrf.mxu0
        %v4750 = vadd.f32 %v4646, %v4749
        %4751 = vmatmul.f32.gmra.mxu0 %v3918
        %v4752 = vpop.f32.mrf.mxu0
        %v4753 = vadd.f32 %v4649, %v4752
        %4754 = vmatmul.f32.gmra.mxu0 %v3928
        %v4755 = vpop.f32.mrf.mxu0
        %v4756 = vadd.f32 %v4652, %v4755
        %4757 = vmatmul.f32.gmra.mxu0 %v3938
        %v4758 = vpop.f32.mrf.mxu0
        %v4759 = vadd.f32 %v4655, %v4758
        %4760 = vmatmul.f32.gmra.mxu0 %v3948
        %v4761 = vpop.f32.mrf.mxu0
        %v4762 = vadd.f32 %v4658, %v4761
        %4763 = vmatmul.f32.gmra.mxu0 %v3958
        %v4764 = vpop.f32.mrf.mxu0
        %v4765 = vadd.f32 %v4661, %v4764
        %4766 = vmatmul.f32.gmra.mxu0 %v3968
        %v4767 = vpop.f32.mrf.mxu0
        %v4768 = vadd.f32 %v4664, %v4767
        %4769 = vmatmul.f32.gmra.mxu0 %v3978
        %v4770 = vpop.f32.mrf.mxu0
        %v4771 = vadd.f32 %v4667, %v4770
        %4772 = vmatmul.f32.gmra.mxu0 %v3988
        %v4773 = vpop.f32.mrf.mxu0
        %v4774 = vadd.f32 %v4670, %v4773
        %4775 = vmatmul.f32.gmra.mxu0 %v3998
        %v4776 = vpop.f32.mrf.mxu0
        %v4777 = vadd.f32 %v4673, %v4776
        %4778 = vmatmul.f32.gmra.mxu0 %v4008
        %v4779 = vpop.f32.mrf.mxu0
        %v4780 = vadd.f32 %v4676, %v4779
        %4781 = vmatmul.f32.gmra.mxu0 %v4018
        %v4782 = vpop.f32.mrf.mxu0
        %v4783 = vadd.f32 %v4679, %v4782
        %4784 = vmatmul.f32.gmra.mxu0 %v4028
        %v4785 = vpop.f32.mrf.mxu0
        %v4786 = vadd.f32 %v4682, %v4785
        %4787 = vmatmul.f32.gmra.mxu0 %v4038
        %v4788 = vpop.f32.mrf.mxu0
        %v4789 = vadd.f32 %v4685, %v4788
        %4790 = vmatmul.f32.gmra.mxu0 %v4048
        %v4791 = vpop.f32.mrf.mxu0
        %v4792 = vadd.f32 %v4688, %v4791
        %4793 = vmatmul.f32.gmra.mxu0 %v4058
        %v4794 = vpop.f32.mrf.mxu0
        %v4795 = vadd.f32 %v4691, %v4794
        %4796 = vmatmul.f32.gmra.mxu0 %v4068
        %v4797 = vpop.f32.mrf.mxu0
        %v4798 = vadd.f32 %v4694, %v4797
        %4799 = vmatmul.f32.gmra.mxu0 %v4078
        %v4800 = vpop.f32.mrf.mxu0
        %v4801 = vadd.f32 %v4697, %v4800
        %4802 = vmatmul.f32.gmra.mxu0 %v4088
        %v4803 = vpop.f32.mrf.mxu0
        %v4804 = vadd.f32 %v4700, %v4803
        %4805 = vmatmul.f32.gmra.mxu0 %v4098
        %v4806 = vpop.f32.mrf.mxu0
        %v4807 = vadd.f32 %v4703, %v4806
        %4808 = vmatmul.f32.gmra.mxu0 %v4108
        %v4809 = vpop.f32.mrf.mxu0
        %v4810 = vadd.f32 %v4706, %v4809
        %4811 = vmatmul.f32.gmra.mxu0 %v4118
        %v4812 = vpop.f32.mrf.mxu0
        %v4813 = vadd.f32 %v4709, %v4812
        %4814 = vmatmul.f32.gmra.mxu0 %v4128
        %v4815 = vpop.f32.mrf.mxu0
        %v4816 = vadd.f32 %v4712, %v4815
        %4817 = vmatmul.f32.gmra.mxu0 %v4138
        %v4818 = vpop.f32.mrf.mxu0
        %v4819 = vadd.f32 %v4715, %v4818
        %4820 = vmatmul.f32.gmra.mxu0 %v4141
        %v4821 = vpop.f32.mrf.mxu0
        %v4822 = vadd.f32 %v4718, %v4821
        %4823 = vdwg.mxu0
        %4824 = vmatpush.msra.mxu0 %v3777
        %4825 = vmatpush.msra.mxu0 %v3773
        %4826 = vmatpush.msra.mxu0 %v3769
        %4827 = vmatpush.msra.mxu0 %v3765
        %4828 = vmatpush.msra.mxu0 %v3761
        %4829 = vmatpush.msra.mxu0 %v3757
        %4830 = vmatpush.msra.mxu0 %v3753
        %4831 = vmatpush.msra.mxu0 %v3749
        %4832 = vmatpush.msra.mxu0 %v3745
        %4833 = vmatpush.msra.mxu0 %v3741
        %4834 = vmatpush.msra.mxu0 %v3737
        %4835 = vmatpush.msra.mxu0 %v3733
        %4836 = vmatpush.msra.mxu0 %v3729
        %4837 = vmatpush.msra.mxu0 %v3725
        %4838 = vmatpush.msra.mxu0 %v3721
        %4839 = vmatpush.msra.mxu0 %v3717
        %4840 = vmatmul.f32.gmra.mxu0 %v3867
        %v4841 = vpop.f32.mrf.mxu0
        %v4842 = vadd.f32 %v3847, %v4841
        %4843 = vmatmul.f32.gmra.mxu0 %v3877
        %v4844 = vpop.f32.mrf.mxu0
        %v4845 = vadd.f32 %v3847, %v4844
        %4846 = vmatmul.f32.gmra.mxu0 %v3887
        %v4847 = vpop.f32.mrf.mxu0
        %v4848 = vadd.f32 %v3847, %v4847
        %4849 = vmatmul.f32.gmra.mxu0 %v3897
        %v4850 = vpop.f32.mrf.mxu0
        %v4851 = vadd.f32 %v3847, %v4850
        %4852 = vmatmul.f32.gmra.mxu0 %v3907
        %v4853 = vpop.f32.mrf.mxu0
        %v4854 = vadd.f32 %v3847, %v4853
        %4855 = vmatmul.f32.gmra.mxu0 %v3917
        %v4856 = vpop.f32.mrf.mxu0
        %v4857 = vadd.f32 %v3847, %v4856
        %4858 = vmatmul.f32.gmra.mxu0 %v3927
        %v4859 = vpop.f32.mrf.mxu0
        %v4860 = vadd.f32 %v3847, %v4859
        %4861 = vmatmul.f32.gmra.mxu0 %v3937
        %v4862 = vpop.f32.mrf.mxu0
        %v4863 = vadd.f32 %v3847, %v4862
        %4864 = vmatmul.f32.gmra.mxu0 %v3947
        %v4865 = vpop.f32.mrf.mxu0
        %v4866 = vadd.f32 %v3847, %v4865
        %4867 = vmatmul.f32.gmra.mxu0 %v3957
        %v4868 = vpop.f32.mrf.mxu0
        %v4869 = vadd.f32 %v3847, %v4868
        %4870 = vmatmul.f32.gmra.mxu0 %v3967
        %v4871 = vpop.f32.mrf.mxu0
        %v4872 = vadd.f32 %v3847, %v4871
        %4873 = vmatmul.f32.gmra.mxu0 %v3977
        %v4874 = vpop.f32.mrf.mxu0
        %v4875 = vadd.f32 %v3847, %v4874
        %4876 = vmatmul.f32.gmra.mxu0 %v3987
        %v4877 = vpop.f32.mrf.mxu0
        %v4878 = vadd.f32 %v3847, %v4877
        %4879 = vmatmul.f32.gmra.mxu0 %v3997
        %v4880 = vpop.f32.mrf.mxu0
        %v4881 = vadd.f32 %v3847, %v4880
        %4882 = vmatmul.f32.gmra.mxu0 %v4007
        %v4883 = vpop.f32.mrf.mxu0
        %v4884 = vadd.f32 %v3847, %v4883
        %4885 = vmatmul.f32.gmra.mxu0 %v4017
        %v4886 = vpop.f32.mrf.mxu0
        %v4887 = vadd.f32 %v3847, %v4886
        %4888 = vmatmul.f32.gmra.mxu0 %v4027
        %v4889 = vpop.f32.mrf.mxu0
        %v4890 = vadd.f32 %v3847, %v4889
        %4891 = vmatmul.f32.gmra.mxu0 %v4037
        %v4892 = vpop.f32.mrf.mxu0
        %v4893 = vadd.f32 %v3847, %v4892
        %4894 = vmatmul.f32.gmra.mxu0 %v4047
        %v4895 = vpop.f32.mrf.mxu0
        %v4896 = vadd.f32 %v3847, %v4895
        %4897 = vmatmul.f32.gmra.mxu0 %v4057
        %v4898 = vpop.f32.mrf.mxu0
        %v4899 = vadd.f32 %v3847, %v4898
        %4900 = vmatmul.f32.gmra.mxu0 %v4067
        %v4901 = vpop.f32.mrf.mxu0
        %v4902 = vadd.f32 %v3847, %v4901
        %4903 = vmatmul.f32.gmra.mxu0 %v4077
        %v4904 = vpop.f32.mrf.mxu0
        %v4905 = vadd.f32 %v3847, %v4904
        %4906 = vmatmul.f32.gmra.mxu0 %v4087
        %v4907 = vpop.f32.mrf.mxu0
        %v4908 = vadd.f32 %v3847, %v4907
        %4909 = vmatmul.f32.gmra.mxu0 %v4097
        %v4910 = vpop.f32.mrf.mxu0
        %v4911 = vadd.f32 %v3847, %v4910
        %4912 = vmatmul.f32.gmra.mxu0 %v4107
        %v4913 = vpop.f32.mrf.mxu0
        %v4914 = vadd.f32 %v3847, %v4913
        %4915 = vmatmul.f32.gmra.mxu0 %v4117
        %v4916 = vpop.f32.mrf.mxu0
        %v4917 = vadd.f32 %v3847, %v4916
        %4918 = vmatmul.f32.gmra.mxu0 %v4127
        %v4919 = vpop.f32.mrf.mxu0
        %v4920 = vadd.f32 %v3847, %v4919
        %4921 = vmatmul.f32.gmra.mxu0 %v4137
        %v4922 = vpop.f32.mrf.mxu0
        %v4923 = vadd.f32 %v3847, %v4922
        %4924 = vmatmul.f32.gmra.mxu0 %v4140
        %v4925 = vpop.f32.mrf.mxu0
        %v4926 = vadd.f32 %v3847, %v4925
        %4927 = vdwg.mxu0
        %4928 = vmatpush.msra.mxu0 %v3841
        %4929 = vmatpush.msra.mxu0 %v3837
        %4930 = vmatpush.msra.mxu0 %v3833
        %4931 = vmatpush.msra.mxu0 %v3829
        %4932 = vmatpush.msra.mxu0 %v3825
        %4933 = vmatpush.msra.mxu0 %v3821
        %4934 = vmatpush.msra.mxu0 %v3817
        %4935 = vmatpush.msra.mxu0 %v3813
        %4936 = vmatpush.msra.mxu0 %v3809
        %4937 = vmatpush.msra.mxu0 %v3805
        %4938 = vmatpush.msra.mxu0 %v3801
        %4939 = vmatpush.msra.mxu0 %v3797
        %4940 = vmatpush.msra.mxu0 %v3793
        %4941 = vmatpush.msra.mxu0 %v3789
        %4942 = vmatpush.msra.mxu0 %v3785
        %4943 = vmatpush.msra.mxu0 %v3781
        %4944 = vmatmul.f32.gmra.mxu0 %v3868
        %v4945 = vpop.f32.mrf.mxu0
        %v4946 = vadd.f32 %v4842, %v4945
        %4947 = vmatmul.f32.gmra.mxu0 %v3878
        %v4948 = vpop.f32.mrf.mxu0
        %v4949 = vadd.f32 %v4845, %v4948
        %4950 = vmatmul.f32.gmra.mxu0 %v3888
        %v4951 = vpop.f32.mrf.mxu0
        %v4952 = vadd.f32 %v4848, %v4951
        %4953 = vmatmul.f32.gmra.mxu0 %v3898
        %v4954 = vpop.f32.mrf.mxu0
        %v4955 = vadd.f32 %v4851, %v4954
        %4956 = vmatmul.f32.gmra.mxu0 %v3908
        %v4957 = vpop.f32.mrf.mxu0
        %v4958 = vadd.f32 %v4854, %v4957
        %4959 = vmatmul.f32.gmra.mxu0 %v3918
        %v4960 = vpop.f32.mrf.mxu0
        %v4961 = vadd.f32 %v4857, %v4960
        %4962 = vmatmul.f32.gmra.mxu0 %v3928
        %v4963 = vpop.f32.mrf.mxu0
        %v4964 = vadd.f32 %v4860, %v4963
        %4965 = vmatmul.f32.gmra.mxu0 %v3938
        %v4966 = vpop.f32.mrf.mxu0
        %v4967 = vadd.f32 %v4863, %v4966
        %4968 = vmatmul.f32.gmra.mxu0 %v3948
        %v4969 = vpop.f32.mrf.mxu0
        %v4970 = vadd.f32 %v4866, %v4969
        %4971 = vmatmul.f32.gmra.mxu0 %v3958
        %v4972 = vpop.f32.mrf.mxu0
        %v4973 = vadd.f32 %v4869, %v4972
        %4974 = vmatmul.f32.gmra.mxu0 %v3968
        %v4975 = vpop.f32.mrf.mxu0
        %v4976 = vadd.f32 %v4872, %v4975
        %4977 = vmatmul.f32.gmra.mxu0 %v3978
        %v4978 = vpop.f32.mrf.mxu0
        %v4979 = vadd.f32 %v4875, %v4978
        %4980 = vmatmul.f32.gmra.mxu0 %v3988
        %v4981 = vpop.f32.mrf.mxu0
        %v4982 = vadd.f32 %v4878, %v4981
        %4983 = vmatmul.f32.gmra.mxu0 %v3998
        %v4984 = vpop.f32.mrf.mxu0
        %v4985 = vadd.f32 %v4881, %v4984
        %4986 = vmatmul.f32.gmra.mxu0 %v4008
        %v4987 = vpop.f32.mrf.mxu0
        %v4988 = vadd.f32 %v4884, %v4987
        %4989 = vmatmul.f32.gmra.mxu0 %v4018
        %v4990 = vpop.f32.mrf.mxu0
        %v4991 = vadd.f32 %v4887, %v4990
        %4992 = vmatmul.f32.gmra.mxu0 %v4028
        %v4993 = vpop.f32.mrf.mxu0
        %v4994 = vadd.f32 %v4890, %v4993
        %4995 = vmatmul.f32.gmra.mxu0 %v4038
        %v4996 = vpop.f32.mrf.mxu0
        %v4997 = vadd.f32 %v4893, %v4996
        %4998 = vmatmul.f32.gmra.mxu0 %v4048
        %v4999 = vpop.f32.mrf.mxu0
        %v5000 = vadd.f32 %v4896, %v4999
        %5001 = vmatmul.f32.gmra.mxu0 %v4058
        %v5002 = vpop.f32.mrf.mxu0
        %v5003 = vadd.f32 %v4899, %v5002
        %5004 = vmatmul.f32.gmra.mxu0 %v4068
        %v5005 = vpop.f32.mrf.mxu0
        %v5006 = vadd.f32 %v4902, %v5005
        %5007 = vmatmul.f32.gmra.mxu0 %v4078
        %v5008 = vpop.f32.mrf.mxu0
        %v5009 = vadd.f32 %v4905, %v5008
        %5010 = vmatmul.f32.gmra.mxu0 %v4088
        %v5011 = vpop.f32.mrf.mxu0
        %v5012 = vadd.f32 %v4908, %v5011
        %5013 = vmatmul.f32.gmra.mxu0 %v4098
        %v5014 = vpop.f32.mrf.mxu0
        %v5015 = vadd.f32 %v4911, %v5014
        %5016 = vmatmul.f32.gmra.mxu0 %v4108
        %v5017 = vpop.f32.mrf.mxu0
        %v5018 = vadd.f32 %v4914, %v5017
        %5019 = vmatmul.f32.gmra.mxu0 %v4118
        %v5020 = vpop.f32.mrf.mxu0
        %v5021 = vadd.f32 %v4917, %v5020
        %5022 = vmatmul.f32.gmra.mxu0 %v4128
        %v5023 = vpop.f32.mrf.mxu0
        %v5024 = vadd.f32 %v4920, %v5023
        %5025 = vmatmul.f32.gmra.mxu0 %v4138
        %v5026 = vpop.f32.mrf.mxu0
        %v5027 = vadd.f32 %v4923, %v5026
        %5028 = vmatmul.f32.gmra.mxu0 %v4141
        %v5029 = vpop.f32.mrf.mxu0
        %v5030 = vadd.f32 %v4926, %v5029
        %5031 = vdwg.mxu0
        %v5032 = vmax.f32 %v4322, 0.0
        %v5033 = vmax.f32 %v4530, 0.0
        %v5034 = vmax.f32 %v4738, 0.0
        %v5035 = vmax.f32 %v4946, 0.0
        %v5036 = vmax.f32 %v4325, 0.0
        %v5037 = vmax.f32 %v4533, 0.0
        %v5038 = vmax.f32 %v4741, 0.0
        %v5039 = vmax.f32 %v4949, 0.0
        %v5040 = vmax.f32 %v4328, 0.0
        %v5041 = vmax.f32 %v4536, 0.0
        %v5042 = vmax.f32 %v4744, 0.0
        %v5043 = vmax.f32 %v4952, 0.0
        %v5044 = vmax.f32 %v4331, 0.0
        %v5045 = vmax.f32 %v4539, 0.0
        %v5046 = vmax.f32 %v4747, 0.0
        %v5047 = vmax.f32 %v4955, 0.0
        %v5048 = vmax.f32 %v4334, 0.0
        %v5049 = vmax.f32 %v4542, 0.0
        %v5050 = vmax.f32 %v4750, 0.0
        %v5051 = vmax.f32 %v4958, 0.0
        %v5052 = vmax.f32 %v4337, 0.0
        %v5053 = vmax.f32 %v4545, 0.0
        %v5054 = vmax.f32 %v4753, 0.0
        %v5055 = vmax.f32 %v4961, 0.0
        %v5056 = vmax.f32 %v4340, 0.0
        %v5057 = vmax.f32 %v4548, 0.0
        %v5058 = vmax.f32 %v4756, 0.0
        %v5059 = vmax.f32 %v4964, 0.0
        %v5060 = vmax.f32 %v4343, 0.0
        %v5061 = vmax.f32 %v4551, 0.0
        %v5062 = vmax.f32 %v4759, 0.0
        %v5063 = vmax.f32 %v4967, 0.0
        %v5064 = vmax.f32 %v4346, 0.0
        %v5065 = vmax.f32 %v4554, 0.0
        %v5066 = vmax.f32 %v4762, 0.0
        %v5067 = vmax.f32 %v4970, 0.0
        %v5068 = vmax.f32 %v4349, 0.0
        %v5069 = vmax.f32 %v4557, 0.0
        %v5070 = vmax.f32 %v4765, 0.0
        %v5071 = vmax.f32 %v4973, 0.0
        %v5072 = vmax.f32 %v4352, 0.0
        %v5073 = vmax.f32 %v4560, 0.0
        %v5074 = vmax.f32 %v4768, 0.0
        %v5075 = vmax.f32 %v4976, 0.0
        %v5076 = vmax.f32 %v4355, 0.0
        %v5077 = vmax.f32 %v4563, 0.0
        %v5078 = vmax.f32 %v4771, 0.0
        %v5079 = vmax.f32 %v4979, 0.0
        %v5080 = vmax.f32 %v4358, 0.0
        %v5081 = vmax.f32 %v4566, 0.0
        %v5082 = vmax.f32 %v4774, 0.0
        %v5083 = vmax.f32 %v4982, 0.0
        %v5084 = vmax.f32 %v4361, 0.0
        %v5085 = vmax.f32 %v4569, 0.0
        %v5086 = vmax.f32 %v4777, 0.0
        %v5087 = vmax.f32 %v4985, 0.0
        %v5088 = vmax.f32 %v4364, 0.0
        %v5089 = vmax.f32 %v4572, 0.0
        %v5090 = vmax.f32 %v4780, 0.0
        %v5091 = vmax.f32 %v4988, 0.0
        %v5092 = vmax.f32 %v4367, 0.0
        %v5093 = vmax.f32 %v4575, 0.0
        %v5094 = vmax.f32 %v4783, 0.0
        %v5095 = vmax.f32 %v4991, 0.0
        %v5096 = vmax.f32 %v4370, 0.0
        %v5097 = vmax.f32 %v4578, 0.0
        %v5098 = vmax.f32 %v4786, 0.0
        %v5099 = vmax.f32 %v4994, 0.0
        %v5100 = vmax.f32 %v4373, 0.0
        %v5101 = vmax.f32 %v4581, 0.0
        %v5102 = vmax.f32 %v4789, 0.0
        %v5103 = vmax.f32 %v4997, 0.0
        %v5104 = vmax.f32 %v4376, 0.0
        %v5105 = vmax.f32 %v4584, 0.0
        %v5106 = vmax.f32 %v4792, 0.0
        %v5107 = vmax.f32 %v5000, 0.0
        %v5108 = vmax.f32 %v4379, 0.0
        %v5109 = vmax.f32 %v4587, 0.0
        %v5110 = vmax.f32 %v4795, 0.0
        %v5111 = vmax.f32 %v5003, 0.0
        %v5112 = vmax.f32 %v4382, 0.0
        %v5113 = vmax.f32 %v4590, 0.0
        %v5114 = vmax.f32 %v4798, 0.0
        %v5115 = vmax.f32 %v5006, 0.0
        %v5116 = vmax.f32 %v4385, 0.0
        %v5117 = vmax.f32 %v4593, 0.0
        %v5118 = vmax.f32 %v4801, 0.0
        %v5119 = vmax.f32 %v5009, 0.0
        %v5120 = vmax.f32 %v4388, 0.0
        %v5121 = vmax.f32 %v4596, 0.0
        %v5122 = vmax.f32 %v4804, 0.0
        %v5123 = vmax.f32 %v5012, 0.0
        %v5124 = vmax.f32 %v4391, 0.0
        %v5125 = vmax.f32 %v4599, 0.0
        %v5126 = vmax.f32 %v4807, 0.0
        %v5127 = vmax.f32 %v5015, 0.0
        %v5128 = vmax.f32 %v4394, 0.0
        %v5129 = vmax.f32 %v4602, 0.0
        %v5130 = vmax.f32 %v4810, 0.0
        %v5131 = vmax.f32 %v5018, 0.0
        %v5132 = vmax.f32 %v4397, 0.0
        %v5133 = vmax.f32 %v4605, 0.0
        %v5134 = vmax.f32 %v4813, 0.0
        %v5135 = vmax.f32 %v5021, 0.0
        %v5136 = vmax.f32 %v4400, 0.0
        %v5137 = vmax.f32 %v4608, 0.0
        %v5138 = vmax.f32 %v4816, 0.0
        %v5139 = vmax.f32 %v5024, 0.0
        %v5140 = vmax.f32 %v4403, 0.0
        %v5141 = vmax.f32 %v4611, 0.0
        %v5142 = vmax.f32 %v4819, 0.0
        %v5143 = vmax.f32 %v5027, 0.0
        %v5144 = vmax.f32 %v4406, 0.0
        %v5145 = vmax.f32 %v4614, 0.0
        %v5146 = vmax.f32 %v4822, 0.0
        %v5147 = vmax.f32 %v5030, 0.0
        %v5148 = vld [vmem:[#allocation12] sm:$0xff]
        %v5149 = vld [vmem:[#allocation12 + $0x8] sm:$0xff]
        %v5150 = vld [vmem:[#allocation12 + $0x10] sm:$0xff]
        %v5151 = vld [vmem:[#allocation12 + $0x18] sm:$0xff]
        %v5152 = vld [vmem:[#allocation12 + $0x20] sm:$0xff]
        %v5153 = vld [vmem:[#allocation12 + $0x28] sm:$0xff]
        %v5154 = vld [vmem:[#allocation12 + $0x30] sm:$0xff]
        %v5155 = vld [vmem:[#allocation12 + $0x38] sm:$0xff]
        %v5156 = vld [vmem:[#allocation12 + $0x40] sm:$0xff]
        %v5157 = vld [vmem:[#allocation12 + $0x48] sm:$0xff]
        %v5158 = vld [vmem:[#allocation12 + $0x50] sm:$0xff]
        %v5159 = vld [vmem:[#allocation12 + $0x58] sm:$0xff]
        %v5160 = vld [vmem:[#allocation12 + $0x60] sm:$0xff]
        %v5161 = vld [vmem:[#allocation12 + $0x68] sm:$0xff]
        %v5162 = vld [vmem:[#allocation12 + $0x70] sm:$0xff]
        %v5163 = vld [vmem:[#allocation12 + $0x78] sm:$0xff]
        %v5164 = vld [vmem:[#allocation12 + $0x80] sm:$0xff]
        %v5165 = vld [vmem:[#allocation12 + $0x88] sm:$0xff]
        %v5166 = vld [vmem:[#allocation12 + $0x90] sm:$0xff]
        %v5167 = vld [vmem:[#allocation12 + $0x98] sm:$0xff]
        %v5168 = vld [vmem:[#allocation12 + $0xa0] sm:$0xff]
        %v5169 = vld [vmem:[#allocation12 + $0xa8] sm:$0xff]
        %v5170 = vld [vmem:[#allocation12 + $0xb0] sm:$0xff]
        %v5171 = vld [vmem:[#allocation12 + $0xb8] sm:$0xff]
        %v5172 = vld [vmem:[#allocation12 + $0xc0] sm:$0xff]
        %v5173 = vld [vmem:[#allocation12 + $0xc8] sm:$0xff]
        %v5174 = vld [vmem:[#allocation12 + $0xd0] sm:$0xff]
        %v5175 = vld [vmem:[#allocation12 + $0xd8] sm:$0xff]
        %v5176 = vld [vmem:[#allocation12 + $0xe0] sm:$0xff]
        %v5177 = vld [vmem:[#allocation12 + $0xe8] sm:$0xff]
        %v5178 = vld [vmem:[#allocation12 + $0xf0] sm:$0xff]
        %v5179 = vld [vmem:[#allocation12 + $0xf8] sm:$0xff]
        %v5180 = vld [vmem:[#allocation12 + $0x100] sm:$0xff]
        %v5181 = vld [vmem:[#allocation12 + $0x108] sm:$0xff]
        %v5182 = vld [vmem:[#allocation12 + $0x110] sm:$0xff]
        %v5183 = vld [vmem:[#allocation12 + $0x118] sm:$0xff]
        %v5184 = vld [vmem:[#allocation12 + $0x120] sm:$0xff]
        %v5185 = vld [vmem:[#allocation12 + $0x128] sm:$0xff]
        %v5186 = vld [vmem:[#allocation12 + $0x130] sm:$0xff]
        %v5187 = vld [vmem:[#allocation12 + $0x138] sm:$0xff]
        %v5188 = vld [vmem:[#allocation12 + $0x140] sm:$0xff]
        %v5189 = vld [vmem:[#allocation12 + $0x148] sm:$0xff]
        %v5190 = vld [vmem:[#allocation12 + $0x150] sm:$0xff]
        %v5191 = vld [vmem:[#allocation12 + $0x158] sm:$0xff]
        %v5192 = vld [vmem:[#allocation12 + $0x160] sm:$0xff]
        %v5193 = vld [vmem:[#allocation12 + $0x168] sm:$0xff]
        %v5194 = vld [vmem:[#allocation12 + $0x170] sm:$0xff]
        %v5195 = vld [vmem:[#allocation12 + $0x178] sm:$0xff]
        %v5196 = vld [vmem:[#allocation12 + $0x180] sm:$0xff]
        %v5197 = vld [vmem:[#allocation12 + $0x188] sm:$0xff]
        %v5198 = vld [vmem:[#allocation12 + $0x190] sm:$0xff]
        %v5199 = vld [vmem:[#allocation12 + $0x198] sm:$0xff]
        %v5200 = vld [vmem:[#allocation12 + $0x1a0] sm:$0xff]
        %v5201 = vld [vmem:[#allocation12 + $0x1a8] sm:$0xff]
        %v5202 = vld [vmem:[#allocation12 + $0x1b0] sm:$0xff]
        %v5203 = vld [vmem:[#allocation12 + $0x1b8] sm:$0xff]
        %v5204 = vld [vmem:[#allocation12 + $0x1c0] sm:$0xff]
        %v5205 = vld [vmem:[#allocation12 + $0x1c8] sm:$0xff]
        %v5206 = vld [vmem:[#allocation12 + $0x1d0] sm:$0xff]
        %v5207 = vld [vmem:[#allocation12 + $0x1d8] sm:$0xff]
        %v5208 = vld [vmem:[#allocation12 + $0x1e0] sm:$0xff]
        %v5209 = vld [vmem:[#allocation12 + $0x1e8] sm:$0xff]
        %v5210 = vld [vmem:[#allocation12 + $0x1f0] sm:$0xff]
        %v5211 = vld [vmem:[#allocation12 + $0x1f8] sm:$0xff]
        %v5212 = vld [vmem:[#allocation13] sm:$0x1]
        %v5214 = vperm.slane %v5212, 0
        %5216 = vmatpush.msra.mxu0 %v5163
        %5217 = vmatpush.msra.mxu0 %v5162
        %5218 = vmatpush.msra.mxu0 %v5161
        %5219 = vmatpush.msra.mxu0 %v5160
        %5220 = vmatpush.msra.mxu0 %v5159
        %5221 = vmatpush.msra.mxu0 %v5158
        %5222 = vmatpush.msra.mxu0 %v5157
        %5223 = vmatpush.msra.mxu0 %v5156
        %5224 = vmatpush.msra.mxu0 %v5155
        %5225 = vmatpush.msra.mxu0 %v5154
        %5226 = vmatpush.msra.mxu0 %v5153
        %5227 = vmatpush.msra.mxu0 %v5152
        %5228 = vmatpush.msra.mxu0 %v5151
        %5229 = vmatpush.msra.mxu0 %v5150
        %5230 = vmatpush.msra.mxu0 %v5149
        %5231 = vmatpush.msra.mxu0 %v5148
        %5232 = vmatmul.f32.gmra.mxu0 %v5032
        %v5233 = vpop.f32.mrf.mxu0
        %v5234 = vadd.f32 %v5214, %v5233
        %5235 = vmatmul.f32.gmra.mxu0 %v5036
        %v5236 = vpop.f32.mrf.mxu0
        %v5237 = vadd.f32 %v5214, %v5236
        %5238 = vmatmul.f32.gmra.mxu0 %v5040
        %v5239 = vpop.f32.mrf.mxu0
        %v5240 = vadd.f32 %v5214, %v5239
        %5241 = vmatmul.f32.gmra.mxu0 %v5044
        %v5242 = vpop.f32.mrf.mxu0
        %v5243 = vadd.f32 %v5214, %v5242
        %5244 = vmatmul.f32.gmra.mxu0 %v5048
        %v5245 = vpop.f32.mrf.mxu0
        %v5246 = vadd.f32 %v5214, %v5245
        %5247 = vmatmul.f32.gmra.mxu0 %v5052
        %v5248 = vpop.f32.mrf.mxu0
        %v5249 = vadd.f32 %v5214, %v5248
        %5250 = vmatmul.f32.gmra.mxu0 %v5056
        %v5251 = vpop.f32.mrf.mxu0
        %v5252 = vadd.f32 %v5214, %v5251
        %5253 = vmatmul.f32.gmra.mxu0 %v5060
        %v5254 = vpop.f32.mrf.mxu0
        %v5255 = vadd.f32 %v5214, %v5254
        %5256 = vmatmul.f32.gmra.mxu0 %v5064
        %v5257 = vpop.f32.mrf.mxu0
        %v5258 = vadd.f32 %v5214, %v5257
        %5259 = vmatmul.f32.gmra.mxu0 %v5068
        %v5260 = vpop.f32.mrf.mxu0
        %v5261 = vadd.f32 %v5214, %v5260
        %5262 = vmatmul.f32.gmra.mxu0 %v5072
        %v5263 = vpop.f32.mrf.mxu0
        %v5264 = vadd.f32 %v5214, %v5263
        %5265 = vmatmul.f32.gmra.mxu0 %v5076
        %v5266 = vpop.f32.mrf.mxu0
        %v5267 = vadd.f32 %v5214, %v5266
        %5268 = vmatmul.f32.gmra.mxu0 %v5080
        %v5269 = vpop.f32.mrf.mxu0
        %v5270 = vadd.f32 %v5214, %v5269
        %5271 = vmatmul.f32.gmra.mxu0 %v5084
        %v5272 = vpop.f32.mrf.mxu0
        %v5273 = vadd.f32 %v5214, %v5272
        %5274 = vmatmul.f32.gmra.mxu0 %v5088
        %v5275 = vpop.f32.mrf.mxu0
        %v5276 = vadd.f32 %v5214, %v5275
        %5277 = vmatmul.f32.gmra.mxu0 %v5092
        %v5278 = vpop.f32.mrf.mxu0
        %v5279 = vadd.f32 %v5214, %v5278
        %5280 = vmatmul.f32.gmra.mxu0 %v5096
        %v5281 = vpop.f32.mrf.mxu0
        %v5282 = vadd.f32 %v5214, %v5281
        %5283 = vmatmul.f32.gmra.mxu0 %v5100
        %v5284 = vpop.f32.mrf.mxu0
        %v5285 = vadd.f32 %v5214, %v5284
        %5286 = vmatmul.f32.gmra.mxu0 %v5104
        %v5287 = vpop.f32.mrf.mxu0
        %v5288 = vadd.f32 %v5214, %v5287
        %5289 = vmatmul.f32.gmra.mxu0 %v5108
        %v5290 = vpop.f32.mrf.mxu0
        %v5291 = vadd.f32 %v5214, %v5290
        %5292 = vmatmul.f32.gmra.mxu0 %v5112
        %v5293 = vpop.f32.mrf.mxu0
        %v5294 = vadd.f32 %v5214, %v5293
        %5295 = vmatmul.f32.gmra.mxu0 %v5116
        %v5296 = vpop.f32.mrf.mxu0
        %v5297 = vadd.f32 %v5214, %v5296
        %5298 = vmatmul.f32.gmra.mxu0 %v5120
        %v5299 = vpop.f32.mrf.mxu0
        %v5300 = vadd.f32 %v5214, %v5299
        %5301 = vmatmul.f32.gmra.mxu0 %v5124
        %v5302 = vpop.f32.mrf.mxu0
        %v5303 = vadd.f32 %v5214, %v5302
        %5304 = vmatmul.f32.gmra.mxu0 %v5128
        %v5305 = vpop.f32.mrf.mxu0
        %v5306 = vadd.f32 %v5214, %v5305
        %5307 = vmatmul.f32.gmra.mxu0 %v5132
        %v5308 = vpop.f32.mrf.mxu0
        %v5309 = vadd.f32 %v5214, %v5308
        %5310 = vmatmul.f32.gmra.mxu0 %v5136
        %v5311 = vpop.f32.mrf.mxu0
        %v5312 = vadd.f32 %v5214, %v5311
        %5313 = vmatmul.f32.gmra.mxu0 %v5140
        %v5314 = vpop.f32.mrf.mxu0
        %v5315 = vadd.f32 %v5214, %v5314
        %5316 = vmatmul.f32.gmra.mxu0 %v5144
        %v5317 = vpop.f32.mrf.mxu0
        %v5318 = vadd.f32 %v5214, %v5317
        %5319 = vdwg.mxu0
        %5320 = vmatpush.msra.mxu0 %v5179
        %5321 = vmatpush.msra.mxu0 %v5178
        %5322 = vmatpush.msra.mxu0 %v5177
        %5323 = vmatpush.msra.mxu0 %v5176
        %5324 = vmatpush.msra.mxu0 %v5175
        %5325 = vmatpush.msra.mxu0 %v5174
        %5326 = vmatpush.msra.mxu0 %v5173
        %5327 = vmatpush.msra.mxu0 %v5172
        %5328 = vmatpush.msra.mxu0 %v5171
        %5329 = vmatpush.msra.mxu0 %v5170
        %5330 = vmatpush.msra.mxu0 %v5169
        %5331 = vmatpush.msra.mxu0 %v5168
        %5332 = vmatpush.msra.mxu0 %v5167
        %5333 = vmatpush.msra.mxu0 %v5166
        %5334 = vmatpush.msra.mxu0 %v5165
        %5335 = vmatpush.msra.mxu0 %v5164
        %5336 = vmatmul.f32.gmra.mxu0 %v5033
        %v5337 = vpop.f32.mrf.mxu0
        %v5338 = vadd.f32 %v5234, %v5337
        %5339 = vmatmul.f32.gmra.mxu0 %v5037
        %v5340 = vpop.f32.mrf.mxu0
        %v5341 = vadd.f32 %v5237, %v5340
        %5342 = vmatmul.f32.gmra.mxu0 %v5041
        %v5343 = vpop.f32.mrf.mxu0
        %v5344 = vadd.f32 %v5240, %v5343
        %5345 = vmatmul.f32.gmra.mxu0 %v5045
        %v5346 = vpop.f32.mrf.mxu0
        %v5347 = vadd.f32 %v5243, %v5346
        %5348 = vmatmul.f32.gmra.mxu0 %v5049
        %v5349 = vpop.f32.mrf.mxu0
        %v5350 = vadd.f32 %v5246, %v5349
        %5351 = vmatmul.f32.gmra.mxu0 %v5053
        %v5352 = vpop.f32.mrf.mxu0
        %v5353 = vadd.f32 %v5249, %v5352
        %5354 = vmatmul.f32.gmra.mxu0 %v5057
        %v5355 = vpop.f32.mrf.mxu0
        %v5356 = vadd.f32 %v5252, %v5355
        %5357 = vmatmul.f32.gmra.mxu0 %v5061
        %v5358 = vpop.f32.mrf.mxu0
        %v5359 = vadd.f32 %v5255, %v5358
        %5360 = vmatmul.f32.gmra.mxu0 %v5065
        %v5361 = vpop.f32.mrf.mxu0
        %v5362 = vadd.f32 %v5258, %v5361
        %5363 = vmatmul.f32.gmra.mxu0 %v5069
        %v5364 = vpop.f32.mrf.mxu0
        %v5365 = vadd.f32 %v5261, %v5364
        %5366 = vmatmul.f32.gmra.mxu0 %v5073
        %v5367 = vpop.f32.mrf.mxu0
        %v5368 = vadd.f32 %v5264, %v5367
        %5369 = vmatmul.f32.gmra.mxu0 %v5077
        %v5370 = vpop.f32.mrf.mxu0
        %v5371 = vadd.f32 %v5267, %v5370
        %5372 = vmatmul.f32.gmra.mxu0 %v5081
        %v5373 = vpop.f32.mrf.mxu0
        %v5374 = vadd.f32 %v5270, %v5373
        %5375 = vmatmul.f32.gmra.mxu0 %v5085
        %v5376 = vpop.f32.mrf.mxu0
        %v5377 = vadd.f32 %v5273, %v5376
        %5378 = vmatmul.f32.gmra.mxu0 %v5089
        %v5379 = vpop.f32.mrf.mxu0
        %v5380 = vadd.f32 %v5276, %v5379
        %5381 = vmatmul.f32.gmra.mxu0 %v5093
        %v5382 = vpop.f32.mrf.mxu0
        %v5383 = vadd.f32 %v5279, %v5382
        %5384 = vmatmul.f32.gmra.mxu0 %v5097
        %v5385 = vpop.f32.mrf.mxu0
        %v5386 = vadd.f32 %v5282, %v5385
        %5387 = vmatmul.f32.gmra.mxu0 %v5101
        %v5388 = vpop.f32.mrf.mxu0
        %v5389 = vadd.f32 %v5285, %v5388
        %5390 = vmatmul.f32.gmra.mxu0 %v5105
        %v5391 = vpop.f32.mrf.mxu0
        %v5392 = vadd.f32 %v5288, %v5391
        %5393 = vmatmul.f32.gmra.mxu0 %v5109
        %v5394 = vpop.f32.mrf.mxu0
        %v5395 = vadd.f32 %v5291, %v5394
        %5396 = vmatmul.f32.gmra.mxu0 %v5113
        %v5397 = vpop.f32.mrf.mxu0
        %v5398 = vadd.f32 %v5294, %v5397
        %5399 = vmatmul.f32.gmra.mxu0 %v5117
        %v5400 = vpop.f32.mrf.mxu0
        %v5401 = vadd.f32 %v5297, %v5400
        %5402 = vmatmul.f32.gmra.mxu0 %v5121
        %v5403 = vpop.f32.mrf.mxu0
        %v5404 = vadd.f32 %v5300, %v5403
        %5405 = vmatmul.f32.gmra.mxu0 %v5125
        %v5406 = vpop.f32.mrf.mxu0
        %v5407 = vadd.f32 %v5303, %v5406
        %5408 = vmatmul.f32.gmra.mxu0 %v5129
        %v5409 = vpop.f32.mrf.mxu0
        %v5410 = vadd.f32 %v5306, %v5409
        %5411 = vmatmul.f32.gmra.mxu0 %v5133
        %v5412 = vpop.f32.mrf.mxu0
        %v5413 = vadd.f32 %v5309, %v5412
        %5414 = vmatmul.f32.gmra.mxu0 %v5137
        %v5415 = vpop.f32.mrf.mxu0
        %v5416 = vadd.f32 %v5312, %v5415
        %5417 = vmatmul.f32.gmra.mxu0 %v5141
        %v5418 = vpop.f32.mrf.mxu0
        %v5419 = vadd.f32 %v5315, %v5418
        %5420 = vmatmul.f32.gmra.mxu0 %v5145
        %v5421 = vpop.f32.mrf.mxu0
        %v5422 = vadd.f32 %v5318, %v5421
        %5423 = vdwg.mxu0
        %5424 = vmatpush.msra.mxu0 %v5195
        %5425 = vmatpush.msra.mxu0 %v5194
        %5426 = vmatpush.msra.mxu0 %v5193
        %5427 = vmatpush.msra.mxu0 %v5192
        %5428 = vmatpush.msra.mxu0 %v5191
        %5429 = vmatpush.msra.mxu0 %v5190
        %5430 = vmatpush.msra.mxu0 %v5189
        %5431 = vmatpush.msra.mxu0 %v5188
        %5432 = vmatpush.msra.mxu0 %v5187
        %5433 = vmatpush.msra.mxu0 %v5186
        %5434 = vmatpush.msra.mxu0 %v5185
        %5435 = vmatpush.msra.mxu0 %v5184
        %5436 = vmatpush.msra.mxu0 %v5183
        %5437 = vmatpush.msra.mxu0 %v5182
        %5438 = vmatpush.msra.mxu0 %v5181
        %5439 = vmatpush.msra.mxu0 %v5180
        %5440 = vmatmul.f32.gmra.mxu0 %v5034
        %v5441 = vpop.f32.mrf.mxu0
        %v5442 = vadd.f32 %v5338, %v5441
        %5443 = vmatmul.f32.gmra.mxu0 %v5038
        %v5444 = vpop.f32.mrf.mxu0
        %v5445 = vadd.f32 %v5341, %v5444
        %5446 = vmatmul.f32.gmra.mxu0 %v5042
        %v5447 = vpop.f32.mrf.mxu0
        %v5448 = vadd.f32 %v5344, %v5447
        %5449 = vmatmul.f32.gmra.mxu0 %v5046
        %v5450 = vpop.f32.mrf.mxu0
        %v5451 = vadd.f32 %v5347, %v5450
        %5452 = vmatmul.f32.gmra.mxu0 %v5050
        %v5453 = vpop.f32.mrf.mxu0
        %v5454 = vadd.f32 %v5350, %v5453
        %5455 = vmatmul.f32.gmra.mxu0 %v5054
        %v5456 = vpop.f32.mrf.mxu0
        %v5457 = vadd.f32 %v5353, %v5456
        %5458 = vmatmul.f32.gmra.mxu0 %v5058
        %v5459 = vpop.f32.mrf.mxu0
        %v5460 = vadd.f32 %v5356, %v5459
        %5461 = vmatmul.f32.gmra.mxu0 %v5062
        %v5462 = vpop.f32.mrf.mxu0
        %v5463 = vadd.f32 %v5359, %v5462
        %5464 = vmatmul.f32.gmra.mxu0 %v5066
        %v5465 = vpop.f32.mrf.mxu0
        %v5466 = vadd.f32 %v5362, %v5465
        %5467 = vmatmul.f32.gmra.mxu0 %v5070
        %v5468 = vpop.f32.mrf.mxu0
        %v5469 = vadd.f32 %v5365, %v5468
        %5470 = vmatmul.f32.gmra.mxu0 %v5074
        %v5471 = vpop.f32.mrf.mxu0
        %v5472 = vadd.f32 %v5368, %v5471
        %5473 = vmatmul.f32.gmra.mxu0 %v5078
        %v5474 = vpop.f32.mrf.mxu0
        %v5475 = vadd.f32 %v5371, %v5474
        %5476 = vmatmul.f32.gmra.mxu0 %v5082
        %v5477 = vpop.f32.mrf.mxu0
        %v5478 = vadd.f32 %v5374, %v5477
        %5479 = vmatmul.f32.gmra.mxu0 %v5086
        %v5480 = vpop.f32.mrf.mxu0
        %v5481 = vadd.f32 %v5377, %v5480
        %5482 = vmatmul.f32.gmra.mxu0 %v5090
        %v5483 = vpop.f32.mrf.mxu0
        %v5484 = vadd.f32 %v5380, %v5483
        %5485 = vmatmul.f32.gmra.mxu0 %v5094
        %v5486 = vpop.f32.mrf.mxu0
        %v5487 = vadd.f32 %v5383, %v5486
        %5488 = vmatmul.f32.gmra.mxu0 %v5098
        %v5489 = vpop.f32.mrf.mxu0
        %v5490 = vadd.f32 %v5386, %v5489
        %5491 = vmatmul.f32.gmra.mxu0 %v5102
        %v5492 = vpop.f32.mrf.mxu0
        %v5493 = vadd.f32 %v5389, %v5492
        %5494 = vmatmul.f32.gmra.mxu0 %v5106
        %v5495 = vpop.f32.mrf.mxu0
        %v5496 = vadd.f32 %v5392, %v5495
        %5497 = vmatmul.f32.gmra.mxu0 %v5110
        %v5498 = vpop.f32.mrf.mxu0
        %v5499 = vadd.f32 %v5395, %v5498
        %5500 = vmatmul.f32.gmra.mxu0 %v5114
        %v5501 = vpop.f32.mrf.mxu0
        %v5502 = vadd.f32 %v5398, %v5501
        %5503 = vmatmul.f32.gmra.mxu0 %v5118
        %v5504 = vpop.f32.mrf.mxu0
        %v5505 = vadd.f32 %v5401, %v5504
        %5506 = vmatmul.f32.gmra.mxu0 %v5122
        %v5507 = vpop.f32.mrf.mxu0
        %v5508 = vadd.f32 %v5404, %v5507
        %5509 = vmatmul.f32.gmra.mxu0 %v5126
        %v5510 = vpop.f32.mrf.mxu0
        %v5511 = vadd.f32 %v5407, %v5510
        %5512 = vmatmul.f32.gmra.mxu0 %v5130
        %v5513 = vpop.f32.mrf.mxu0
        %v5514 = vadd.f32 %v5410, %v5513
        %5515 = vmatmul.f32.gmra.mxu0 %v5134
        %v5516 = vpop.f32.mrf.mxu0
        %v5517 = vadd.f32 %v5413, %v5516
        %5518 = vmatmul.f32.gmra.mxu0 %v5138
        %v5519 = vpop.f32.mrf.mxu0
        %v5520 = vadd.f32 %v5416, %v5519
        %5521 = vmatmul.f32.gmra.mxu0 %v5142
        %v5522 = vpop.f32.mrf.mxu0
        %v5523 = vadd.f32 %v5419, %v5522
        %5524 = vmatmul.f32.gmra.mxu0 %v5146
        %v5525 = vpop.f32.mrf.mxu0
        %v5526 = vadd.f32 %v5422, %v5525
        %5527 = vdwg.mxu0
        %5528 = vmatpush.msra.mxu0 %v5211
        %5529 = vmatpush.msra.mxu0 %v5210
        %5530 = vmatpush.msra.mxu0 %v5209
        %5531 = vmatpush.msra.mxu0 %v5208
        %5532 = vmatpush.msra.mxu0 %v5207
        %5533 = vmatpush.msra.mxu0 %v5206
        %5534 = vmatpush.msra.mxu0 %v5205
        %5535 = vmatpush.msra.mxu0 %v5204
        %5536 = vmatpush.msra.mxu0 %v5203
        %5537 = vmatpush.msra.mxu0 %v5202
        %5538 = vmatpush.msra.mxu0 %v5201
        %5539 = vmatpush.msra.mxu0 %v5200
        %5540 = vmatpush.msra.mxu0 %v5199
        %5541 = vmatpush.msra.mxu0 %v5198
        %5542 = vmatpush.msra.mxu0 %v5197
        %5543 = vmatpush.msra.mxu0 %v5196
        %5544 = vmatmul.f32.gmra.mxu0 %v5035
        %v5545 = vpop.f32.mrf.mxu0
        %v5546 = vadd.f32 %v5442, %v5545
        %5547 = vmatmul.f32.gmra.mxu0 %v5039
        %v5548 = vpop.f32.mrf.mxu0
        %v5549 = vadd.f32 %v5445, %v5548
        %5550 = vmatmul.f32.gmra.mxu0 %v5043
        %v5551 = vpop.f32.mrf.mxu0
        %v5552 = vadd.f32 %v5448, %v5551
        %5553 = vmatmul.f32.gmra.mxu0 %v5047
        %v5554 = vpop.f32.mrf.mxu0
        %v5555 = vadd.f32 %v5451, %v5554
        %5556 = vmatmul.f32.gmra.mxu0 %v5051
        %v5557 = vpop.f32.mrf.mxu0
        %v5558 = vadd.f32 %v5454, %v5557
        %5559 = vmatmul.f32.gmra.mxu0 %v5055
        %v5560 = vpop.f32.mrf.mxu0
        %v5561 = vadd.f32 %v5457, %v5560
        %5562 = vmatmul.f32.gmra.mxu0 %v5059
        %v5563 = vpop.f32.mrf.mxu0
        %v5564 = vadd.f32 %v5460, %v5563
        %5565 = vmatmul.f32.gmra.mxu0 %v5063
        %v5566 = vpop.f32.mrf.mxu0
        %v5567 = vadd.f32 %v5463, %v5566
        %5568 = vmatmul.f32.gmra.mxu0 %v5067
        %v5569 = vpop.f32.mrf.mxu0
        %v5570 = vadd.f32 %v5466, %v5569
        %5571 = vmatmul.f32.gmra.mxu0 %v5071
        %v5572 = vpop.f32.mrf.mxu0
        %v5573 = vadd.f32 %v5469, %v5572
        %5574 = vmatmul.f32.gmra.mxu0 %v5075
        %v5575 = vpop.f32.mrf.mxu0
        %v5576 = vadd.f32 %v5472, %v5575
        %5577 = vmatmul.f32.gmra.mxu0 %v5079
        %v5578 = vpop.f32.mrf.mxu0
        %v5579 = vadd.f32 %v5475, %v5578
        %5580 = vmatmul.f32.gmra.mxu0 %v5083
        %v5581 = vpop.f32.mrf.mxu0
        %v5582 = vadd.f32 %v5478, %v5581
        %5583 = vmatmul.f32.gmra.mxu0 %v5087
        %v5584 = vpop.f32.mrf.mxu0
        %v5585 = vadd.f32 %v5481, %v5584
        %5586 = vmatmul.f32.gmra.mxu0 %v5091
        %v5587 = vpop.f32.mrf.mxu0
        %v5588 = vadd.f32 %v5484, %v5587
        %5589 = vmatmul.f32.gmra.mxu0 %v5095
        %v5590 = vpop.f32.mrf.mxu0
        %v5591 = vadd.f32 %v5487, %v5590
        %5592 = vmatmul.f32.gmra.mxu0 %v5099
        %v5593 = vpop.f32.mrf.mxu0
        %v5594 = vadd.f32 %v5490, %v5593
        %5595 = vmatmul.f32.gmra.mxu0 %v5103
        %v5596 = vpop.f32.mrf.mxu0
        %v5597 = vadd.f32 %v5493, %v5596
        %5598 = vmatmul.f32.gmra.mxu0 %v5107
        %v5599 = vpop.f32.mrf.mxu0
        %v5600 = vadd.f32 %v5496, %v5599
        %5601 = vmatmul.f32.gmra.mxu0 %v5111
        %v5602 = vpop.f32.mrf.mxu0
        %v5603 = vadd.f32 %v5499, %v5602
        %5604 = vmatmul.f32.gmra.mxu0 %v5115
        %v5605 = vpop.f32.mrf.mxu0
        %v5606 = vadd.f32 %v5502, %v5605
        %5607 = vmatmul.f32.gmra.mxu0 %v5119
        %v5608 = vpop.f32.mrf.mxu0
        %v5609 = vadd.f32 %v5505, %v5608
        %5610 = vmatmul.f32.gmra.mxu0 %v5123
        %v5611 = vpop.f32.mrf.mxu0
        %v5612 = vadd.f32 %v5508, %v5611
        %5613 = vmatmul.f32.gmra.mxu0 %v5127
        %v5614 = vpop.f32.mrf.mxu0
        %v5615 = vadd.f32 %v5511, %v5614
        %5616 = vmatmul.f32.gmra.mxu0 %v5131
        %v5617 = vpop.f32.mrf.mxu0
        %v5618 = vadd.f32 %v5514, %v5617
        %5619 = vmatmul.f32.gmra.mxu0 %v5135
        %v5620 = vpop.f32.mrf.mxu0
        %v5621 = vadd.f32 %v5517, %v5620
        %5622 = vmatmul.f32.gmra.mxu0 %v5139
        %v5623 = vpop.f32.mrf.mxu0
        %v5624 = vadd.f32 %v5520, %v5623
        %5625 = vmatmul.f32.gmra.mxu0 %v5143
        %v5626 = vpop.f32.mrf.mxu0
        %v5627 = vadd.f32 %v5523, %v5626
        %5628 = vmatmul.f32.gmra.mxu0 %v5147
        %v5629 = vpop.f32.mrf.mxu0
        %v5630 = vadd.f32 %v5526, %v5629
        %5631 = vdwg.mxu0
        %5632 = vst [vmem:[%s514] sm:$0xff] %v5546
        %5633 = vst [vmem:[%s514 + $0x8] sm:$0xff] %v5549
        %5634 = vst [vmem:[%s514 + $0x10] sm:$0xff] %v5552
        %5635 = vst [vmem:[%s514 + $0x18] sm:$0xff] %v5555
        %5636 = vst [vmem:[%s514 + $0x20] sm:$0xff] %v5558
        %5637 = vst [vmem:[%s514 + $0x28] sm:$0xff] %v5561
        %5638 = vst [vmem:[%s514 + $0x30] sm:$0xff] %v5564
        %5639 = vst [vmem:[%s514 + $0x38] sm:$0xff] %v5567
        %5640 = vst [vmem:[%s514 + $0x40] sm:$0xff] %v5570
        %5641 = vst [vmem:[%s514 + $0x48] sm:$0xff] %v5573
        %5642 = vst [vmem:[%s514 + $0x50] sm:$0xff] %v5576
        %5643 = vst [vmem:[%s514 + $0x58] sm:$0xff] %v5579
        %5644 = vst [vmem:[%s514 + $0x60] sm:$0xff] %v5582
        %5645 = vst [vmem:[%s514 + $0x68] sm:$0xff] %v5585
        %5646 = vst [vmem:[%s514 + $0x70] sm:$0xff] %v5588
        %5647 = vst [vmem:[%s514 + $0x78] sm:$0xff] %v5591
        %5648 = vst [vmem:[%s514 + $0x80] sm:$0xff] %v5594
        %5649 = vst [vmem:[%s514 + $0x88] sm:$0xff] %v5597
        %5650 = vst [vmem:[%s514 + $0x90] sm:$0xff] %v5600
        %5651 = vst [vmem:[%s514 + $0x98] sm:$0xff] %v5603
        %5652 = vst [vmem:[%s514 + $0xa0] sm:$0xff] %v5606
        %5653 = vst [vmem:[%s514 + $0xa8] sm:$0xff] %v5609
        %5654 = vst [vmem:[%s514 + $0xb0] sm:$0xff] %v5612
        %5655 = vst [vmem:[%s514 + $0xb8] sm:$0xff] %v5615
        %5656 = vst [vmem:[%s514 + $0xc0] sm:$0xff] %v5618
        %5657 = vst [vmem:[%s514 + $0xc8] sm:$0xff] %v5621
        %5658 = vst [vmem:[%s514 + $0xd0] sm:$0xff] %v5624
        %5659 = vst [vmem:[%s514 + $0xd8] sm:$0xff] %v5627
        %5660 = vst [vmem:[%s514 + $0xe0] sm:$0x1] %v5630
        %p5661 = scmp.lt.s32.totalorder %s29, 1
        %s5662 = scalar_select %p5661, %s29, 1
        %s5663 = smul.addr %s5662, 29
        %s5664 = smul.addr %s5663, 8
        %s5665 = scalar_lea.vmem %s11, %s5664
        // Predicated region
        $region97: #{decoder_forward_pallas.1} parent=63 // pred_check
          %p5666 = pneg %p283
        $region98: #{decoder_forward_pallas.1} parent=63 // pred_check_branch
          %5668 = sbr.rel (%p5666) target = $region100
        $region99: #{decoder_forward_pallas.1} parent=63 // pred_region
          _
        $region100: #{decoder_forward_pallas.1} parent=63 // pred_fallthru
          _
      $region64: #{decoder_forward_pallas.1} parent=5 // pred_fallthru
        _
      %p5669 = scmp.le.s32.totalorder 2, %s24
      // Predicated region
      $region101: #{decoder_forward_pallas.1} parent=5 // pred_check
        %p5670 = pneg %p5669
      $region102: #{decoder_forward_pallas.1} parent=5 // pred_check_branch
        %5672 = sbr.rel (%p5670) target = $region104
      $region103: #{decoder_forward_pallas.1} parent=5 // pred_region
        %s5673 = ssub.s32 %s24, 2
        // Predicated region
        $region105: #{decoder_forward_pallas.1} parent=103 // pred_check
          %p5674 = pneg %p289
        $region106: #{decoder_forward_pallas.1} parent=103 // pred_check_branch
          %5676 = sbr.rel (%p5674) target = $region108
        $region107: #{decoder_forward_pallas.1} parent=103 // pred_region
          %p5677 = scmp.lt.s32.totalorder %s30, 1
          %s5678 = scalar_select %p5677, %s30, 1
          %s5679 = smul.addr %s5678, 29
          %s5680 = smul.addr %s5679, 8
          %s5681 = scalar_lea.vmem %s11, %s5680
        $region108: #{decoder_forward_pallas.1} parent=103 // pred_fallthru
          _
      $region104: #{decoder_forward_pallas.1} parent=5 // pred_fallthru
        _
    $region6: #{decoder_forward_pallas.1} parent=1 // loop_footer
      %s28 = sadd.s32 1, %s24
    $region7: #{decoder_forward_pallas.1} parent=1 // loop_footer_branch
      %23 = sbr.rel target = $region3
    $region8: #{decoder_forward_pallas.1} parent=1 // loop_exit
      _
    %5682 = vsyncpa [#allocation3], 1
    %s5683 = scalar_lea.sflag [#allocation3], 1
    %5684 = vsyncpa %s5683, 1
    %5685 = vsyncpa [#allocation5], 1
    %5686 = vsyncpa [#allocation8], 1
    %5687 = vsyncpa [#allocation11], 1
    %5688 = vsyncpa [#allocation14], 1

</llo_original>
